<compile_context>
chip_gen: v6e
topology: v6e:2x2x1
jax: 0.10.0
libtpu: 0.0.40
codegen_flags: <defaults>
</compile_context>

<pallas_src>
import jax
import jax.numpy as jnp
from jax.experimental import pallas as pl
from jax.experimental.pallas import tpu as pltpu

LANE = 128
SUBLANE = 8


# --------------------------------------------------------------------------
# Kernel A: LSTM recurrence (once, at j == 0) + streamed fc tile + flash stats
# --------------------------------------------------------------------------
def lstm_fc_stats_kernel(emb_ref, wih_ref, whh_ref, b_ref, wfc_ref, bfc_ref,
                         logits_ref, lse_ref,
                         xproj_ref, hbuf_ref, m_ref, l_ref):
    j = pl.program_id(0)
    T = logits_ref.shape[0]             # sublane-padded sequence length
    Hp = hbuf_ref.shape[1]              # lane-padded hidden size

    # ---- serial LSTM recurrence: run once, keep h_t resident in VMEM ----
    @pl.when(j == 0)
    def _():
        # fused input projection for all gates / all timesteps (one matmul)
        xproj_ref[...] = (
            jnp.dot(emb_ref[...], wih_ref[...],
                    preferred_element_type=jnp.float32)
            + b_ref[...])

        def step(t, carry):
            h, c = carry                                        # each (1, Hp) f32
            g = (xproj_ref[pl.ds(t, 1), :]
                 + jnp.dot(h, whh_ref[...],
                           preferred_element_type=jnp.float32))
            i_g = jax.nn.sigmoid(g[:, 0 * Hp:1 * Hp])
            f_g = jax.nn.sigmoid(g[:, 1 * Hp:2 * Hp])
            g_g = jnp.tanh(g[:, 2 * Hp:3 * Hp])
            o_g = jax.nn.sigmoid(g[:, 3 * Hp:4 * Hp])
            c_new = f_g * c + i_g * g_g
            h_new = o_g * jnp.tanh(c_new)
            hbuf_ref[pl.ds(t, 1), :] = h_new.astype(hbuf_ref.dtype)
            return (h_new, c_new)

        h0 = jnp.zeros((1, Hp), jnp.float32)
        c0 = jnp.zeros((1, Hp), jnp.float32)
        jax.lax.fori_loop(0, T, step, (h0, c0), unroll=min(T, 8))

        m_ref[...] = jnp.full(m_ref.shape, -jnp.inf, m_ref.dtype)
        l_ref[...] = jnp.zeros(l_ref.shape, l_ref.dtype)

    # ---- streamed fc tile: (T,Hp) bf16 x (Hp,TV) bf16 -> f32 on the MXU ----
    logits = (jnp.dot(hbuf_ref[...], wfc_ref[...],
                      preferred_element_type=jnp.float32)
              + bfc_ref[...])
    logits_ref[...] = logits

    # ---- running (flash) max / sum-exp across vocab tiles ----
    m_old = m_ref[...]
    m_new = jnp.maximum(m_old, jnp.max(logits, axis=1, keepdims=True))
    l_ref[...] = (l_ref[...] * jnp.exp(m_old - m_new)
                  + jnp.sum(jnp.exp(logits - m_new), axis=1, keepdims=True))
    m_ref[...] = m_new

    @pl.when(j == pl.num_programs(0) - 1)
    def _():
        lse_ref[...] = m_ref[...] + jnp.log(l_ref[...])


# --------------------------------------------------------------------------
# Kernel B: log_softmax finalize — out = logits - lse, streamed per vocab tile
# --------------------------------------------------------------------------
def normalize_kernel(lse_ref, logits_ref, out_ref):
    out_ref[...] = logits_ref[...] - lse_ref[...]


def _pad_axis(x, size, axis, value=0.0):
    pad = size - x.shape[axis]
    if pad == 0:
        return x
    widths = [(0, 0)] * x.ndim
    widths[axis] = (0, pad)
    return jnp.pad(x, widths, constant_values=value)


def decoder_forward(sentence, params, *, vocab_tile=1024):
    """sentence: (T,) int32 token ids.  Returns (T, vocab) log-probs."""
    emb_tbl, w_ih, w_hh, b_ih, b_hh, w_fc, b_fc = params
    V, E = emb_tbl.shape
    H = w_hh.shape[1]
    T = sentence.shape[0]

    Hp = pl.cdiv(H, LANE) * LANE
    Ep = pl.cdiv(E, LANE) * LANE
    Tp = pl.cdiv(T, SUBLANE) * SUBLANE
    TV = min(vocab_tile, pl.cdiv(V, LANE) * LANE)     # vocab tile (lane multiple)
    Vp = pl.cdiv(V, TV) * TV
    nvt = Vp // TV

    # --- embedding gather in the wrapper: only the T needed rows enter VMEM ---
    embeds = emb_tbl[sentence.astype(jnp.int32)]                    # (T, E)
    embeds = _pad_axis(_pad_axis(embeds, Ep, axis=1), Tp, axis=0)   # (Tp, Ep)

    # --- fuse + lane-pad LSTM params (PyTorch gate order i, f, g, o) ---
    wih = jnp.transpose(w_ih.reshape(4, H, E), (0, 2, 1))           # (4, E, H)
    wih = _pad_axis(_pad_axis(wih, Hp, axis=2), Ep, axis=1)         # (4, Ep, Hp)
    wih_fused = jnp.transpose(wih, (1, 0, 2)).reshape(Ep, 4 * Hp)   # (Ep, 4Hp)

    whh = jnp.transpose(w_hh.reshape(4, H, H), (0, 2, 1))           # (4, Hin, Hout)
    whh = _pad_axis(_pad_axis(whh, Hp, axis=2), Hp, axis=1)         # (4, Hp, Hp)
    whh_fused = jnp.transpose(whh, (1, 0, 2)).reshape(Hp, 4 * Hp)   # (Hp, 4Hp)

    b = _pad_axis((b_ih + b_hh).reshape(4, H), Hp, axis=1)          # (4, Hp)
    b_fused = b.reshape(1, 4 * Hp)                                  # (1, 4Hp)

    # --- fc weight: bf16, streamed over vocab tiles; pad lanes get 0 / -1e30 ---
    wfc = _pad_axis(_pad_axis(jnp.transpose(w_fc), Hp, axis=0), Vp, axis=1)
    wfc = wfc.astype(jnp.bfloat16)                                  # (Hp, Vp) bf16
    bfc = _pad_axis(b_fc.reshape(1, V), Vp, axis=1, value=-1e30)    # (1, Vp) f32

    # --- VMEM budget: resident set + double-buffered streamed tiles, cap 48 MiB ---
    resident_bytes = (4 * (Tp * Ep + Ep * 4 * Hp + Hp * 4 * Hp + 4 * Hp
                           + Tp * 4 * Hp + 2 * Tp)
                      + 2 * Tp * Hp)
    streamed_bytes = 2 * (2 * Hp * TV + 4 * TV + 4 * Tp * TV)
    vmem_limit = int(min(48 * 2**20,
                         max(16 * 2**20, 2 * (resident_bytes + streamed_bytes))))

    cost_a = pl.CostEstimate(
        flops=2 * Tp * Ep * 4 * Hp + 2 * Tp * Hp * 4 * Hp + 2 * Tp * Hp * Vp,
        transcendentals=5 * Tp * Hp + Tp * Vp,
        bytes_accessed=(4 * (Tp * Ep + Ep * 4 * Hp + Hp * 4 * Hp + 4 * Hp)
                        + 2 * Hp * Vp + 4 * Vp + 4 * Tp * Vp + 4 * Tp))

    logits, lse = pl.pallas_call(
        lstm_fc_stats_kernel,
        out_shape=(jax.ShapeDtypeStruct((Tp, Vp), jnp.float32),
                   jax.ShapeDtypeStruct((Tp, 1), jnp.float32)),
        grid=(nvt,),
        in_specs=[
            pl.BlockSpec((Tp, Ep), lambda j: (0, 0)),        # embeds (resident)
            pl.BlockSpec((Ep, 4 * Hp), lambda j: (0, 0)),    # fused w_ih
            pl.BlockSpec((Hp, 4 * Hp), lambda j: (0, 0)),    # fused w_hh
            pl.BlockSpec((1, 4 * Hp), lambda j: (0, 0)),     # fused bias
            pl.BlockSpec((Hp, TV), lambda j: (0, j)),        # wfc (streamed, bf16)
            pl.BlockSpec((1, TV), lambda j: (0, j)),         # bfc (streamed)
        ],
        out_specs=(
            pl.BlockSpec((Tp, TV), lambda j: (0, j)),        # logits (streamed)
            pl.BlockSpec((Tp, 1), lambda j: (0, 0)),         # lse (resident)
        ),
        scratch_shapes=[
            pltpu.VMEM((Tp, 4 * Hp), jnp.float32),   # fused gate pre-activations
            pltpu.VMEM((Tp, Hp), jnp.bfloat16),      # hidden states h_t (bf16)
            pltpu.VMEM((Tp, 1), jnp.float32),        # running max
            pltpu.VMEM((Tp, 1), jnp.float32),        # running sum-exp
        ],
        compiler_params=pltpu.CompilerParams(
            dimension_semantics=("arbitrary",),
            vmem_limit_bytes=vmem_limit),
        cost_estimate=cost_a,
    )(embeds, wih_fused, whh_fused, b_fused, wfc, bfc)

    cost_b = pl.CostEstimate(
        flops=Tp * Vp,
        transcendentals=0,
        bytes_accessed=4 * (2 * Tp * Vp + Tp))

    out = pl.pallas_call(
        normalize_kernel,
        out_shape=jax.ShapeDtypeStruct((Tp, Vp), jnp.float32),
        grid=(nvt,),
        in_specs=[
            pl.BlockSpec((Tp, 1), lambda j: (0, 0)),         # lse (resident)
            pl.BlockSpec((Tp, TV), lambda j: (0, j)),        # logits (streamed)
        ],
        out_specs=pl.BlockSpec((Tp, TV), lambda j: (0, j)),  # log-probs (streamed)
        compiler_params=pltpu.CompilerParams(
            dimension_semantics=("parallel",)),
        cost_estimate=cost_b,
    )(lse, logits)

    return out[:T, :V]


def decoder_reference(sentence, params):
    """Pure-JAX reference mirroring the PyTorch module's forward (f32)."""
    emb_tbl, w_ih, w_hh, b_ih, b_hh, w_fc, b_fc = params
    H = w_hh.shape[1]
    embeds = emb_tbl[sentence]                                   # (T, E)

    def step(carry, x):
        h, c = carry
        gates = x @ w_ih.T + b_ih + h @ w_hh.T + b_hh
        i = jax.nn.sigmoid(gates[0:H])
        f = jax.nn.sigmoid(gates[H:2 * H])
        g = jnp.tanh(gates[2 * H:3 * H])
        o = jax.nn.sigmoid(gates[3 * H:4 * H])
        c = f * c + i * g
        h = o * jnp.tanh(c)
        return (h, c), h

    (_, _), hs = jax.lax.scan(
        step, (jnp.zeros((H,), jnp.float32), jnp.zeros((H,), jnp.float32)),
        embeds)
    logits = hs @ w_fc.T + b_fc                                  # (T, V)
    return jax.nn.log_softmax(logits, axis=1)


def init_params(key, embedding_dim, hidden_dim, vocab_size):
    ks = jax.random.split(key, 7)
    s = 0.1
    emb_tbl = jax.random.normal(ks[0], (vocab_size, embedding_dim), jnp.float32)
    w_ih = s * jax.random.normal(ks[1], (4 * hidden_dim, embedding_dim), jnp.float32)
    w_hh = s * jax.random.normal(ks[2], (4 * hidden_dim, hidden_dim), jnp.float32)
    b_ih = s * jax.random.normal(ks[3], (4 * hidden_dim,), jnp.float32)
    b_hh = s * jax.random.normal(ks[4], (4 * hidden_dim,), jnp.float32)
    w_fc = s * jax.random.normal(ks[5], (vocab_size, hidden_dim), jnp.float32)
    b_fc = s * jax.random.normal(ks[6], (vocab_size,), jnp.float32)
    return (emb_tbl, w_ih, w_hh, b_ih, b_hh, w_fc, b_fc)


if __name__ == "__main__":
    fwd = jax.jit(decoder_forward, static_argnames=("vocab_tile",))

    # --- config 1: demo shapes (single vocab tile) ---
    EMBEDDING_DIM, HIDDEN_DIM, VOCAB_SIZE, SEQ_LEN = 32, 32, 64, 8
    key = jax.random.PRNGKey(0)
    pkey, skey = jax.random.split(key)
    params = init_params(pkey, EMBEDDING_DIM, HIDDEN_DIM, VOCAB_SIZE)
    sentence = jax.random.randint(skey, (SEQ_LEN,), 0, VOCAB_SIZE, jnp.int32)

    out = jax.block_until_ready(fwd(sentence, params))
    ref = decoder_reference(sentence, params)
    assert out.shape == (SEQ_LEN, VOCAB_SIZE)
    # wfc is quantized to bf16 in the kernel, so use a bf16-appropriate tolerance.
    assert jnp.allclose(out, ref, atol=1e-2, rtol=1e-2), (
        f"max abs err {jnp.max(jnp.abs(out - ref))}")

    # --- config 2: exercises the multi-tile streamed fc/log_softmax path
    #     (several vocab tiles, T not a multiple of 8, odd E/H/V) ---
    E2, H2, V2, T2 = 20, 24, 600, 12
    params2 = init_params(jax.random.PRNGKey(1), E2, H2, V2)
    sentence2 = jax.random.randint(jax.random.PRNGKey(2), (T2,), 0, V2, jnp.int32)
    out2 = jax.block_until_ready(fwd(sentence2, params2, vocab_tile=256))
    ref2 = decoder_reference(sentence2, params2)
    assert out2.shape == (T2, V2)
    assert jnp.allclose(out2, ref2, atol=1e-2, rtol=1e-2), (
        f"max abs err {jnp.max(jnp.abs(out2 - ref2))}")

    print("KERNEL_OK")
</pallas_src>

<mosaic_0001>
module attributes {stable_mosaic.version = 11 : i64} {
  func.func @normalize_kernel(%arg0: i32, %arg1: memref<8x1xf32, #tpu.memory_space<vmem>>, %arg2: memref<8x128xf32, #tpu.memory_space<vmem>>, %arg3: memref<8x128xf32, #tpu.memory_space<vmem>>) attributes {dimension_semantics = [#tpu.dimension_semantics<parallel>], iteration_bounds = array<i64: 1>, scalar_prefetch = 0 : i64, scratch_operands = 0 : i64, tpu.core_type = #tpu.core_type<tc>, window_params = [{pipeline_mode = #tpu.pipeline_mode<synchronous>, transform_indices = @transform_0, window_bounds = array<i64: 8, 1>}, {transform_indices = @transform_1, window_bounds = array<i64: 8, 128>}, {transform_indices = @transform_2, window_bounds = array<i64: 8, 128>}]} {
    %c0 = arith.constant 0 : index
    %c0_0 = arith.constant 0 : index
    %0 = vector.load %arg2[%c0, %c0_0] : memref<8x128xf32, #tpu.memory_space<vmem>>, vector<8x128xf32>
    %c0_1 = arith.constant 0 : index
    %c0_2 = arith.constant 0 : index
    %1 = vector.load %arg1[%c0_1, %c0_2] : memref<8x1xf32, #tpu.memory_space<vmem>>, vector<8x1xf32>
    %2 = vector.broadcast %1 : vector<8x1xf32> to vector<8x128xf32>
    %3 = arith.subf %0, %2 : vector<8x128xf32>
    %c0_3 = arith.constant 0 : index
    %c0_4 = arith.constant 0 : index
    %4 = vector.load %arg3[%c0_3, %c0_4] : memref<8x128xf32, #tpu.memory_space<vmem>>, vector<8x128xf32>
    tpu.vector_store %arg3[%c0_3, %c0_4], %3 {strides = array<i32>} : memref<8x128xf32, #tpu.memory_space<vmem>>, vector<8x128xf32>,
    return
  }
  func.func @transform_0(%arg0: i32) -> (i32, i32) {
    %c0_i32 = arith.constant 0 : i32
    %c0_i32_0 = arith.constant 0 : i32
    %c0_i32_1 = arith.constant 0 : i32
    return %c0_i32, %c0_i32_0 : i32, i32
  }
  func.func @transform_1(%arg0: i32) -> (i32, i32) {
    %c0_i32 = arith.constant 0 : i32
    %c0_i32_0 = arith.constant 0 : i32
    return %c0_i32, %arg0 : i32, i32
  }
  func.func @transform_2(%arg0: i32) -> (i32, i32) {
    %c0_i32 = arith.constant 0 : i32
    %c0_i32_0 = arith.constant 0 : i32
    return %c0_i32, %arg0 : i32, i32
  }
}

module attributes {stable_mosaic.version = 11 : i64} {
  func.func @lstm_fc_stats_kernel(%arg0: i32, %arg1: memref<8x128xf32, #tpu.memory_space<vmem>>, %arg2: memref<128x512xf32, #tpu.memory_space<vmem>>, %arg3: memref<128x512xf32, #tpu.memory_space<vmem>>, %arg4: memref<1x512xf32, #tpu.memory_space<vmem>>, %arg5: memref<128x128xbf16, #tpu.memory_space<vmem>>, %arg6: memref<1x128xf32, #tpu.memory_space<vmem>>, %arg7: memref<8x128xf32, #tpu.memory_space<vmem>>, %arg8: memref<8x1xf32, #tpu.memory_space<vmem>>, %arg9: memref<8x512xf32, #tpu.memory_space<vmem>>, %arg10: memref<8x128xbf16, #tpu.memory_space<vmem>>, %arg11: memref<8x1xf32, #tpu.memory_space<vmem>>, %arg12: memref<8x1xf32, #tpu.memory_space<vmem>>) attributes {dimension_semantics = [#tpu.dimension_semantics<arbitrary>], iteration_bounds = array<i64: 1>, scalar_prefetch = 0 : i64, scratch_operands = 4 : i64, tpu.core_type = #tpu.core_type<tc>, window_params = [{pipeline_mode = #tpu.pipeline_mode<synchronous>, transform_indices = @transform_0, window_bounds = array<i64: 8, 128>}, {pipeline_mode = #tpu.pipeline_mode<synchronous>, transform_indices = @transform_1, window_bounds = array<i64: 128, 512>}, {pipeline_mode = #tpu.pipeline_mode<synchronous>, transform_indices = @transform_2, window_bounds = array<i64: 128, 512>}, {pipeline_mode = #tpu.pipeline_mode<synchronous>, transform_indices = @transform_3, window_bounds = array<i64: 1, 512>}, {transform_indices = @transform_4, window_bounds = array<i64: 128, 128>}, {transform_indices = @transform_5, window_bounds = array<i64: 1, 128>}, {transform_indices = @transform_6, window_bounds = array<i64: 8, 128>}, {pipeline_mode = #tpu.pipeline_mode<synchronous>, transform_indices = @transform_7, window_bounds = array<i64: 8, 1>}]} {
    %c0_i32 = arith.constant 0 : i32
    %0 = arith.cmpi eq, %arg0, %c0_i32 : i32
    %1 = arith.extui %0 : i1 to i32
    %c0_i32_0 = arith.constant 0 : i32
    %2 = arith.cmpi ne, %1, %c0_i32_0 : i32
    scf.if %2 {
      %c0_20 = arith.constant 0 : index
      %c0_21 = arith.constant 0 : index
      %29 = vector.load %arg1[%c0_20, %c0_21] : memref<8x128xf32, #tpu.memory_space<vmem>>, vector<8x128xf32>
      %c0_22 = arith.constant 0 : index
      %c0_23 = arith.constant 0 : index
      %30 = vector.load %arg2[%c0_22, %c0_23] : memref<128x512xf32, #tpu.memory_space<vmem>>, vector<128x512xf32>
      %cst_24 = arith.constant dense<0.000000e+00> : vector<8x512xf32>
      %31 = tpu.matmul %29, %30, %cst_24 {dimension_numbers = #tpu.dot_dimension_numbers<[1], [0], [0], [1], [0, 0, 1, 1], [], []>} : vector<8x128xf32>, vector<128x512xf32>, vector<8x512xf32> -> vector<8x512xf32>
      %c0_25 = arith.constant 0 : index
      %c0_26 = arith.constant 0 : index
      %32 = vector.load %arg4[%c0_25, %c0_26] : memref<1x512xf32, #tpu.memory_space<vmem>>, vector<1x512xf32>
      %33 = vector.broadcast %32 : vector<1x512xf32> to vector<8x512xf32>
      %34 = arith.addf %31, %33 : vector<8x512xf32>
      %c0_27 = arith.constant 0 : index
      %c0_28 = arith.constant 0 : index
      %35 = vector.load %arg9[%c0_27, %c0_28] : memref<8x512xf32, #tpu.memory_space<vmem>>, vector<8x512xf32>
      tpu.vector_store %arg9[%c0_27, %c0_28], %34 {strides = array<i32>} : memref<8x512xf32, #tpu.memory_space<vmem>>, vector<8x512xf32>,
      %cst_29 = arith.constant 0.000000e+00 : f32
      %36 = vector.broadcast %cst_29 : f32 to vector<1x128xf32>
      %cst_30 = arith.constant 0.000000e+00 : f32
      %37 = vector.broadcast %cst_30 : f32 to vector<1x128xf32>
      %c0_i32_31 = arith.constant 0 : i32
      %38 = arith.index_cast %c0_i32_31 : i32 to index
      %c0_32 = arith.constant 0 : index
      %39 = vector.load %arg9[%38, %c0_32] : memref<8x512xf32, #tpu.memory_space<vmem>>, vector<1x512xf32>
      %c0_33 = arith.constant 0 : index
      %c0_34 = arith.constant 0 : index
      %40 = vector.load %arg3[%c0_33, %c0_34] : memref<128x512xf32, #tpu.memory_space<vmem>>, vector<128x512xf32>
      %cst_35 = arith.constant dense<0.000000e+00> : vector<1x512xf32>
      %41 = tpu.matmul %36, %40, %cst_35 {dimension_numbers = #tpu.dot_dimension_numbers<[1], [0], [0], [1], [0, 0, 1, 1], [], []>} : vector<1x128xf32>, vector<128x512xf32>, vector<1x512xf32> -> vector<1x512xf32>
      %42 = arith.addf %39, %41 : vector<1x512xf32>
      %43 = vector.extract_strided_slice %42 {offsets = [0, 0], sizes = [1, 128], strides = [1, 1]} : vector<1x512xf32> to vector<1x128xf32>
      %44 = arith.negf %43 : vector<1x128xf32>
      %45 = math.exp %44 : vector<1x128xf32>
      %cst_36 = arith.constant 1.000000e+00 : f32
      %46 = vector.broadcast %cst_36 : f32 to vector<1x128xf32>
      %47 = arith.addf %46, %45 : vector<1x128xf32>
      %48 = arith.divf %46, %47 : vector<1x128xf32>
      %49 = vector.extract_strided_slice %42 {offsets = [0, 128], sizes = [1, 128], strides = [1, 1]} : vector<1x512xf32> to vector<1x128xf32>
      %50 = arith.negf %49 : vector<1x128xf32>
      %51 = math.exp %50 : vector<1x128xf32>
      %cst_37 = arith.constant 1.000000e+00 : f32
      %52 = vector.broadcast %cst_37 : f32 to vector<1x128xf32>
      %53 = arith.addf %52, %51 : vector<1x128xf32>
      %54 = arith.divf %52, %53 : vector<1x128xf32>
      %55 = vector.extract_strided_slice %42 {offsets = [0, 256], sizes = [1, 128], strides = [1, 1]} : vector<1x512xf32> to vector<1x128xf32>
      %56 = math.tanh %55 : vector<1x128xf32>
      %57 = vector.extract_strided_slice %42 {offsets = [0, 384], sizes = [1, 128], strides = [1, 1]} : vector<1x512xf32> to vector<1x128xf32>
      %58 = arith.negf %57 : vector<1x128xf32>
      %59 = math.exp %58 : vector<1x128xf32>
      %cst_38 = arith.constant 1.000000e+00 : f32
      %60 = vector.broadcast %cst_38 : f32 to vector<1x128xf32>
      %61 = arith.addf %60, %59 : vector<1x128xf32>
      %62 = arith.divf %60, %61 : vector<1x128xf32>
      %63 = arith.mulf %54, %37 : vector<1x128xf32>
      %64 = arith.mulf %48, %56 : vector<1x128xf32>
      %65 = arith.addf %63, %64 : vector<1x128xf32>
      %66 = math.tanh %65 : vector<1x128xf32>
      %67 = arith.mulf %62, %66 : vector<1x128xf32>
      %68 = arith.truncf %67 : vector<1x128xf32> to vector<1x128xbf16>
      %69 = arith.index_cast %c0_i32_31 : i32 to index
      %c0_39 = arith.constant 0 : index
      %70 = vector.load %arg10[%69, %c0_39] : memref<8x128xbf16, #tpu.memory_space<vmem>>, vector<1x128xbf16>
      tpu.vector_store %arg10[%69, %c0_39], %68 {strides = array<i32>} : memref<8x128xbf16, #tpu.memory_space<vmem>>, vector<1x128xbf16>,
      %c1_i32 = arith.constant 1 : i32
      %71 = arith.index_cast %c1_i32 : i32 to index
      %c0_40 = arith.constant 0 : index
      %72 = vector.load %arg9[%71, %c0_40] : memref<8x512xf32, #tpu.memory_space<vmem>>, vector<1x512xf32>
      %c0_41 = arith.constant 0 : index
      %c0_42 = arith.constant 0 : index
      %73 = vector.load %arg3[%c0_41, %c0_42] : memref<128x512xf32, #tpu.memory_space<vmem>>, vector<128x512xf32>
      %cst_43 = arith.constant dense<0.000000e+00> : vector<1x512xf32>
      %74 = tpu.matmul %67, %73, %cst_43 {dimension_numbers = #tpu.dot_dimension_numbers<[1], [0], [0], [1], [0, 0, 1, 1], [], []>} : vector<1x128xf32>, vector<128x512xf32>, vector<1x512xf32> -> vector<1x512xf32>
      %75 = arith.addf %72, %74 : vector<1x512xf32>
      %76 = vector.extract_strided_slice %75 {offsets = [0, 0], sizes = [1, 128], strides = [1, 1]} : vector<1x512xf32> to vector<1x128xf32>
      %77 = arith.negf %76 : vector<1x128xf32>
      %78 = math.exp %77 : vector<1x128xf32>
      %cst_44 = arith.constant 1.000000e+00 : f32
      %79 = vector.broadcast %cst_44 : f32 to vector<1x128xf32>
      %80 = arith.addf %79, %78 : vector<1x128xf32>
      %81 = arith.divf %79, %80 : vector<1x128xf32>
      %82 = vector.extract_strided_slice %75 {offsets = [0, 128], sizes = [1, 128], strides = [1, 1]} : vector<1x512xf32> to vector<1x128xf32>
      %83 = arith.negf %82 : vector<1x128xf32>
      %84 = math.exp %83 : vector<1x128xf32>
      %cst_45 = arith.constant 1.000000e+00 : f32
      %85 = vector.broadcast %cst_45 : f32 to vector<1x128xf32>
      %86 = arith.addf %85, %84 : vector<1x128xf32>
      %87 = arith.divf %85, %86 : vector<1x128xf32>
      %88 = vector.extract_strided_slice %75 {offsets = [0, 256], sizes = [1, 128], strides = [1, 1]} : vector<1x512xf32> to vector<1x128xf32>
      %89 = math.tanh %88 : vector<1x128xf32>
      %90 = vector.extract_strided_slice %75 {offsets = [0, 384], sizes = [1, 128], strides = [1, 1]} : vector<1x512xf32> to vector<1x128xf32>
      %91 = arith.negf %90 : vector<1x128xf32>
      %92 = math.exp %91 : vector<1x128xf32>
      %cst_46 = arith.constant 1.000000e+00 : f32
      %93 = vector.broadcast %cst_46 : f32 to vector<1x128xf32>
      %94 = arith.addf %93, %92 : vector<1x128xf32>
      %95 = arith.divf %93, %94 : vector<1x128xf32>
      %96 = arith.mulf %87, %65 : vector<1x128xf32>
      %97 = arith.mulf %81, %89 : vector<1x128xf32>
      %98 = arith.addf %96, %97 : vector<1x128xf32>
      %99 = math.tanh %98 : vector<1x128xf32>
      %100 = arith.mulf %95, %99 : vector<1x128xf32>
      %101 = arith.truncf %100 : vector<1x128xf32> to vector<1x128xbf16>
      %102 = arith.index_cast %c1_i32 : i32 to index
      %c0_47 = arith.constant 0 : index
      %103 = vector.load %arg10[%102, %c0_47] : memref<8x128xbf16, #tpu.memory_space<vmem>>, vector<1x128xbf16>
      tpu.vector_store %arg10[%102, %c0_47], %101 {strides = array<i32>} : memref<8x128xbf16, #tpu.memory_space<vmem>>, vector<1x128xbf16>,
      %c2_i32 = arith.constant 2 : i32
      %104 = arith.index_cast %c2_i32 : i32 to index
      %c0_48 = arith.constant 0 : index
      %105 = vector.load %arg9[%104, %c0_48] : memref<8x512xf32, #tpu.memory_space<vmem>>, vector<1x512xf32>
      %c0_49 = arith.constant 0 : index
      %c0_50 = arith.constant 0 : index
      %106 = vector.load %arg3[%c0_49, %c0_50] : memref<128x512xf32, #tpu.memory_space<vmem>>, vector<128x512xf32>
      %cst_51 = arith.constant dense<0.000000e+00> : vector<1x512xf32>
      %107 = tpu.matmul %100, %106, %cst_51 {dimension_numbers = #tpu.dot_dimension_numbers<[1], [0], [0], [1], [0, 0, 1, 1], [], []>} : vector<1x128xf32>, vector<128x512xf32>, vector<1x512xf32> -> vector<1x512xf32>
      %108 = arith.addf %105, %107 : vector<1x512xf32>
      %109 = vector.extract_strided_slice %108 {offsets = [0, 0], sizes = [1, 128], strides = [1, 1]} : vector<1x512xf32> to vector<1x128xf32>
      %110 = arith.negf %109 : vector<1x128xf32>
      %111 = math.exp %110 : vector<1x128xf32>
      %cst_52 = arith.constant 1.000000e+00 : f32
      %112 = vector.broadcast %cst_52 : f32 to vector<1x128xf32>
      %113 = arith.addf %112, %111 : vector<1x128xf32>
      %114 = arith.divf %112, %113 : vector<1x128xf32>
      %115 = vector.extract_strided_slice %108 {offsets = [0, 128], sizes = [1, 128], strides = [1, 1]} : vector<1x512xf32> to vector<1x128xf32>
      %116 = arith.negf %115 : vector<1x128xf32>
      %117 = math.exp %116 : vector<1x128xf32>
      %cst_53 = arith.constant 1.000000e+00 : f32
      %118 = vector.broadcast %cst_53 : f32 to vector<1x128xf32>
      %119 = arith.addf %118, %117 : vector<1x128xf32>
      %120 = arith.divf %118, %119 : vector<1x128xf32>
      %121 = vector.extract_strided_slice %108 {offsets = [0, 256], sizes = [1, 128], strides = [1, 1]} : vector<1x512xf32> to vector<1x128xf32>
      %122 = math.tanh %121 : vector<1x128xf32>
      %123 = vector.extract_strided_slice %108 {offsets = [0, 384], sizes = [1, 128], strides = [1, 1]} : vector<1x512xf32> to vector<1x128xf32>
      %124 = arith.negf %123 : vector<1x128xf32>
      %125 = math.exp %124 : vector<1x128xf32>
      %cst_54 = arith.constant 1.000000e+00 : f32
      %126 = vector.broadcast %cst_54 : f32 to vector<1x128xf32>
      %127 = arith.addf %126, %125 : vector<1x128xf32>
      %128 = arith.divf %126, %127 : vector<1x128xf32>
      %129 = arith.mulf %120, %98 : vector<1x128xf32>
      %130 = arith.mulf %114, %122 : vector<1x128xf32>
      %131 = arith.addf %129, %130 : vector<1x128xf32>
      %132 = math.tanh %131 : vector<1x128xf32>
      %133 = arith.mulf %128, %132 : vector<1x128xf32>
      %134 = arith.truncf %133 : vector<1x128xf32> to vector<1x128xbf16>
      %135 = arith.index_cast %c2_i32 : i32 to index
      %c0_55 = arith.constant 0 : index
      %136 = vector.load %arg10[%135, %c0_55] : memref<8x128xbf16, #tpu.memory_space<vmem>>, vector<1x128xbf16>
      tpu.vector_store %arg10[%135, %c0_55], %134 {strides = array<i32>} : memref<8x128xbf16, #tpu.memory_space<vmem>>, vector<1x128xbf16>,
      %c3_i32 = arith.constant 3 : i32
      %137 = arith.index_cast %c3_i32 : i32 to index
      %c0_56 = arith.constant 0 : index
      %138 = vector.load %arg9[%137, %c0_56] : memref<8x512xf32, #tpu.memory_space<vmem>>, vector<1x512xf32>
      %c0_57 = arith.constant 0 : index
      %c0_58 = arith.constant 0 : index
      %139 = vector.load %arg3[%c0_57, %c0_58] : memref<128x512xf32, #tpu.memory_space<vmem>>, vector<128x512xf32>
      %cst_59 = arith.constant dense<0.000000e+00> : vector<1x512xf32>
      %140 = tpu.matmul %133, %139, %cst_59 {dimension_numbers = #tpu.dot_dimension_numbers<[1], [0], [0], [1], [0, 0, 1, 1], [], []>} : vector<1x128xf32>, vector<128x512xf32>, vector<1x512xf32> -> vector<1x512xf32>
      %141 = arith.addf %138, %140 : vector<1x512xf32>
      %142 = vector.extract_strided_slice %141 {offsets = [0, 0], sizes = [1, 128], strides = [1, 1]} : vector<1x512xf32> to vector<1x128xf32>
      %143 = arith.negf %142 : vector<1x128xf32>
      %144 = math.exp %143 : vector<1x128xf32>
      %cst_60 = arith.constant 1.000000e+00 : f32
      %145 = vector.broadcast %cst_60 : f32 to vector<1x128xf32>
      %146 = arith.addf %145, %144 : vector<1x128xf32>
      %147 = arith.divf %145, %146 : vector<1x128xf32>
      %148 = vector.extract_strided_slice %141 {offsets = [0, 128], sizes = [1, 128], strides = [1, 1]} : vector<1x512xf32> to vector<1x128xf32>
      %149 = arith.negf %148 : vector<1x128xf32>
      %150 = math.exp %149 : vector<1x128xf32>
      %cst_61 = arith.constant 1.000000e+00 : f32
      %151 = vector.broadcast %cst_61 : f32 to vector<1x128xf32>
      %152 = arith.addf %151, %150 : vector<1x128xf32>
      %153 = arith.divf %151, %152 : vector<1x128xf32>
      %154 = vector.extract_strided_slice %141 {offsets = [0, 256], sizes = [1, 128], strides = [1, 1]} : vector<1x512xf32> to vector<1x128xf32>
      %155 = math.tanh %154 : vector<1x128xf32>
      %156 = vector.extract_strided_slice %141 {offsets = [0, 384], sizes = [1, 128], strides = [1, 1]} : vector<1x512xf32> to vector<1x128xf32>
      %157 = arith.negf %156 : vector<1x128xf32>
      %158 = math.exp %157 : vector<1x128xf32>
      %cst_62 = arith.constant 1.000000e+00 : f32
      %159 = vector.broadcast %cst_62 : f32 to vector<1x128xf32>
      %160 = arith.addf %159, %158 : vector<1x128xf32>
      %161 = arith.divf %159, %160 : vector<1x128xf32>
      %162 = arith.mulf %153, %131 : vector<1x128xf32>
      %163 = arith.mulf %147, %155 : vector<1x128xf32>
      %164 = arith.addf %162, %163 : vector<1x128xf32>
      %165 = math.tanh %164 : vector<1x128xf32>
      %166 = arith.mulf %161, %165 : vector<1x128xf32>
      %167 = arith.truncf %166 : vector<1x128xf32> to vector<1x128xbf16>
      %168 = arith.index_cast %c3_i32 : i32 to index
      %c0_63 = arith.constant 0 : index
      %169 = vector.load %arg10[%168, %c0_63] : memref<8x128xbf16, #tpu.memory_space<vmem>>, vector<1x128xbf16>
      tpu.vector_store %arg10[%168, %c0_63], %167 {strides = array<i32>} : memref<8x128xbf16, #tpu.memory_space<vmem>>, vector<1x128xbf16>,
      %c4_i32 = arith.constant 4 : i32
      %170 = arith.index_cast %c4_i32 : i32 to index
      %c0_64 = arith.constant 0 : index
      %171 = vector.load %arg9[%170, %c0_64] : memref<8x512xf32, #tpu.memory_space<vmem>>, vector<1x512xf32>
      %c0_65 = arith.constant 0 : index
      %c0_66 = arith.constant 0 : index
      %172 = vector.load %arg3[%c0_65, %c0_66] : memref<128x512xf32, #tpu.memory_space<vmem>>, vector<128x512xf32>
      %cst_67 = arith.constant dense<0.000000e+00> : vector<1x512xf32>
      %173 = tpu.matmul %166, %172, %cst_67 {dimension_numbers = #tpu.dot_dimension_numbers<[1], [0], [0], [1], [0, 0, 1, 1], [], []>} : vector<1x128xf32>, vector<128x512xf32>, vector<1x512xf32> -> vector<1x512xf32>
      %174 = arith.addf %171, %173 : vector<1x512xf32>
      %175 = vector.extract_strided_slice %174 {offsets = [0, 0], sizes = [1, 128], strides = [1, 1]} : vector<1x512xf32> to vector<1x128xf32>
      %176 = arith.negf %175 : vector<1x128xf32>
      %177 = math.exp %176 : vector<1x128xf32>
      %cst_68 = arith.constant 1.000000e+00 : f32
      %178 = vector.broadcast %cst_68 : f32 to vector<1x128xf32>
      %179 = arith.addf %178, %177 : vector<1x128xf32>
      %180 = arith.divf %178, %179 : vector<1x128xf32>
      %181 = vector.extract_strided_slice %174 {offsets = [0, 128], sizes = [1, 128], strides = [1, 1]} : vector<1x512xf32> to vector<1x128xf32>
      %182 = arith.negf %181 : vector<1x128xf32>
      %183 = math.exp %182 : vector<1x128xf32>
      %cst_69 = arith.constant 1.000000e+00 : f32
      %184 = vector.broadcast %cst_69 : f32 to vector<1x128xf32>
      %185 = arith.addf %184, %183 : vector<1x128xf32>
      %186 = arith.divf %184, %185 : vector<1x128xf32>
      %187 = vector.extract_strided_slice %174 {offsets = [0, 256], sizes = [1, 128], strides = [1, 1]} : vector<1x512xf32> to vector<1x128xf32>
      %188 = math.tanh %187 : vector<1x128xf32>
      %189 = vector.extract_strided_slice %174 {offsets = [0, 384], sizes = [1, 128], strides = [1, 1]} : vector<1x512xf32> to vector<1x128xf32>
      %190 = arith.negf %189 : vector<1x128xf32>
      %191 = math.exp %190 : vector<1x128xf32>
      %cst_70 = arith.constant 1.000000e+00 : f32
      %192 = vector.broadcast %cst_70 : f32 to vector<1x128xf32>
      %193 = arith.addf %192, %191 : vector<1x128xf32>
      %194 = arith.divf %192, %193 : vector<1x128xf32>
      %195 = arith.mulf %186, %164 : vector<1x128xf32>
      %196 = arith.mulf %180, %188 : vector<1x128xf32>
      %197 = arith.addf %195, %196 : vector<1x128xf32>
      %198 = math.tanh %197 : vector<1x128xf32>
      %199 = arith.mulf %194, %198 : vector<1x128xf32>
      %200 = arith.truncf %199 : vector<1x128xf32> to vector<1x128xbf16>
      %201 = arith.index_cast %c4_i32 : i32 to index
      %c0_71 = arith.constant 0 : index
      %202 = vector.load %arg10[%201, %c0_71] : memref<8x128xbf16, #tpu.memory_space<vmem>>, vector<1x128xbf16>
      tpu.vector_store %arg10[%201, %c0_71], %200 {strides = array<i32>} : memref<8x128xbf16, #tpu.memory_space<vmem>>, vector<1x128xbf16>,
      %c5_i32 = arith.constant 5 : i32
      %203 = arith.index_cast %c5_i32 : i32 to index
      %c0_72 = arith.constant 0 : index
      %204 = vector.load %arg9[%203, %c0_72] : memref<8x512xf32, #tpu.memory_space<vmem>>, vector<1x512xf32>
      %c0_73 = arith.constant 0 : index
      %c0_74 = arith.constant 0 : index
      %205 = vector.load %arg3[%c0_73, %c0_74] : memref<128x512xf32, #tpu.memory_space<vmem>>, vector<128x512xf32>
      %cst_75 = arith.constant dense<0.000000e+00> : vector<1x512xf32>
      %206 = tpu.matmul %199, %205, %cst_75 {dimension_numbers = #tpu.dot_dimension_numbers<[1], [0], [0], [1], [0, 0, 1, 1], [], []>} : vector<1x128xf32>, vector<128x512xf32>, vector<1x512xf32> -> vector<1x512xf32>
      %207 = arith.addf %204, %206 : vector<1x512xf32>
      %208 = vector.extract_strided_slice %207 {offsets = [0, 0], sizes = [1, 128], strides = [1, 1]} : vector<1x512xf32> to vector<1x128xf32>
      %209 = arith.negf %208 : vector<1x128xf32>
      %210 = math.exp %209 : vector<1x128xf32>
      %cst_76 = arith.constant 1.000000e+00 : f32
      %211 = vector.broadcast %cst_76 : f32 to vector<1x128xf32>
      %212 = arith.addf %211, %210 : vector<1x128xf32>
      %213 = arith.divf %211, %212 : vector<1x128xf32>
      %214 = vector.extract_strided_slice %207 {offsets = [0, 128], sizes = [1, 128], strides = [1, 1]} : vector<1x512xf32> to vector<1x128xf32>
      %215 = arith.negf %214 : vector<1x128xf32>
      %216 = math.exp %215 : vector<1x128xf32>
      %cst_77 = arith.constant 1.000000e+00 : f32
      %217 = vector.broadcast %cst_77 : f32 to vector<1x128xf32>
      %218 = arith.addf %217, %216 : vector<1x128xf32>
      %219 = arith.divf %217, %218 : vector<1x128xf32>
      %220 = vector.extract_strided_slice %207 {offsets = [0, 256], sizes = [1, 128], strides = [1, 1]} : vector<1x512xf32> to vector<1x128xf32>
      %221 = math.tanh %220 : vector<1x128xf32>
      %222 = vector.extract_strided_slice %207 {offsets = [0, 384], sizes = [1, 128], strides = [1, 1]} : vector<1x512xf32> to vector<1x128xf32>
      %223 = arith.negf %222 : vector<1x128xf32>
      %224 = math.exp %223 : vector<1x128xf32>
      %cst_78 = arith.constant 1.000000e+00 : f32
      %225 = vector.broadcast %cst_78 : f32 to vector<1x128xf32>
      %226 = arith.addf %225, %224 : vector<1x128xf32>
      %227 = arith.divf %225, %226 : vector<1x128xf32>
      %228 = arith.mulf %219, %197 : vector<1x128xf32>
      %229 = arith.mulf %213, %221 : vector<1x128xf32>
      %230 = arith.addf %228, %229 : vector<1x128xf32>
      %231 = math.tanh %230 : vector<1x128xf32>
      %232 = arith.mulf %227, %231 : vector<1x128xf32>
      %233 = arith.truncf %232 : vector<1x128xf32> to vector<1x128xbf16>
      %234 = arith.index_cast %c5_i32 : i32 to index
      %c0_79 = arith.constant 0 : index
      %235 = vector.load %arg10[%234, %c0_79] : memref<8x128xbf16, #tpu.memory_space<vmem>>, vector<1x128xbf16>
      tpu.vector_store %arg10[%234, %c0_79], %233 {strides = array<i32>} : memref<8x128xbf16, #tpu.memory_space<vmem>>, vector<1x128xbf16>,
      %c6_i32 = arith.constant 6 : i32
      %236 = arith.index_cast %c6_i32 : i32 to index
      %c0_80 = arith.constant 0 : index
      %237 = vector.load %arg9[%236, %c0_80] : memref<8x512xf32, #tpu.memory_space<vmem>>, vector<1x512xf32>
      %c0_81 = arith.constant 0 : index
      %c0_82 = arith.constant 0 : index
      %238 = vector.load %arg3[%c0_81, %c0_82] : memref<128x512xf32, #tpu.memory_space<vmem>>, vector<128x512xf32>
      %cst_83 = arith.constant dense<0.000000e+00> : vector<1x512xf32>
      %239 = tpu.matmul %232, %238, %cst_83 {dimension_numbers = #tpu.dot_dimension_numbers<[1], [0], [0], [1], [0, 0, 1, 1], [], []>} : vector<1x128xf32>, vector<128x512xf32>, vector<1x512xf32> -> vector<1x512xf32>
      %240 = arith.addf %237, %239 : vector<1x512xf32>
      %241 = vector.extract_strided_slice %240 {offsets = [0, 0], sizes = [1, 128], strides = [1, 1]} : vector<1x512xf32> to vector<1x128xf32>
      %242 = arith.negf %241 : vector<1x128xf32>
      %243 = math.exp %242 : vector<1x128xf32>
      %cst_84 = arith.constant 1.000000e+00 : f32
      %244 = vector.broadcast %cst_84 : f32 to vector<1x128xf32>
      %245 = arith.addf %244, %243 : vector<1x128xf32>
      %246 = arith.divf %244, %245 : vector<1x128xf32>
      %247 = vector.extract_strided_slice %240 {offsets = [0, 128], sizes = [1, 128], strides = [1, 1]} : vector<1x512xf32> to vector<1x128xf32>
      %248 = arith.negf %247 : vector<1x128xf32>
      %249 = math.exp %248 : vector<1x128xf32>
      %cst_85 = arith.constant 1.000000e+00 : f32
      %250 = vector.broadcast %cst_85 : f32 to vector<1x128xf32>
      %251 = arith.addf %250, %249 : vector<1x128xf32>
      %252 = arith.divf %250, %251 : vector<1x128xf32>
      %253 = vector.extract_strided_slice %240 {offsets = [0, 256], sizes = [1, 128], strides = [1, 1]} : vector<1x512xf32> to vector<1x128xf32>
      %254 = math.tanh %253 : vector<1x128xf32>
      %255 = vector.extract_strided_slice %240 {offsets = [0, 384], sizes = [1, 128], strides = [1, 1]} : vector<1x512xf32> to vector<1x128xf32>
      %256 = arith.negf %255 : vector<1x128xf32>
      %257 = math.exp %256 : vector<1x128xf32>
      %cst_86 = arith.constant 1.000000e+00 : f32
      %258 = vector.broadcast %cst_86 : f32 to vector<1x128xf32>
      %259 = arith.addf %258, %257 : vector<1x128xf32>
      %260 = arith.divf %258, %259 : vector<1x128xf32>
      %261 = arith.mulf %252, %230 : vector<1x128xf32>
      %262 = arith.mulf %246, %254 : vector<1x128xf32>
      %263 = arith.addf %261, %262 : vector<1x128xf32>
      %264 = math.tanh %263 : vector<1x128xf32>
      %265 = arith.mulf %260, %264 : vector<1x128xf32>
      %266 = arith.truncf %265 : vector<1x128xf32> to vector<1x128xbf16>
      %267 = arith.index_cast %c6_i32 : i32 to index
      %c0_87 = arith.constant 0 : index
      %268 = vector.load %arg10[%267, %c0_87] : memref<8x128xbf16, #tpu.memory_space<vmem>>, vector<1x128xbf16>
      tpu.vector_store %arg10[%267, %c0_87], %266 {strides = array<i32>} : memref<8x128xbf16, #tpu.memory_space<vmem>>, vector<1x128xbf16>,
      %c7_i32 = arith.constant 7 : i32
      %269 = arith.index_cast %c7_i32 : i32 to index
      %c0_88 = arith.constant 0 : index
      %270 = vector.load %arg9[%269, %c0_88] : memref<8x512xf32, #tpu.memory_space<vmem>>, vector<1x512xf32>
      %c0_89 = arith.constant 0 : index
      %c0_90 = arith.constant 0 : index
      %271 = vector.load %arg3[%c0_89, %c0_90] : memref<128x512xf32, #tpu.memory_space<vmem>>, vector<128x512xf32>
      %cst_91 = arith.constant dense<0.000000e+00> : vector<1x512xf32>
      %272 = tpu.matmul %265, %271, %cst_91 {dimension_numbers = #tpu.dot_dimension_numbers<[1], [0], [0], [1], [0, 0, 1, 1], [], []>} : vector<1x128xf32>, vector<128x512xf32>, vector<1x512xf32> -> vector<1x512xf32>
      %273 = arith.addf %270, %272 : vector<1x512xf32>
      %274 = vector.extract_strided_slice %273 {offsets = [0, 0], sizes = [1, 128], strides = [1, 1]} : vector<1x512xf32> to vector<1x128xf32>
      %275 = arith.negf %274 : vector<1x128xf32>
      %276 = math.exp %275 : vector<1x128xf32>
      %cst_92 = arith.constant 1.000000e+00 : f32
      %277 = vector.broadcast %cst_92 : f32 to vector<1x128xf32>
      %278 = arith.addf %277, %276 : vector<1x128xf32>
      %279 = arith.divf %277, %278 : vector<1x128xf32>
      %280 = vector.extract_strided_slice %273 {offsets = [0, 128], sizes = [1, 128], strides = [1, 1]} : vector<1x512xf32> to vector<1x128xf32>
      %281 = arith.negf %280 : vector<1x128xf32>
      %282 = math.exp %281 : vector<1x128xf32>
      %cst_93 = arith.constant 1.000000e+00 : f32
      %283 = vector.broadcast %cst_93 : f32 to vector<1x128xf32>
      %284 = arith.addf %283, %282 : vector<1x128xf32>
      %285 = arith.divf %283, %284 : vector<1x128xf32>
      %286 = vector.extract_strided_slice %273 {offsets = [0, 256], sizes = [1, 128], strides = [1, 1]} : vector<1x512xf32> to vector<1x128xf32>
      %287 = math.tanh %286 : vector<1x128xf32>
      %288 = vector.extract_strided_slice %273 {offsets = [0, 384], sizes = [1, 128], strides = [1, 1]} : vector<1x512xf32> to vector<1x128xf32>
      %289 = arith.negf %288 : vector<1x128xf32>
      %290 = math.exp %289 : vector<1x128xf32>
      %cst_94 = arith.constant 1.000000e+00 : f32
      %291 = vector.broadcast %cst_94 : f32 to vector<1x128xf32>
      %292 = arith.addf %291, %290 : vector<1x128xf32>
      %293 = arith.divf %291, %292 : vector<1x128xf32>
      %294 = arith.mulf %285, %263 : vector<1x128xf32>
      %295 = arith.mulf %279, %287 : vector<1x128xf32>
      %296 = arith.addf %294, %295 : vector<1x128xf32>
      %297 = math.tanh %296 : vector<1x128xf32>
      %298 = arith.mulf %293, %297 : vector<1x128xf32>
      %299 = arith.truncf %298 : vector<1x128xf32> to vector<1x128xbf16>
      %300 = arith.index_cast %c7_i32 : i32 to index
      %c0_95 = arith.constant 0 : index
      %301 = vector.load %arg10[%300, %c0_95] : memref<8x128xbf16, #tpu.memory_space<vmem>>, vector<1x128xbf16>
      tpu.vector_store %arg10[%300, %c0_95], %299 {strides = array<i32>} : memref<8x128xbf16, #tpu.memory_space<vmem>>, vector<1x128xbf16>,
      %c8_i32 = arith.constant 8 : i32
      %cst_96 = arith.constant 0xFF800000 : f32
      %302 = vector.broadcast %cst_96 : f32 to vector<8x1xf32>
      %c0_97 = arith.constant 0 : index
      %c0_98 = arith.constant 0 : index
      %303 = vector.load %arg11[%c0_97, %c0_98] : memref<8x1xf32, #tpu.memory_space<vmem>>, vector<8x1xf32>
      tpu.vector_store %arg11[%c0_97, %c0_98], %302 {strides = array<i32>} : memref<8x1xf32, #tpu.memory_space<vmem>>, vector<8x1xf32>,
      %cst_99 = arith.constant 0.000000e+00 : f32
      %304 = vector.broadcast %cst_99 : f32 to vector<8x1xf32>
      %c0_100 = arith.constant 0 : index
      %c0_101 = arith.constant 0 : index
      %305 = vector.load %arg12[%c0_100, %c0_101] : memref<8x1xf32, #tpu.memory_space<vmem>>, vector<8x1xf32>
      tpu.vector_store %arg12[%c0_100, %c0_101], %304 {strides = array<i32>} : memref<8x1xf32, #tpu.memory_space<vmem>>, vector<8x1xf32>,
    } else {
    }
    %c0 = arith.constant 0 : index
    %c0_1 = arith.constant 0 : index
    %3 = vector.load %arg10[%c0, %c0_1] : memref<8x128xbf16, #tpu.memory_space<vmem>>, vector<8x128xbf16>
    %c0_2 = arith.constant 0 : index
    %c0_3 = arith.constant 0 : index
    %4 = vector.load %arg5[%c0_2, %c0_3] : memref<128x128xbf16, #tpu.memory_space<vmem>>, vector<128x128xbf16>
    %cst = arith.constant dense<0.000000e+00> : vector<8x128xf32>
    %5 = tpu.matmul %3, %4, %cst {dimension_numbers = #tpu.dot_dimension_numbers<[1], [0], [0], [1], [0, 0, 1, 1], [], []>} : vector<8x128xbf16>, vector<128x128xbf16>, vector<8x128xf32> -> vector<8x128xf32>
    %c0_4 = arith.constant 0 : index
    %c0_5 = arith.constant 0 : index
    %6 = vector.load %arg6[%c0_4, %c0_5] : memref<1x128xf32, #tpu.memory_space<vmem>>, vector<1x128xf32>
    %7 = vector.broadcast %6 : vector<1x128xf32> to vector<8x128xf32>
    %8 = arith.addf %5, %7 : vector<8x128xf32>
    %c0_6 = arith.constant 0 : index
    %c0_7 = arith.constant 0 : index
    %9 = vector.load %arg7[%c0_6, %c0_7] : memref<8x128xf32, #tpu.memory_space<vmem>>, vector<8x128xf32>
    tpu.vector_store %arg7[%c0_6, %c0_7], %8 {strides = array<i32>} : memref<8x128xf32, #tpu.memory_space<vmem>>, vector<8x128xf32>,
    %c0_8 = arith.constant 0 : index
    %c0_9 = arith.constant 0 : index
    %10 = vector.load %arg11[%c0_8, %c0_9] : memref<8x1xf32, #tpu.memory_space<vmem>>, vector<8x1xf32>
    %cst_10 = arith.constant dense<0xFF800000> : vector<8xf32>
    %11 = vector.multi_reduction <maximumf>, %8, %cst_10 [1] : vector<8x128xf32> to vector<8xf32>
    %12 = vector.shape_cast %11 : vector<8xf32> to vector<8x1xf32>
    %13 = arith.maximumf %10, %12 : vector<8x1xf32>
    %c0_11 = arith.constant 0 : index
    %c0_12 = arith.constant 0 : index
    %14 = vector.load %arg12[%c0_11, %c0_12] : memref<8x1xf32, #tpu.memory_space<vmem>>, vector<8x1xf32>
    %15 = arith.subf %10, %13 : vector<8x1xf32>
    %16 = math.exp %15 : vector<8x1xf32>
    %17 = arith.mulf %14, %16 : vector<8x1xf32>
    %18 = vector.broadcast %13 : vector<8x1xf32> to vector<8x128xf32>
    %19 = arith.subf %8, %18 : vector<8x128xf32>
    %20 = math.exp %19 : vector<8x128xf32>
    %cst_13 = arith.constant dense<0.000000e+00> : vector<8xf32>
    %21 = vector.multi_reduction <add>, %20, %cst_13 [1] : vector<8x128xf32> to vector<8xf32>
    %22 = vector.shape_cast %21 : vector<8xf32> to vector<8x1xf32>
    %23 = arith.addf %17, %22 : vector<8x1xf32>
    %c0_14 = arith.constant 0 : index
    %c0_15 = arith.constant 0 : index
    %24 = vector.load %arg12[%c0_14, %c0_15] : memref<8x1xf32, #tpu.memory_space<vmem>>, vector<8x1xf32>
    tpu.vector_store %arg12[%c0_14, %c0_15], %23 {strides = array<i32>} : memref<8x1xf32, #tpu.memory_space<vmem>>, vector<8x1xf32>,
    %c0_16 = arith.constant 0 : index
    %c0_17 = arith.constant 0 : index
    %25 = vector.load %arg11[%c0_16, %c0_17] : memref<8x1xf32, #tpu.memory_space<vmem>>, vector<8x1xf32>
    tpu.vector_store %arg11[%c0_16, %c0_17], %13 {strides = array<i32>} : memref<8x1xf32, #tpu.memory_space<vmem>>, vector<8x1xf32>,
    %c0_i32_18 = arith.constant 0 : i32
    %26 = arith.cmpi eq, %arg0, %c0_i32_18 : i32
    %27 = arith.extui %26 : i1 to i32
    %c0_i32_19 = arith.constant 0 : i32
    %28 = arith.cmpi ne, %27, %c0_i32_19 : i32
    scf.if %28 {
      %c0_20 = arith.constant 0 : index
      %c0_21 = arith.constant 0 : index
      %29 = vector.load %arg11[%c0_20, %c0_21] : memref<8x1xf32, #tpu.memory_space<vmem>>, vector<8x1xf32>
      %c0_22 = arith.constant 0 : index
      %c0_23 = arith.constant 0 : index
      %30 = vector.load %arg12[%c0_22, %c0_23] : memref<8x1xf32, #tpu.memory_space<vmem>>, vector<8x1xf32>
      %31 = math.log %30 : vector<8x1xf32>
      %32 = arith.addf %29, %31 : vector<8x1xf32>
      %c0_24 = arith.constant 0 : index
      %c0_25 = arith.constant 0 : index
      %33 = vector.load %arg8[%c0_24, %c0_25] : memref<8x1xf32, #tpu.memory_space<vmem>>, vector<8x1xf32>
      tpu.vector_store %arg8[%c0_24, %c0_25], %32 {strides = array<i32>} : memref<8x1xf32, #tpu.memory_space<vmem>>, vector<8x1xf32>,
    } else {
    }
    return
  }
  func.func @transform_0(%arg0: i32) -> (i32, i32) {
    %c0_i32 = arith.constant 0 : i32
    %c0_i32_0 = arith.constant 0 : i32
    %c0_i32_1 = arith.constant 0 : i32
    return %c0_i32, %c0_i32_0 : i32, i32
  }
  func.func @transform_1(%arg0: i32) -> (i32, i32) {
    %c0_i32 = arith.constant 0 : i32
    %c0_i32_0 = arith.constant 0 : i32
    %c0_i32_1 = arith.constant 0 : i32
    return %c0_i32, %c0_i32_0 : i32, i32
  }
  func.func @transform_2(%arg0: i32) -> (i32, i32) {
    %c0_i32 = arith.constant 0 : i32
    %c0_i32_0 = arith.constant 0 : i32
    %c0_i32_1 = arith.constant 0 : i32
    return %c0_i32, %c0_i32_0 : i32, i32
  }
  func.func @transform_3(%arg0: i32) -> (i32, i32) {
    %c0_i32 = arith.constant 0 : i32
    %c0_i32_0 = arith.constant 0 : i32
    %c0_i32_1 = arith.constant 0 : i32
    return %c0_i32, %c0_i32_0 : i32, i32
  }
  func.func @transform_4(%arg0: i32) -> (i32, i32) {
    %c0_i32 = arith.constant 0 : i32
    %c0_i32_0 = arith.constant 0 : i32
    return %c0_i32, %arg0 : i32, i32
  }
  func.func @transform_5(%arg0: i32) -> (i32, i32) {
    %c0_i32 = arith.constant 0 : i32
    %c0_i32_0 = arith.constant 0 : i32
    return %c0_i32, %arg0 : i32, i32
  }
  func.func @transform_6(%arg0: i32) -> (i32, i32) {
    %c0_i32 = arith.constant 0 : i32
    %c0_i32_0 = arith.constant 0 : i32
    return %c0_i32, %arg0 : i32, i32
  }
  func.func @transform_7(%arg0: i32) -> (i32, i32) {
    %c0_i32 = arith.constant 0 : i32
    %c0_i32_0 = arith.constant 0 : i32
    %c0_i32_1 = arith.constant 0 : i32
    return %c0_i32, %c0_i32_0 : i32, i32
  }
}

</mosaic_0001>

<llo_original>
// kernel: decoder_forward.3
$region0: #{decoder_forward.3}
  #allocation0 [shape = 'u32[]', space=smem, size = 0x4, offset = 0x4, fixed_abs, tag = 'smem constant byte address 0x4 - core index']
  #allocation1 [shape = 'u32[144,128]{1,0:T(1,128)}', space=vmem, size = 0x12000, scoped, tag = 'internal scratch']
  %s0 = inlined_call_operand.vmem [shape: f32[8,1], index: 0, kind: input, shape index: {}]
  %s1 = inlined_call_operand.vmem [shape: f32[8,128], index: 1, kind: input, shape index: {}]
  %s2 = inlined_call_operand.hbm [shape: f32[8,128], index: 2, kind: output, shape index: {}]
  %s3 = sld [smem:[#allocation0]]
  $region18: #{decoder_forward.3} parent=0
    _
  %s5 = ssub.s32 1, %s3
  %s6 = scalar_select 0, %s5, %s3
  $region1: #{decoder_forward.3} parent=0
    #allocation2 [shape = 'u8[4096]{0}', space=vmem, size = 0x1000, scoped, tag = 'output window, operand 0, single buffered']
    #allocation3 [shape = 's32[1]{0}', space=sflag, size = 0x4, scoped, tag = 'scoped memory for decoder_forward.3']
    %7 = vsyncpa [#allocation3], 0
    // Predicated region
    $region2: #{decoder_forward.3} parent=1 // pred_check
      _
    $region3: #{decoder_forward.3} parent=1 // pred_check_branch
      %9 = sbr.rel (0) target = $region5
    $region4: #{decoder_forward.3} parent=1 // pred_region
      _
    $region5: #{decoder_forward.3} parent=1 // pred_fallthru
      _
    // Predicated region
    $region6: #{decoder_forward.3} parent=1 // pred_check
      _
    $region7: #{decoder_forward.3} parent=1 // pred_check_branch
      %11 = sbr.rel (0) target = $region9
    $region8: #{decoder_forward.3} parent=1 // pred_region
      _
    $region9: #{decoder_forward.3} parent=1 // pred_fallthru
      _
    %v12 = vld [vmem:[%s1] sm:$0xff]
    %v13 = vld [vmem:[%s0] sm:$0xff]
    %15 = vset.pattern.permute.xlu0 0
    %16 = vperm.xlu0 %15, %v13
    %v17 = vpop.permute.xlu0 %16
    %v19 = vsub.f32 %v12, %v17
    %20 = vst [vmem:[#allocation2] sm:$0xff] %v19
    // Predicated region
    $region10: #{decoder_forward.3} parent=1 // pred_check
      _
    $region11: #{decoder_forward.3} parent=1 // pred_check_branch
      %22 = sbr.rel (0) target = $region13
    $region12: #{decoder_forward.3} parent=1 // pred_region
      %s24 = ssub.s32 128, 128
      %25 = vsyncadd [#allocation3], %s24
      %s27 = sshll.u32 [#allocation2], 4
      %s28 = int_to_ptr.vmem [resolvable:$true] %s27
      %30 = dma.vmem_to_hbm [thread:$0]  %s28, 128, %s2, [#allocation3]
    $region13: #{decoder_forward.3} parent=1 // pred_fallthru
      _
    // Predicated region
    $region14: #{decoder_forward.3} parent=1 // pred_check
      _
    $region15: #{decoder_forward.3} parent=1 // pred_check_branch
      %32 = sbr.rel (0) target = $region17
    $region16: #{decoder_forward.3} parent=1 // pred_region
      %33 = dma.done [#allocation3], 128
    $region17: #{decoder_forward.3} parent=1 // pred_fallthru
      _
    %34 = vsyncpa [#allocation3], 1

// kernel: decoder_forward.2
$region0: #{decoder_forward.2}
  #allocation0 [shape = 'u32[]', space=smem, size = 0x4, offset = 0x4, fixed_abs, tag = 'smem constant byte address 0x4 - core index']
  #allocation1 [shape = 'u32[144,128]{1,0:T(1,128)}', space=vmem, size = 0x12000, scoped, tag = 'internal scratch']
  #allocation2 [shape = 'f32[8,512]{1,0:T(8,128)}', space=vmem, size = 0x4000, scoped, tag = 'scratch operand']
  #allocation3 [shape = 'bf16[8,128]{1,0:T(8,128)(2,1)}', space=vmem, size = 0x800, scoped, tag = 'scratch operand']
  #allocation4 [shape = 'f32[8,1]{1,0:T(8,128)}', space=vmem, size = 0x1000, scoped, tag = 'scratch operand']
  #allocation5 [shape = 'f32[8,1]{1,0:T(8,128)}', space=vmem, size = 0x1000, scoped, tag = 'scratch operand']
  %s0 = inlined_call_operand.vmem [shape: f32[8,128], index: 0, kind: input, shape index: {}]
  %s1 = inlined_call_operand.vmem [shape: f32[128,512], index: 1, kind: input, shape index: {}]
  %s2 = inlined_call_operand.vmem [shape: f32[128,512], index: 2, kind: input, shape index: {}]
  %s3 = inlined_call_operand.vmem [shape: f32[1,512], index: 3, kind: input, shape index: {}]
  %s4 = inlined_call_operand.vmem [shape: bf16[128,128], index: 4, kind: input, shape index: {}]
  %s5 = inlined_call_operand.vmem [shape: f32[1,128], index: 5, kind: input, shape index: {}]
  %s6 = inlined_call_operand.vmem [shape: f32[8,128], index: 6, kind: output, shape index: {0}]
  %s7 = inlined_call_operand.vmem [shape: f32[8,1], index: 7, kind: output, shape index: {1}]
  %8 = xla_tuple %s6, %s7
  %s9 = sld [smem:[#allocation0]]
  $region50: #{decoder_forward.2} parent=0
    _
  %s11 = ssub.s32 1, %s9
  %s12 = scalar_select 0, %s11, %s9
  // Predicated region
  $region2: #{decoder_forward.2} parent=0 // pred_check
    _
  $region3: #{decoder_forward.2} parent=0 // pred_check_branch
    %14 = sbr.rel (0) target = $region5
  $region4: #{decoder_forward.2} parent=0 // pred_region
    _
  $region5: #{decoder_forward.2} parent=0 // pred_fallthru
    _
  // Predicated region
  $region6: #{decoder_forward.2} parent=0 // pred_check
    _
  $region7: #{decoder_forward.2} parent=0 // pred_check_branch
    %16 = sbr.rel (0) target = $region9
  $region8: #{decoder_forward.2} parent=0 // pred_region
    _
  $region9: #{decoder_forward.2} parent=0 // pred_fallthru
    _
  // Predicated region
  $region10: #{decoder_forward.2} parent=0 // pred_check
    _
  $region11: #{decoder_forward.2} parent=0 // pred_check_branch
    %18 = sbr.rel (0) target = $region13
  $region12: #{decoder_forward.2} parent=0 // pred_region
    _
  $region13: #{decoder_forward.2} parent=0 // pred_fallthru
    _
  // Predicated region
  $region14: #{decoder_forward.2} parent=0 // pred_check
    _
  $region15: #{decoder_forward.2} parent=0 // pred_check_branch
    %20 = sbr.rel (0) target = $region17
  $region16: #{decoder_forward.2} parent=0 // pred_region
    _
  $region17: #{decoder_forward.2} parent=0 // pred_fallthru
    _
  // Predicated region
  $region18: #{decoder_forward.2} parent=0 // pred_check
    _
  $region19: #{decoder_forward.2} parent=0 // pred_check_branch
    %22 = sbr.rel (0) target = $region21
  $region20: #{decoder_forward.2} parent=0 // pred_region
    _
  $region21: #{decoder_forward.2} parent=0 // pred_fallthru
    _
  // Predicated region
  $region22: #{decoder_forward.2} parent=0 // pred_check
    _
  $region23: #{decoder_forward.2} parent=0 // pred_check_branch
    %24 = sbr.rel (0) target = $region25
  $region24: #{decoder_forward.2} parent=0 // pred_region
    _
  $region25: #{decoder_forward.2} parent=0 // pred_fallthru
    _
  %p26 = scmp.eq.s32.totalorder 0, 0
  // Predicated region
  $region26: #{decoder_forward.2} parent=0 // pred_check
    %p27 = pneg %p26
  $region27: #{decoder_forward.2} parent=0 // pred_check_branch
    %29 = sbr.rel (%p27) target = $region29
  $region28: #{decoder_forward.2} parent=0 // pred_region
    %v30 = vld [vmem:[%s0] sm:$0xff]
    %v31 = vld [vmem:[%s1] sm:$0xff]
    %v32 = vld [vmem:[%s1 + $0x8] sm:$0xff]
    %v33 = vld [vmem:[%s1 + $0x10] sm:$0xff]
    %v34 = vld [vmem:[%s1 + $0x18] sm:$0xff]
    %v35 = vld [vmem:[%s1 + $0x20] sm:$0xff]
    %v36 = vld [vmem:[%s1 + $0x28] sm:$0xff]
    %v37 = vld [vmem:[%s1 + $0x30] sm:$0xff]
    %v38 = vld [vmem:[%s1 + $0x38] sm:$0xff]
    %v39 = vld [vmem:[%s1 + $0x40] sm:$0xff]
    %v40 = vld [vmem:[%s1 + $0x48] sm:$0xff]
    %v41 = vld [vmem:[%s1 + $0x50] sm:$0xff]
    %v42 = vld [vmem:[%s1 + $0x58] sm:$0xff]
    %v43 = vld [vmem:[%s1 + $0x60] sm:$0xff]
    %v44 = vld [vmem:[%s1 + $0x68] sm:$0xff]
    %v45 = vld [vmem:[%s1 + $0x70] sm:$0xff]
    %v46 = vld [vmem:[%s1 + $0x78] sm:$0xff]
    %v47 = vld [vmem:[%s1 + $0x80] sm:$0xff]
    %v48 = vld [vmem:[%s1 + $0x88] sm:$0xff]
    %v49 = vld [vmem:[%s1 + $0x90] sm:$0xff]
    %v50 = vld [vmem:[%s1 + $0x98] sm:$0xff]
    %v51 = vld [vmem:[%s1 + $0xa0] sm:$0xff]
    %v52 = vld [vmem:[%s1 + $0xa8] sm:$0xff]
    %v53 = vld [vmem:[%s1 + $0xb0] sm:$0xff]
    %v54 = vld [vmem:[%s1 + $0xb8] sm:$0xff]
    %v55 = vld [vmem:[%s1 + $0xc0] sm:$0xff]
    %v56 = vld [vmem:[%s1 + $0xc8] sm:$0xff]
    %v57 = vld [vmem:[%s1 + $0xd0] sm:$0xff]
    %v58 = vld [vmem:[%s1 + $0xd8] sm:$0xff]
    %v59 = vld [vmem:[%s1 + $0xe0] sm:$0xff]
    %v60 = vld [vmem:[%s1 + $0xe8] sm:$0xff]
    %v61 = vld [vmem:[%s1 + $0xf0] sm:$0xff]
    %v62 = vld [vmem:[%s1 + $0xf8] sm:$0xff]
    %v63 = vld [vmem:[%s1 + $0x100] sm:$0xff]
    %v64 = vld [vmem:[%s1 + $0x108] sm:$0xff]
    %v65 = vld [vmem:[%s1 + $0x110] sm:$0xff]
    %v66 = vld [vmem:[%s1 + $0x118] sm:$0xff]
    %v67 = vld [vmem:[%s1 + $0x120] sm:$0xff]
    %v68 = vld [vmem:[%s1 + $0x128] sm:$0xff]
    %v69 = vld [vmem:[%s1 + $0x130] sm:$0xff]
    %v70 = vld [vmem:[%s1 + $0x138] sm:$0xff]
    %v71 = vld [vmem:[%s1 + $0x140] sm:$0xff]
    %v72 = vld [vmem:[%s1 + $0x148] sm:$0xff]
    %v73 = vld [vmem:[%s1 + $0x150] sm:$0xff]
    %v74 = vld [vmem:[%s1 + $0x158] sm:$0xff]
    %v75 = vld [vmem:[%s1 + $0x160] sm:$0xff]
    %v76 = vld [vmem:[%s1 + $0x168] sm:$0xff]
    %v77 = vld [vmem:[%s1 + $0x170] sm:$0xff]
    %v78 = vld [vmem:[%s1 + $0x178] sm:$0xff]
    %v79 = vld [vmem:[%s1 + $0x180] sm:$0xff]
    %v80 = vld [vmem:[%s1 + $0x188] sm:$0xff]
    %v81 = vld [vmem:[%s1 + $0x190] sm:$0xff]
    %v82 = vld [vmem:[%s1 + $0x198] sm:$0xff]
    %v83 = vld [vmem:[%s1 + $0x1a0] sm:$0xff]
    %v84 = vld [vmem:[%s1 + $0x1a8] sm:$0xff]
    %v85 = vld [vmem:[%s1 + $0x1b0] sm:$0xff]
    %v86 = vld [vmem:[%s1 + $0x1b8] sm:$0xff]
    %v87 = vld [vmem:[%s1 + $0x1c0] sm:$0xff]
    %v88 = vld [vmem:[%s1 + $0x1c8] sm:$0xff]
    %v89 = vld [vmem:[%s1 + $0x1d0] sm:$0xff]
    %v90 = vld [vmem:[%s1 + $0x1d8] sm:$0xff]
    %v91 = vld [vmem:[%s1 + $0x1e0] sm:$0xff]
    %v92 = vld [vmem:[%s1 + $0x1e8] sm:$0xff]
    %v93 = vld [vmem:[%s1 + $0x1f0] sm:$0xff]
    %v94 = vld [vmem:[%s1 + $0x1f8] sm:$0xff]
    %v95 = vld [vmem:[%s3] sm:$0xf]
    %v97 = vlaneseq
    %v98 = vshrl.u32 %v97, 7
    %v99 = vsub.s32 0, %v98
    %v100 = vrot.slane %v95, %v99
    %v101 = vlaneseq
    %v102 = vshrl.u32 %v101, 7
    %v103 = vsub.s32 1, %v102
    %v104 = vrot.slane %v95, %v103
    %v105 = vlaneseq
    %v106 = vshrl.u32 %v105, 7
    %v107 = vsub.s32 2, %v106
    %v108 = vrot.slane %v95, %v107
    %v109 = vlaneseq
    %v110 = vshrl.u32 %v109, 7
    %v111 = vsub.s32 3, %v110
    %v112 = vrot.slane %v95, %v111
    %117 = vmatprep.subr.mxu0 %v92
    %118 = vmatpush1.msra.mxu0 %v91
    %119 = vmatprep.subr.mxu0 %v88
    %120 = vmatpush1.msra.mxu0 %v87
    %121 = vmatprep.subr.mxu0 %v84
    %122 = vmatpush1.msra.mxu0 %v83
    %123 = vmatprep.subr.mxu0 %v80
    %124 = vmatpush1.msra.mxu0 %v79
    %125 = vmatprep.subr.mxu0 %v76
    %126 = vmatpush1.msra.mxu0 %v75
    %127 = vmatprep.subr.mxu0 %v72
    %128 = vmatpush1.msra.mxu0 %v71
    %129 = vmatprep.subr.mxu0 %v68
    %130 = vmatpush1.msra.mxu0 %v67
    %131 = vmatprep.subr.mxu0 %v64
    %132 = vmatpush1.msra.mxu0 %v63
    %133 = vmatprep.subr.mxu0 %v60
    %134 = vmatpush1.msra.mxu0 %v59
    %135 = vmatprep.subr.mxu0 %v56
    %136 = vmatpush1.msra.mxu0 %v55
    %137 = vmatprep.subr.mxu0 %v52
    %138 = vmatpush1.msra.mxu0 %v51
    %139 = vmatprep.subr.mxu0 %v48
    %140 = vmatpush1.msra.mxu0 %v47
    %141 = vmatprep.subr.mxu0 %v44
    %142 = vmatpush1.msra.mxu0 %v43
    %143 = vmatprep.subr.mxu0 %v40
    %144 = vmatpush1.msra.mxu0 %v39
    %145 = vmatprep.subr.mxu0 %v36
    %146 = vmatpush1.msra.mxu0 %v35
    %147 = vmatprep.subr.mxu0 %v32
    %148 = vmatpush1.msra.mxu0 %v31
    %149 = vmatprep.subr.mxu0 0.0
    %150 = vmatpush2.msra.mxu0 0.0
    %151 = vmatprep.subr.mxu0 0.0
    %152 = vmatpush2.msra.mxu0 0.0
    %153 = vmatprep.subr.mxu0 0.0
    %154 = vmatpush2.msra.mxu0 0.0
    %155 = vmatprep.subr.mxu0 0.0
    %156 = vmatpush2.msra.mxu0 0.0
    %157 = vmatprep.subr.mxu0 0.0
    %158 = vmatpush2.msra.mxu0 0.0
    %159 = vmatprep.subr.mxu0 0.0
    %160 = vmatpush2.msra.mxu0 0.0
    %161 = vmatprep.subr.mxu0 0.0
    %162 = vmatpush2.msra.mxu0 0.0
    %163 = vmatprep.subr.mxu0 0.0
    %164 = vmatpush2.msra.mxu0 0.0
    %165 = vmatprep.subr.mxu0 0.0
    %166 = vmatpush2.msra.mxu0 0.0
    %167 = vmatprep.subr.mxu0 0.0
    %168 = vmatpush2.msra.mxu0 0.0
    %169 = vmatprep.subr.mxu0 0.0
    %170 = vmatpush2.msra.mxu0 0.0
    %171 = vmatprep.subr.mxu0 0.0
    %172 = vmatpush2.msra.mxu0 0.0
    %173 = vmatprep.subr.mxu0 0.0
    %174 = vmatpush2.msra.mxu0 0.0
    %175 = vmatprep.subr.mxu0 0.0
    %176 = vmatpush2.msra.mxu0 0.0
    %177 = vmatprep.subr.mxu0 0.0
    %178 = vmatpush2.msra.mxu0 0.0
    %179 = vmatprep.subr.mxu0 0.0
    %180 = vmatpush2.msra.mxu0 0.0
    %181 = vmatprep.mubr.f32.mxu0 0.0
    %182 = vmatmul.mubr.f32.gmra.mxu0 %v30
    %v183 = vpop.f32.mrf.mxu0
    %v184 = vadd.f32 %v100, %v183
    %v185 = vpop.f32.mrf.mxu0
    %v186 = vadd.f32 %v104, %v185
    %187 = vdwg.mxu0
    %188 = vmatprep.subr.mxu0 %v94
    %189 = vmatpush1.msra.mxu0 %v93
    %190 = vmatprep.subr.mxu0 %v90
    %191 = vmatpush1.msra.mxu0 %v89
    %192 = vmatprep.subr.mxu0 %v86
    %193 = vmatpush1.msra.mxu0 %v85
    %194 = vmatprep.subr.mxu0 %v82
    %195 = vmatpush1.msra.mxu0 %v81
    %196 = vmatprep.subr.mxu0 %v78
    %197 = vmatpush1.msra.mxu0 %v77
    %198 = vmatprep.subr.mxu0 %v74
    %199 = vmatpush1.msra.mxu0 %v73
    %200 = vmatprep.subr.mxu0 %v70
    %201 = vmatpush1.msra.mxu0 %v69
    %202 = vmatprep.subr.mxu0 %v66
    %203 = vmatpush1.msra.mxu0 %v65
    %204 = vmatprep.subr.mxu0 %v62
    %205 = vmatpush1.msra.mxu0 %v61
    %206 = vmatprep.subr.mxu0 %v58
    %207 = vmatpush1.msra.mxu0 %v57
    %208 = vmatprep.subr.mxu0 %v54
    %209 = vmatpush1.msra.mxu0 %v53
    %210 = vmatprep.subr.mxu0 %v50
    %211 = vmatpush1.msra.mxu0 %v49
    %212 = vmatprep.subr.mxu0 %v46
    %213 = vmatpush1.msra.mxu0 %v45
    %214 = vmatprep.subr.mxu0 %v42
    %215 = vmatpush1.msra.mxu0 %v41
    %216 = vmatprep.subr.mxu0 %v38
    %217 = vmatpush1.msra.mxu0 %v37
    %218 = vmatprep.subr.mxu0 %v34
    %219 = vmatpush1.msra.mxu0 %v33
    %220 = vmatprep.subr.mxu0 0.0
    %221 = vmatpush2.msra.mxu0 0.0
    %222 = vmatprep.subr.mxu0 0.0
    %223 = vmatpush2.msra.mxu0 0.0
    %224 = vmatprep.subr.mxu0 0.0
    %225 = vmatpush2.msra.mxu0 0.0
    %226 = vmatprep.subr.mxu0 0.0
    %227 = vmatpush2.msra.mxu0 0.0
    %228 = vmatprep.subr.mxu0 0.0
    %229 = vmatpush2.msra.mxu0 0.0
    %230 = vmatprep.subr.mxu0 0.0
    %231 = vmatpush2.msra.mxu0 0.0
    %232 = vmatprep.subr.mxu0 0.0
    %233 = vmatpush2.msra.mxu0 0.0
    %234 = vmatprep.subr.mxu0 0.0
    %235 = vmatpush2.msra.mxu0 0.0
    %236 = vmatprep.subr.mxu0 0.0
    %237 = vmatpush2.msra.mxu0 0.0
    %238 = vmatprep.subr.mxu0 0.0
    %239 = vmatpush2.msra.mxu0 0.0
    %240 = vmatprep.subr.mxu0 0.0
    %241 = vmatpush2.msra.mxu0 0.0
    %242 = vmatprep.subr.mxu0 0.0
    %243 = vmatpush2.msra.mxu0 0.0
    %244 = vmatprep.subr.mxu0 0.0
    %245 = vmatpush2.msra.mxu0 0.0
    %246 = vmatprep.subr.mxu0 0.0
    %247 = vmatpush2.msra.mxu0 0.0
    %248 = vmatprep.subr.mxu0 0.0
    %249 = vmatpush2.msra.mxu0 0.0
    %250 = vmatprep.subr.mxu0 0.0
    %251 = vmatpush2.msra.mxu0 0.0
    %252 = vmatprep.mubr.f32.mxu0 0.0
    %253 = vmatmul.mubr.f32.gmra.mxu0 %v30
    %v254 = vpop.f32.mrf.mxu0
    %v255 = vadd.f32 %v108, %v254
    %v256 = vpop.f32.mrf.mxu0
    %v257 = vadd.f32 %v112, %v256
    %258 = vdwg.mxu0
    %259 = vst [vmem:[#allocation2] sm:$0xff] %v184
    %260 = vst [vmem:[#allocation2 + $0x8] sm:$0xff] %v186
    %261 = vst [vmem:[#allocation2 + $0x10] sm:$0xff] %v255
    %262 = vst [vmem:[#allocation2 + $0x18] sm:$0xff] %v257
    %v263 = vld [vmem:[#allocation2] ss:$8 sm:$0xf]
    %v264 = vld [vmem:[%s2] sm:$0xff]
    %v265 = vld [vmem:[%s2 + $0x8] sm:$0xff]
    %v266 = vld [vmem:[%s2 + $0x10] sm:$0xff]
    %v267 = vld [vmem:[%s2 + $0x18] sm:$0xff]
    %v268 = vld [vmem:[%s2 + $0x20] sm:$0xff]
    %v269 = vld [vmem:[%s2 + $0x28] sm:$0xff]
    %v270 = vld [vmem:[%s2 + $0x30] sm:$0xff]
    %v271 = vld [vmem:[%s2 + $0x38] sm:$0xff]
    %v272 = vld [vmem:[%s2 + $0x40] sm:$0xff]
    %v273 = vld [vmem:[%s2 + $0x48] sm:$0xff]
    %v274 = vld [vmem:[%s2 + $0x50] sm:$0xff]
    %v275 = vld [vmem:[%s2 + $0x58] sm:$0xff]
    %v276 = vld [vmem:[%s2 + $0x60] sm:$0xff]
    %v277 = vld [vmem:[%s2 + $0x68] sm:$0xff]
    %v278 = vld [vmem:[%s2 + $0x70] sm:$0xff]
    %v279 = vld [vmem:[%s2 + $0x78] sm:$0xff]
    %v280 = vld [vmem:[%s2 + $0x80] sm:$0xff]
    %v281 = vld [vmem:[%s2 + $0x88] sm:$0xff]
    %v282 = vld [vmem:[%s2 + $0x90] sm:$0xff]
    %v283 = vld [vmem:[%s2 + $0x98] sm:$0xff]
    %v284 = vld [vmem:[%s2 + $0xa0] sm:$0xff]
    %v285 = vld [vmem:[%s2 + $0xa8] sm:$0xff]
    %v286 = vld [vmem:[%s2 + $0xb0] sm:$0xff]
    %v287 = vld [vmem:[%s2 + $0xb8] sm:$0xff]
    %v288 = vld [vmem:[%s2 + $0xc0] sm:$0xff]
    %v289 = vld [vmem:[%s2 + $0xc8] sm:$0xff]
    %v290 = vld [vmem:[%s2 + $0xd0] sm:$0xff]
    %v291 = vld [vmem:[%s2 + $0xd8] sm:$0xff]
    %v292 = vld [vmem:[%s2 + $0xe0] sm:$0xff]
    %v293 = vld [vmem:[%s2 + $0xe8] sm:$0xff]
    %v294 = vld [vmem:[%s2 + $0xf0] sm:$0xff]
    %v295 = vld [vmem:[%s2 + $0xf8] sm:$0xff]
    %v296 = vld [vmem:[%s2 + $0x100] sm:$0xff]
    %v297 = vld [vmem:[%s2 + $0x108] sm:$0xff]
    %v298 = vld [vmem:[%s2 + $0x110] sm:$0xff]
    %v299 = vld [vmem:[%s2 + $0x118] sm:$0xff]
    %v300 = vld [vmem:[%s2 + $0x120] sm:$0xff]
    %v301 = vld [vmem:[%s2 + $0x128] sm:$0xff]
    %v302 = vld [vmem:[%s2 + $0x130] sm:$0xff]
    %v303 = vld [vmem:[%s2 + $0x138] sm:$0xff]
    %v304 = vld [vmem:[%s2 + $0x140] sm:$0xff]
    %v305 = vld [vmem:[%s2 + $0x148] sm:$0xff]
    %v306 = vld [vmem:[%s2 + $0x150] sm:$0xff]
    %v307 = vld [vmem:[%s2 + $0x158] sm:$0xff]
    %v308 = vld [vmem:[%s2 + $0x160] sm:$0xff]
    %v309 = vld [vmem:[%s2 + $0x168] sm:$0xff]
    %v310 = vld [vmem:[%s2 + $0x170] sm:$0xff]
    %v311 = vld [vmem:[%s2 + $0x178] sm:$0xff]
    %v312 = vld [vmem:[%s2 + $0x180] sm:$0xff]
    %v313 = vld [vmem:[%s2 + $0x188] sm:$0xff]
    %v314 = vld [vmem:[%s2 + $0x190] sm:$0xff]
    %v315 = vld [vmem:[%s2 + $0x198] sm:$0xff]
    %v316 = vld [vmem:[%s2 + $0x1a0] sm:$0xff]
    %v317 = vld [vmem:[%s2 + $0x1a8] sm:$0xff]
    %v318 = vld [vmem:[%s2 + $0x1b0] sm:$0xff]
    %v319 = vld [vmem:[%s2 + $0x1b8] sm:$0xff]
    %v320 = vld [vmem:[%s2 + $0x1c0] sm:$0xff]
    %v321 = vld [vmem:[%s2 + $0x1c8] sm:$0xff]
    %v322 = vld [vmem:[%s2 + $0x1d0] sm:$0xff]
    %v323 = vld [vmem:[%s2 + $0x1d8] sm:$0xff]
    %v324 = vld [vmem:[%s2 + $0x1e0] sm:$0xff]
    %v325 = vld [vmem:[%s2 + $0x1e8] sm:$0xff]
    %v326 = vld [vmem:[%s2 + $0x1f0] sm:$0xff]
    %v327 = vld [vmem:[%s2 + $0x1f8] sm:$0xff]
    %328 = vmatprep.subr.mxu0 %v325
    %329 = vmatpush1.msra.mxu0 %v324
    %330 = vmatprep.subr.mxu0 %v321
    %331 = vmatpush1.msra.mxu0 %v320
    %332 = vmatprep.subr.mxu0 %v317
    %333 = vmatpush1.msra.mxu0 %v316
    %334 = vmatprep.subr.mxu0 %v313
    %335 = vmatpush1.msra.mxu0 %v312
    %336 = vmatprep.subr.mxu0 %v309
    %337 = vmatpush1.msra.mxu0 %v308
    %338 = vmatprep.subr.mxu0 %v305
    %339 = vmatpush1.msra.mxu0 %v304
    %340 = vmatprep.subr.mxu0 %v301
    %341 = vmatpush1.msra.mxu0 %v300
    %342 = vmatprep.subr.mxu0 %v297
    %343 = vmatpush1.msra.mxu0 %v296
    %344 = vmatprep.subr.mxu0 %v293
    %345 = vmatpush1.msra.mxu0 %v292
    %346 = vmatprep.subr.mxu0 %v289
    %347 = vmatpush1.msra.mxu0 %v288
    %348 = vmatprep.subr.mxu0 %v285
    %349 = vmatpush1.msra.mxu0 %v284
    %350 = vmatprep.subr.mxu0 %v281
    %351 = vmatpush1.msra.mxu0 %v280
    %352 = vmatprep.subr.mxu0 %v277
    %353 = vmatpush1.msra.mxu0 %v276
    %354 = vmatprep.subr.mxu0 %v273
    %355 = vmatpush1.msra.mxu0 %v272
    %356 = vmatprep.subr.mxu0 %v269
    %357 = vmatpush1.msra.mxu0 %v268
    %358 = vmatprep.subr.mxu0 %v265
    %359 = vmatpush1.msra.mxu0 %v264
    %360 = vmatprep.subr.mxu0 0.0
    %361 = vmatpush2.msra.mxu0 0.0
    %362 = vmatprep.subr.mxu0 0.0
    %363 = vmatpush2.msra.mxu0 0.0
    %364 = vmatprep.subr.mxu0 0.0
    %365 = vmatpush2.msra.mxu0 0.0
    %366 = vmatprep.subr.mxu0 0.0
    %367 = vmatpush2.msra.mxu0 0.0
    %368 = vmatprep.subr.mxu0 0.0
    %369 = vmatpush2.msra.mxu0 0.0
    %370 = vmatprep.subr.mxu0 0.0
    %371 = vmatpush2.msra.mxu0 0.0
    %372 = vmatprep.subr.mxu0 0.0
    %373 = vmatpush2.msra.mxu0 0.0
    %374 = vmatprep.subr.mxu0 0.0
    %375 = vmatpush2.msra.mxu0 0.0
    %376 = vmatprep.subr.mxu0 0.0
    %377 = vmatpush2.msra.mxu0 0.0
    %378 = vmatprep.subr.mxu0 0.0
    %379 = vmatpush2.msra.mxu0 0.0
    %380 = vmatprep.subr.mxu0 0.0
    %381 = vmatpush2.msra.mxu0 0.0
    %382 = vmatprep.subr.mxu0 0.0
    %383 = vmatpush2.msra.mxu0 0.0
    %384 = vmatprep.subr.mxu0 0.0
    %385 = vmatpush2.msra.mxu0 0.0
    %386 = vmatprep.subr.mxu0 0.0
    %387 = vmatpush2.msra.mxu0 0.0
    %388 = vmatprep.subr.mxu0 0.0
    %389 = vmatpush2.msra.mxu0 0.0
    %390 = vmatprep.subr.mxu0 0.0
    %391 = vmatpush2.msra.mxu0 0.0
    %392 = vmatprep.mubr.f32.mxu0 0.0
    %393 = vmatmul.mubr.f32.gmra.mxu0 0.0
    %v394 = vpop.f32.mrf.mxu0
    %v395 = vadd.f32 0.0, %v394
    %v396 = vpop.f32.mrf.mxu0
    %v397 = vadd.f32 0.0, %v396
    %398 = vdwg.mxu0
    %399 = vmatprep.subr.mxu0 %v327
    %400 = vmatpush1.msra.mxu0 %v326
    %401 = vmatprep.subr.mxu0 %v323
    %402 = vmatpush1.msra.mxu0 %v322
    %403 = vmatprep.subr.mxu0 %v319
    %404 = vmatpush1.msra.mxu0 %v318
    %405 = vmatprep.subr.mxu0 %v315
    %406 = vmatpush1.msra.mxu0 %v314
    %407 = vmatprep.subr.mxu0 %v311
    %408 = vmatpush1.msra.mxu0 %v310
    %409 = vmatprep.subr.mxu0 %v307
    %410 = vmatpush1.msra.mxu0 %v306
    %411 = vmatprep.subr.mxu0 %v303
    %412 = vmatpush1.msra.mxu0 %v302
    %413 = vmatprep.subr.mxu0 %v299
    %414 = vmatpush1.msra.mxu0 %v298
    %415 = vmatprep.subr.mxu0 %v295
    %416 = vmatpush1.msra.mxu0 %v294
    %417 = vmatprep.subr.mxu0 %v291
    %418 = vmatpush1.msra.mxu0 %v290
    %419 = vmatprep.subr.mxu0 %v287
    %420 = vmatpush1.msra.mxu0 %v286
    %421 = vmatprep.subr.mxu0 %v283
    %422 = vmatpush1.msra.mxu0 %v282
    %423 = vmatprep.subr.mxu0 %v279
    %424 = vmatpush1.msra.mxu0 %v278
    %425 = vmatprep.subr.mxu0 %v275
    %426 = vmatpush1.msra.mxu0 %v274
    %427 = vmatprep.subr.mxu0 %v271
    %428 = vmatpush1.msra.mxu0 %v270
    %429 = vmatprep.subr.mxu0 %v267
    %430 = vmatpush1.msra.mxu0 %v266
    %431 = vmatprep.subr.mxu0 0.0
    %432 = vmatpush2.msra.mxu0 0.0
    %433 = vmatprep.subr.mxu0 0.0
    %434 = vmatpush2.msra.mxu0 0.0
    %435 = vmatprep.subr.mxu0 0.0
    %436 = vmatpush2.msra.mxu0 0.0
    %437 = vmatprep.subr.mxu0 0.0
    %438 = vmatpush2.msra.mxu0 0.0
    %439 = vmatprep.subr.mxu0 0.0
    %440 = vmatpush2.msra.mxu0 0.0
    %441 = vmatprep.subr.mxu0 0.0
    %442 = vmatpush2.msra.mxu0 0.0
    %443 = vmatprep.subr.mxu0 0.0
    %444 = vmatpush2.msra.mxu0 0.0
    %445 = vmatprep.subr.mxu0 0.0
    %446 = vmatpush2.msra.mxu0 0.0
    %447 = vmatprep.subr.mxu0 0.0
    %448 = vmatpush2.msra.mxu0 0.0
    %449 = vmatprep.subr.mxu0 0.0
    %450 = vmatpush2.msra.mxu0 0.0
    %451 = vmatprep.subr.mxu0 0.0
    %452 = vmatpush2.msra.mxu0 0.0
    %453 = vmatprep.subr.mxu0 0.0
    %454 = vmatpush2.msra.mxu0 0.0
    %455 = vmatprep.subr.mxu0 0.0
    %456 = vmatpush2.msra.mxu0 0.0
    %457 = vmatprep.subr.mxu0 0.0
    %458 = vmatpush2.msra.mxu0 0.0
    %459 = vmatprep.subr.mxu0 0.0
    %460 = vmatpush2.msra.mxu0 0.0
    %461 = vmatprep.subr.mxu0 0.0
    %462 = vmatpush2.msra.mxu0 0.0
    %463 = vmatprep.mubr.f32.mxu0 0.0
    %464 = vmatmul.mubr.f32.gmra.mxu0 0.0
    %v465 = vpop.f32.mrf.mxu0
    %v466 = vadd.f32 0.0, %v465
    %v467 = vpop.f32.mrf.mxu0
    %v468 = vadd.f32 0.0, %v467
    %469 = vdwg.mxu0
    %v474 = vcombine.low %v395, %v397
    %v475 = vcombine.low %v466, %v468
    %v477 = vunpack.c.l.s4 1966171168
    %v478 = vunpack.c.0.s8 %v477
    %v479 = vlaneseq
    %v480 = vshrl.u32 %v479, 7
    %v481 = vsub.s32 %v478, %v480
    %v482 = vrot.slane %v474, %v481
    %v484 = vunpack.c.l.s4 1966171168
    %v485 = vunpack.c.0.s8 %v484
    %v486 = vlaneseq
    %v487 = vshrl.u32 %v486, 7
    %v488 = vsub.s32 %v485, %v487
    %v489 = vrot.slane %v475, %v488
    %v490 = vcombine.low %v482, %v489
    %v492 = vunpack.c.l.s4 1966171168
    %v493 = vunpack.c.0.s8 %v492
    %v494 = vlaneseq
    %v495 = vshrl.u32 %v494, 7
    %v496 = vsub.s32 %v493, %v495
    %v497 = vrot.slane %v490, %v496
    %v499 = vadd.f32 %v263, %v497
    %v500 = vxor.u32 %v499, 2147483648
    %v501 = vmul.f32 %v500, 1.442695
    %v502 = vpow.pop %v501
    %v503 = vadd.f32 %v502, 1.0
    %v504 = vrcp.pop %v503
    %v505 = vmul.f32 1.0, %v504
    %v507 = vrot.slane %v499, 1
    %v509 = vxor.u32 %v507, 2147483648
    %v510 = vmul.f32 %v509, 1.442695
    %v511 = vpow.pop %v510
    %v512 = vadd.f32 %v511, 1.0
    %v513 = vrcp.pop %v512
    %v514 = vmul.f32 1.0, %v513
    %v515 = vrot.slane %v499, 2
    %v517 = vtanh.pop %v515
    %v518 = vrot.slane %v499, 3
    %v520 = vxor.u32 %v518, 2147483648
    %v521 = vmul.f32 %v520, 1.442695
    %v522 = vpow.pop %v521
    %v523 = vadd.f32 %v522, 1.0
    %v524 = vrcp.pop %v523
    %v525 = vmul.f32 1.0, %v524
    %v526 = vmul.f32 %v514, 0.0
    %v527 = vmul.f32 %v505, %v517
    %v528 = vadd.f32 %v526, %v527
    %v529 = vtanh.pop %v528
    %v530 = vmul.f32 %v525, %v529
    %v531 = vpack.c.bf16 %v530, %v530
    %vm532 = vcmask 1040384
    %vm533 = vsmask.f32 256
    %vm534 = vmand %vm532, %vm533
    %v535 = vld [vmem:[#allocation3] sm:$0x1]
    %v536 = vsel %vm534, %v531, %v535
    %537 = vst [vmem:[#allocation3] sm:$0x1] %v536
    %s538 = scalar_lea.vmem [#allocation2], 1
    %v539 = vld [vmem:[%s538] ss:$8 sm:$0xf]
    %v540 = vld [vmem:[%s2] sm:$0xff]
    %v541 = vld [vmem:[%s2 + $0x8] sm:$0xff]
    %v542 = vld [vmem:[%s2 + $0x10] sm:$0xff]
    %v543 = vld [vmem:[%s2 + $0x18] sm:$0xff]
    %v544 = vld [vmem:[%s2 + $0x20] sm:$0xff]
    %v545 = vld [vmem:[%s2 + $0x28] sm:$0xff]
    %v546 = vld [vmem:[%s2 + $0x30] sm:$0xff]
    %v547 = vld [vmem:[%s2 + $0x38] sm:$0xff]
    %v548 = vld [vmem:[%s2 + $0x40] sm:$0xff]
    %v549 = vld [vmem:[%s2 + $0x48] sm:$0xff]
    %v550 = vld [vmem:[%s2 + $0x50] sm:$0xff]
    %v551 = vld [vmem:[%s2 + $0x58] sm:$0xff]
    %v552 = vld [vmem:[%s2 + $0x60] sm:$0xff]
    %v553 = vld [vmem:[%s2 + $0x68] sm:$0xff]
    %v554 = vld [vmem:[%s2 + $0x70] sm:$0xff]
    %v555 = vld [vmem:[%s2 + $0x78] sm:$0xff]
    %v556 = vld [vmem:[%s2 + $0x80] sm:$0xff]
    %v557 = vld [vmem:[%s2 + $0x88] sm:$0xff]
    %v558 = vld [vmem:[%s2 + $0x90] sm:$0xff]
    %v559 = vld [vmem:[%s2 + $0x98] sm:$0xff]
    %v560 = vld [vmem:[%s2 + $0xa0] sm:$0xff]
    %v561 = vld [vmem:[%s2 + $0xa8] sm:$0xff]
    %v562 = vld [vmem:[%s2 + $0xb0] sm:$0xff]
    %v563 = vld [vmem:[%s2 + $0xb8] sm:$0xff]
    %v564 = vld [vmem:[%s2 + $0xc0] sm:$0xff]
    %v565 = vld [vmem:[%s2 + $0xc8] sm:$0xff]
    %v566 = vld [vmem:[%s2 + $0xd0] sm:$0xff]
    %v567 = vld [vmem:[%s2 + $0xd8] sm:$0xff]
    %v568 = vld [vmem:[%s2 + $0xe0] sm:$0xff]
    %v569 = vld [vmem:[%s2 + $0xe8] sm:$0xff]
    %v570 = vld [vmem:[%s2 + $0xf0] sm:$0xff]
    %v571 = vld [vmem:[%s2 + $0xf8] sm:$0xff]
    %v572 = vld [vmem:[%s2 + $0x100] sm:$0xff]
    %v573 = vld [vmem:[%s2 + $0x108] sm:$0xff]
    %v574 = vld [vmem:[%s2 + $0x110] sm:$0xff]
    %v575 = vld [vmem:[%s2 + $0x118] sm:$0xff]
    %v576 = vld [vmem:[%s2 + $0x120] sm:$0xff]
    %v577 = vld [vmem:[%s2 + $0x128] sm:$0xff]
    %v578 = vld [vmem:[%s2 + $0x130] sm:$0xff]
    %v579 = vld [vmem:[%s2 + $0x138] sm:$0xff]
    %v580 = vld [vmem:[%s2 + $0x140] sm:$0xff]
    %v581 = vld [vmem:[%s2 + $0x148] sm:$0xff]
    %v582 = vld [vmem:[%s2 + $0x150] sm:$0xff]
    %v583 = vld [vmem:[%s2 + $0x158] sm:$0xff]
    %v584 = vld [vmem:[%s2 + $0x160] sm:$0xff]
    %v585 = vld [vmem:[%s2 + $0x168] sm:$0xff]
    %v586 = vld [vmem:[%s2 + $0x170] sm:$0xff]
    %v587 = vld [vmem:[%s2 + $0x178] sm:$0xff]
    %v588 = vld [vmem:[%s2 + $0x180] sm:$0xff]
    %v589 = vld [vmem:[%s2 + $0x188] sm:$0xff]
    %v590 = vld [vmem:[%s2 + $0x190] sm:$0xff]
    %v591 = vld [vmem:[%s2 + $0x198] sm:$0xff]
    %v592 = vld [vmem:[%s2 + $0x1a0] sm:$0xff]
    %v593 = vld [vmem:[%s2 + $0x1a8] sm:$0xff]
    %v594 = vld [vmem:[%s2 + $0x1b0] sm:$0xff]
    %v595 = vld [vmem:[%s2 + $0x1b8] sm:$0xff]
    %v596 = vld [vmem:[%s2 + $0x1c0] sm:$0xff]
    %v597 = vld [vmem:[%s2 + $0x1c8] sm:$0xff]
    %v598 = vld [vmem:[%s2 + $0x1d0] sm:$0xff]
    %v599 = vld [vmem:[%s2 + $0x1d8] sm:$0xff]
    %v600 = vld [vmem:[%s2 + $0x1e0] sm:$0xff]
    %v601 = vld [vmem:[%s2 + $0x1e8] sm:$0xff]
    %v602 = vld [vmem:[%s2 + $0x1f0] sm:$0xff]
    %v603 = vld [vmem:[%s2 + $0x1f8] sm:$0xff]
    %604 = vmatprep.subr.mxu0 %v601
    %605 = vmatpush1.msra.mxu0 %v600
    %606 = vmatprep.subr.mxu0 %v597
    %607 = vmatpush1.msra.mxu0 %v596
    %608 = vmatprep.subr.mxu0 %v593
    %609 = vmatpush1.msra.mxu0 %v592
    %610 = vmatprep.subr.mxu0 %v589
    %611 = vmatpush1.msra.mxu0 %v588
    %612 = vmatprep.subr.mxu0 %v585
    %613 = vmatpush1.msra.mxu0 %v584
    %614 = vmatprep.subr.mxu0 %v581
    %615 = vmatpush1.msra.mxu0 %v580
    %616 = vmatprep.subr.mxu0 %v577
    %617 = vmatpush1.msra.mxu0 %v576
    %618 = vmatprep.subr.mxu0 %v573
    %619 = vmatpush1.msra.mxu0 %v572
    %620 = vmatprep.subr.mxu0 %v569
    %621 = vmatpush1.msra.mxu0 %v568
    %622 = vmatprep.subr.mxu0 %v565
    %623 = vmatpush1.msra.mxu0 %v564
    %624 = vmatprep.subr.mxu0 %v561
    %625 = vmatpush1.msra.mxu0 %v560
    %626 = vmatprep.subr.mxu0 %v557
    %627 = vmatpush1.msra.mxu0 %v556
    %628 = vmatprep.subr.mxu0 %v553
    %629 = vmatpush1.msra.mxu0 %v552
    %630 = vmatprep.subr.mxu0 %v549
    %631 = vmatpush1.msra.mxu0 %v548
    %632 = vmatprep.subr.mxu0 %v545
    %633 = vmatpush1.msra.mxu0 %v544
    %634 = vmatprep.subr.mxu0 %v541
    %635 = vmatpush1.msra.mxu0 %v540
    %636 = vmatprep.subr.mxu0 0.0
    %637 = vmatpush2.msra.mxu0 0.0
    %638 = vmatprep.subr.mxu0 0.0
    %639 = vmatpush2.msra.mxu0 0.0
    %640 = vmatprep.subr.mxu0 0.0
    %641 = vmatpush2.msra.mxu0 0.0
    %642 = vmatprep.subr.mxu0 0.0
    %643 = vmatpush2.msra.mxu0 0.0
    %644 = vmatprep.subr.mxu0 0.0
    %645 = vmatpush2.msra.mxu0 0.0
    %646 = vmatprep.subr.mxu0 0.0
    %647 = vmatpush2.msra.mxu0 0.0
    %648 = vmatprep.subr.mxu0 0.0
    %649 = vmatpush2.msra.mxu0 0.0
    %650 = vmatprep.subr.mxu0 0.0
    %651 = vmatpush2.msra.mxu0 0.0
    %652 = vmatprep.subr.mxu0 0.0
    %653 = vmatpush2.msra.mxu0 0.0
    %654 = vmatprep.subr.mxu0 0.0
    %655 = vmatpush2.msra.mxu0 0.0
    %656 = vmatprep.subr.mxu0 0.0
    %657 = vmatpush2.msra.mxu0 0.0
    %658 = vmatprep.subr.mxu0 0.0
    %659 = vmatpush2.msra.mxu0 0.0
    %660 = vmatprep.subr.mxu0 0.0
    %661 = vmatpush2.msra.mxu0 0.0
    %662 = vmatprep.subr.mxu0 0.0
    %663 = vmatpush2.msra.mxu0 0.0
    %664 = vmatprep.subr.mxu0 0.0
    %665 = vmatpush2.msra.mxu0 0.0
    %666 = vmatprep.subr.mxu0 0.0
    %667 = vmatpush2.msra.mxu0 0.0
    %668 = vmatprep.mubr.f32.mxu0 0.0
    %669 = vmatmul.mubr.f32.gmra.mxu0 %v530
    %v670 = vpop.f32.mrf.mxu0
    %v671 = vadd.f32 0.0, %v670
    %v672 = vpop.f32.mrf.mxu0
    %v673 = vadd.f32 0.0, %v672
    %674 = vdwg.mxu0
    %675 = vmatprep.subr.mxu0 %v603
    %676 = vmatpush1.msra.mxu0 %v602
    %677 = vmatprep.subr.mxu0 %v599
    %678 = vmatpush1.msra.mxu0 %v598
    %679 = vmatprep.subr.mxu0 %v595
    %680 = vmatpush1.msra.mxu0 %v594
    %681 = vmatprep.subr.mxu0 %v591
    %682 = vmatpush1.msra.mxu0 %v590
    %683 = vmatprep.subr.mxu0 %v587
    %684 = vmatpush1.msra.mxu0 %v586
    %685 = vmatprep.subr.mxu0 %v583
    %686 = vmatpush1.msra.mxu0 %v582
    %687 = vmatprep.subr.mxu0 %v579
    %688 = vmatpush1.msra.mxu0 %v578
    %689 = vmatprep.subr.mxu0 %v575
    %690 = vmatpush1.msra.mxu0 %v574
    %691 = vmatprep.subr.mxu0 %v571
    %692 = vmatpush1.msra.mxu0 %v570
    %693 = vmatprep.subr.mxu0 %v567
    %694 = vmatpush1.msra.mxu0 %v566
    %695 = vmatprep.subr.mxu0 %v563
    %696 = vmatpush1.msra.mxu0 %v562
    %697 = vmatprep.subr.mxu0 %v559
    %698 = vmatpush1.msra.mxu0 %v558
    %699 = vmatprep.subr.mxu0 %v555
    %700 = vmatpush1.msra.mxu0 %v554
    %701 = vmatprep.subr.mxu0 %v551
    %702 = vmatpush1.msra.mxu0 %v550
    %703 = vmatprep.subr.mxu0 %v547
    %704 = vmatpush1.msra.mxu0 %v546
    %705 = vmatprep.subr.mxu0 %v543
    %706 = vmatpush1.msra.mxu0 %v542
    %707 = vmatprep.subr.mxu0 0.0
    %708 = vmatpush2.msra.mxu0 0.0
    %709 = vmatprep.subr.mxu0 0.0
    %710 = vmatpush2.msra.mxu0 0.0
    %711 = vmatprep.subr.mxu0 0.0
    %712 = vmatpush2.msra.mxu0 0.0
    %713 = vmatprep.subr.mxu0 0.0
    %714 = vmatpush2.msra.mxu0 0.0
    %715 = vmatprep.subr.mxu0 0.0
    %716 = vmatpush2.msra.mxu0 0.0
    %717 = vmatprep.subr.mxu0 0.0
    %718 = vmatpush2.msra.mxu0 0.0
    %719 = vmatprep.subr.mxu0 0.0
    %720 = vmatpush2.msra.mxu0 0.0
    %721 = vmatprep.subr.mxu0 0.0
    %722 = vmatpush2.msra.mxu0 0.0
    %723 = vmatprep.subr.mxu0 0.0
    %724 = vmatpush2.msra.mxu0 0.0
    %725 = vmatprep.subr.mxu0 0.0
    %726 = vmatpush2.msra.mxu0 0.0
    %727 = vmatprep.subr.mxu0 0.0
    %728 = vmatpush2.msra.mxu0 0.0
    %729 = vmatprep.subr.mxu0 0.0
    %730 = vmatpush2.msra.mxu0 0.0
    %731 = vmatprep.subr.mxu0 0.0
    %732 = vmatpush2.msra.mxu0 0.0
    %733 = vmatprep.subr.mxu0 0.0
    %734 = vmatpush2.msra.mxu0 0.0
    %735 = vmatprep.subr.mxu0 0.0
    %736 = vmatpush2.msra.mxu0 0.0
    %737 = vmatprep.subr.mxu0 0.0
    %738 = vmatpush2.msra.mxu0 0.0
    %739 = vmatprep.mubr.f32.mxu0 0.0
    %740 = vmatmul.mubr.f32.gmra.mxu0 %v530
    %v741 = vpop.f32.mrf.mxu0
    %v742 = vadd.f32 0.0, %v741
    %v743 = vpop.f32.mrf.mxu0
    %v744 = vadd.f32 0.0, %v743
    %745 = vdwg.mxu0
    %v750 = vcombine.low %v671, %v673
    %v751 = vcombine.low %v742, %v744
    %v753 = vunpack.c.l.s4 1966171168
    %v754 = vunpack.c.0.s8 %v753
    %v755 = vlaneseq
    %v756 = vshrl.u32 %v755, 7
    %v757 = vsub.s32 %v754, %v756
    %v758 = vrot.slane %v750, %v757
    %v760 = vunpack.c.l.s4 1966171168
    %v761 = vunpack.c.0.s8 %v760
    %v762 = vlaneseq
    %v763 = vshrl.u32 %v762, 7
    %v764 = vsub.s32 %v761, %v763
    %v765 = vrot.slane %v751, %v764
    %v766 = vcombine.low %v758, %v765
    %v768 = vunpack.c.l.s4 1966171168
    %v769 = vunpack.c.0.s8 %v768
    %v770 = vlaneseq
    %v771 = vshrl.u32 %v770, 7
    %v772 = vsub.s32 %v769, %v771
    %v773 = vrot.slane %v766, %v772
    %v775 = vadd.f32 %v539, %v773
    %v776 = vxor.u32 %v775, 2147483648
    %v777 = vmul.f32 %v776, 1.442695
    %v778 = vpow.pop %v777
    %v779 = vadd.f32 %v778, 1.0
    %v780 = vrcp.pop %v779
    %v781 = vmul.f32 1.0, %v780
    %v783 = vrot.slane %v775, 1
    %v785 = vxor.u32 %v783, 2147483648
    %v786 = vmul.f32 %v785, 1.442695
    %v787 = vpow.pop %v786
    %v788 = vadd.f32 %v787, 1.0
    %v789 = vrcp.pop %v788
    %v790 = vmul.f32 1.0, %v789
    %v791 = vrot.slane %v775, 2
    %v793 = vtanh.pop %v791
    %v794 = vrot.slane %v775, 3
    %v796 = vxor.u32 %v794, 2147483648
    %v797 = vmul.f32 %v796, 1.442695
    %v798 = vpow.pop %v797
    %v799 = vadd.f32 %v798, 1.0
    %v800 = vrcp.pop %v799
    %v801 = vmul.f32 1.0, %v800
    %v802 = vmul.f32 %v790, %v528
    %v803 = vmul.f32 %v781, %v793
    %v804 = vadd.f32 %v802, %v803
    %v805 = vtanh.pop %v804
    %v806 = vmul.f32 %v801, %v805
    %v807 = vpack.c.bf16 %v806, %v806
    %v809 = vunpack.c.l.b16 %v807
    %v810 = vpack.c.b16 %v809, %v809
    %v812 = vshll.u32 %v810, 16
    %vm815 = vsmask.f32 7938
    %vm816 = vmand %vm532, %vm815
    %v817 = vld [vmem:[#allocation3] sm:$0x1]
    %v818 = vsel %vm816, %v812, %v817
    %819 = vst [vmem:[#allocation3] sm:$0x1] %v818
    %s820 = scalar_lea.vmem [#allocation2], 2
    %v821 = vld [vmem:[%s820] ss:$8 sm:$0xf]
    %v822 = vld [vmem:[%s2] sm:$0xff]
    %v823 = vld [vmem:[%s2 + $0x8] sm:$0xff]
    %v824 = vld [vmem:[%s2 + $0x10] sm:$0xff]
    %v825 = vld [vmem:[%s2 + $0x18] sm:$0xff]
    %v826 = vld [vmem:[%s2 + $0x20] sm:$0xff]
    %v827 = vld [vmem:[%s2 + $0x28] sm:$0xff]
    %v828 = vld [vmem:[%s2 + $0x30] sm:$0xff]
    %v829 = vld [vmem:[%s2 + $0x38] sm:$0xff]
    %v830 = vld [vmem:[%s2 + $0x40] sm:$0xff]
    %v831 = vld [vmem:[%s2 + $0x48] sm:$0xff]
    %v832 = vld [vmem:[%s2 + $0x50] sm:$0xff]
    %v833 = vld [vmem:[%s2 + $0x58] sm:$0xff]
    %v834 = vld [vmem:[%s2 + $0x60] sm:$0xff]
    %v835 = vld [vmem:[%s2 + $0x68] sm:$0xff]
    %v836 = vld [vmem:[%s2 + $0x70] sm:$0xff]
    %v837 = vld [vmem:[%s2 + $0x78] sm:$0xff]
    %v838 = vld [vmem:[%s2 + $0x80] sm:$0xff]
    %v839 = vld [vmem:[%s2 + $0x88] sm:$0xff]
    %v840 = vld [vmem:[%s2 + $0x90] sm:$0xff]
    %v841 = vld [vmem:[%s2 + $0x98] sm:$0xff]
    %v842 = vld [vmem:[%s2 + $0xa0] sm:$0xff]
    %v843 = vld [vmem:[%s2 + $0xa8] sm:$0xff]
    %v844 = vld [vmem:[%s2 + $0xb0] sm:$0xff]
    %v845 = vld [vmem:[%s2 + $0xb8] sm:$0xff]
    %v846 = vld [vmem:[%s2 + $0xc0] sm:$0xff]
    %v847 = vld [vmem:[%s2 + $0xc8] sm:$0xff]
    %v848 = vld [vmem:[%s2 + $0xd0] sm:$0xff]
    %v849 = vld [vmem:[%s2 + $0xd8] sm:$0xff]
    %v850 = vld [vmem:[%s2 + $0xe0] sm:$0xff]
    %v851 = vld [vmem:[%s2 + $0xe8] sm:$0xff]
    %v852 = vld [vmem:[%s2 + $0xf0] sm:$0xff]
    %v853 = vld [vmem:[%s2 + $0xf8] sm:$0xff]
    %v854 = vld [vmem:[%s2 + $0x100] sm:$0xff]
    %v855 = vld [vmem:[%s2 + $0x108] sm:$0xff]
    %v856 = vld [vmem:[%s2 + $0x110] sm:$0xff]
    %v857 = vld [vmem:[%s2 + $0x118] sm:$0xff]
    %v858 = vld [vmem:[%s2 + $0x120] sm:$0xff]
    %v859 = vld [vmem:[%s2 + $0x128] sm:$0xff]
    %v860 = vld [vmem:[%s2 + $0x130] sm:$0xff]
    %v861 = vld [vmem:[%s2 + $0x138] sm:$0xff]
    %v862 = vld [vmem:[%s2 + $0x140] sm:$0xff]
    %v863 = vld [vmem:[%s2 + $0x148] sm:$0xff]
    %v864 = vld [vmem:[%s2 + $0x150] sm:$0xff]
    %v865 = vld [vmem:[%s2 + $0x158] sm:$0xff]
    %v866 = vld [vmem:[%s2 + $0x160] sm:$0xff]
    %v867 = vld [vmem:[%s2 + $0x168] sm:$0xff]
    %v868 = vld [vmem:[%s2 + $0x170] sm:$0xff]
    %v869 = vld [vmem:[%s2 + $0x178] sm:$0xff]
    %v870 = vld [vmem:[%s2 + $0x180] sm:$0xff]
    %v871 = vld [vmem:[%s2 + $0x188] sm:$0xff]
    %v872 = vld [vmem:[%s2 + $0x190] sm:$0xff]
    %v873 = vld [vmem:[%s2 + $0x198] sm:$0xff]
    %v874 = vld [vmem:[%s2 + $0x1a0] sm:$0xff]
    %v875 = vld [vmem:[%s2 + $0x1a8] sm:$0xff]
    %v876 = vld [vmem:[%s2 + $0x1b0] sm:$0xff]
    %v877 = vld [vmem:[%s2 + $0x1b8] sm:$0xff]
    %v878 = vld [vmem:[%s2 + $0x1c0] sm:$0xff]
    %v879 = vld [vmem:[%s2 + $0x1c8] sm:$0xff]
    %v880 = vld [vmem:[%s2 + $0x1d0] sm:$0xff]
    %v881 = vld [vmem:[%s2 + $0x1d8] sm:$0xff]
    %v882 = vld [vmem:[%s2 + $0x1e0] sm:$0xff]
    %v883 = vld [vmem:[%s2 + $0x1e8] sm:$0xff]
    %v884 = vld [vmem:[%s2 + $0x1f0] sm:$0xff]
    %v885 = vld [vmem:[%s2 + $0x1f8] sm:$0xff]
    %886 = vmatprep.subr.mxu0 %v883
    %887 = vmatpush1.msra.mxu0 %v882
    %888 = vmatprep.subr.mxu0 %v879
    %889 = vmatpush1.msra.mxu0 %v878
    %890 = vmatprep.subr.mxu0 %v875
    %891 = vmatpush1.msra.mxu0 %v874
    %892 = vmatprep.subr.mxu0 %v871
    %893 = vmatpush1.msra.mxu0 %v870
    %894 = vmatprep.subr.mxu0 %v867
    %895 = vmatpush1.msra.mxu0 %v866
    %896 = vmatprep.subr.mxu0 %v863
    %897 = vmatpush1.msra.mxu0 %v862
    %898 = vmatprep.subr.mxu0 %v859
    %899 = vmatpush1.msra.mxu0 %v858
    %900 = vmatprep.subr.mxu0 %v855
    %901 = vmatpush1.msra.mxu0 %v854
    %902 = vmatprep.subr.mxu0 %v851
    %903 = vmatpush1.msra.mxu0 %v850
    %904 = vmatprep.subr.mxu0 %v847
    %905 = vmatpush1.msra.mxu0 %v846
    %906 = vmatprep.subr.mxu0 %v843
    %907 = vmatpush1.msra.mxu0 %v842
    %908 = vmatprep.subr.mxu0 %v839
    %909 = vmatpush1.msra.mxu0 %v838
    %910 = vmatprep.subr.mxu0 %v835
    %911 = vmatpush1.msra.mxu0 %v834
    %912 = vmatprep.subr.mxu0 %v831
    %913 = vmatpush1.msra.mxu0 %v830
    %914 = vmatprep.subr.mxu0 %v827
    %915 = vmatpush1.msra.mxu0 %v826
    %916 = vmatprep.subr.mxu0 %v823
    %917 = vmatpush1.msra.mxu0 %v822
    %918 = vmatprep.subr.mxu0 0.0
    %919 = vmatpush2.msra.mxu0 0.0
    %920 = vmatprep.subr.mxu0 0.0
    %921 = vmatpush2.msra.mxu0 0.0
    %922 = vmatprep.subr.mxu0 0.0
    %923 = vmatpush2.msra.mxu0 0.0
    %924 = vmatprep.subr.mxu0 0.0
    %925 = vmatpush2.msra.mxu0 0.0
    %926 = vmatprep.subr.mxu0 0.0
    %927 = vmatpush2.msra.mxu0 0.0
    %928 = vmatprep.subr.mxu0 0.0
    %929 = vmatpush2.msra.mxu0 0.0
    %930 = vmatprep.subr.mxu0 0.0
    %931 = vmatpush2.msra.mxu0 0.0
    %932 = vmatprep.subr.mxu0 0.0
    %933 = vmatpush2.msra.mxu0 0.0
    %934 = vmatprep.subr.mxu0 0.0
    %935 = vmatpush2.msra.mxu0 0.0
    %936 = vmatprep.subr.mxu0 0.0
    %937 = vmatpush2.msra.mxu0 0.0
    %938 = vmatprep.subr.mxu0 0.0
    %939 = vmatpush2.msra.mxu0 0.0
    %940 = vmatprep.subr.mxu0 0.0
    %941 = vmatpush2.msra.mxu0 0.0
    %942 = vmatprep.subr.mxu0 0.0
    %943 = vmatpush2.msra.mxu0 0.0
    %944 = vmatprep.subr.mxu0 0.0
    %945 = vmatpush2.msra.mxu0 0.0
    %946 = vmatprep.subr.mxu0 0.0
    %947 = vmatpush2.msra.mxu0 0.0
    %948 = vmatprep.subr.mxu0 0.0
    %949 = vmatpush2.msra.mxu0 0.0
    %950 = vmatprep.mubr.f32.mxu0 0.0
    %951 = vmatmul.mubr.f32.gmra.mxu0 %v806
    %v952 = vpop.f32.mrf.mxu0
    %v953 = vadd.f32 0.0, %v952
    %v954 = vpop.f32.mrf.mxu0
    %v955 = vadd.f32 0.0, %v954
    %956 = vdwg.mxu0
    %957 = vmatprep.subr.mxu0 %v885
    %958 = vmatpush1.msra.mxu0 %v884
    %959 = vmatprep.subr.mxu0 %v881
    %960 = vmatpush1.msra.mxu0 %v880
    %961 = vmatprep.subr.mxu0 %v877
    %962 = vmatpush1.msra.mxu0 %v876
    %963 = vmatprep.subr.mxu0 %v873
    %964 = vmatpush1.msra.mxu0 %v872
    %965 = vmatprep.subr.mxu0 %v869
    %966 = vmatpush1.msra.mxu0 %v868
    %967 = vmatprep.subr.mxu0 %v865
    %968 = vmatpush1.msra.mxu0 %v864
    %969 = vmatprep.subr.mxu0 %v861
    %970 = vmatpush1.msra.mxu0 %v860
    %971 = vmatprep.subr.mxu0 %v857
    %972 = vmatpush1.msra.mxu0 %v856
    %973 = vmatprep.subr.mxu0 %v853
    %974 = vmatpush1.msra.mxu0 %v852
    %975 = vmatprep.subr.mxu0 %v849
    %976 = vmatpush1.msra.mxu0 %v848
    %977 = vmatprep.subr.mxu0 %v845
    %978 = vmatpush1.msra.mxu0 %v844
    %979 = vmatprep.subr.mxu0 %v841
    %980 = vmatpush1.msra.mxu0 %v840
    %981 = vmatprep.subr.mxu0 %v837
    %982 = vmatpush1.msra.mxu0 %v836
    %983 = vmatprep.subr.mxu0 %v833
    %984 = vmatpush1.msra.mxu0 %v832
    %985 = vmatprep.subr.mxu0 %v829
    %986 = vmatpush1.msra.mxu0 %v828
    %987 = vmatprep.subr.mxu0 %v825
    %988 = vmatpush1.msra.mxu0 %v824
    %989 = vmatprep.subr.mxu0 0.0
    %990 = vmatpush2.msra.mxu0 0.0
    %991 = vmatprep.subr.mxu0 0.0
    %992 = vmatpush2.msra.mxu0 0.0
    %993 = vmatprep.subr.mxu0 0.0
    %994 = vmatpush2.msra.mxu0 0.0
    %995 = vmatprep.subr.mxu0 0.0
    %996 = vmatpush2.msra.mxu0 0.0
    %997 = vmatprep.subr.mxu0 0.0
    %998 = vmatpush2.msra.mxu0 0.0
    %999 = vmatprep.subr.mxu0 0.0
    %1000 = vmatpush2.msra.mxu0 0.0
    %1001 = vmatprep.subr.mxu0 0.0
    %1002 = vmatpush2.msra.mxu0 0.0
    %1003 = vmatprep.subr.mxu0 0.0
    %1004 = vmatpush2.msra.mxu0 0.0
    %1005 = vmatprep.subr.mxu0 0.0
    %1006 = vmatpush2.msra.mxu0 0.0
    %1007 = vmatprep.subr.mxu0 0.0
    %1008 = vmatpush2.msra.mxu0 0.0
    %1009 = vmatprep.subr.mxu0 0.0
    %1010 = vmatpush2.msra.mxu0 0.0
    %1011 = vmatprep.subr.mxu0 0.0
    %1012 = vmatpush2.msra.mxu0 0.0
    %1013 = vmatprep.subr.mxu0 0.0
    %1014 = vmatpush2.msra.mxu0 0.0
    %1015 = vmatprep.subr.mxu0 0.0
    %1016 = vmatpush2.msra.mxu0 0.0
    %1017 = vmatprep.subr.mxu0 0.0
    %1018 = vmatpush2.msra.mxu0 0.0
    %1019 = vmatprep.subr.mxu0 0.0
    %1020 = vmatpush2.msra.mxu0 0.0
    %1021 = vmatprep.mubr.f32.mxu0 0.0
    %1022 = vmatmul.mubr.f32.gmra.mxu0 %v806
    %v1023 = vpop.f32.mrf.mxu0
    %v1024 = vadd.f32 0.0, %v1023
    %v1025 = vpop.f32.mrf.mxu0
    %v1026 = vadd.f32 0.0, %v1025
    %1027 = vdwg.mxu0
    %v1032 = vcombine.low %v953, %v955
    %v1033 = vcombine.low %v1024, %v1026
    %v1035 = vunpack.c.l.s4 1966171168
    %v1036 = vunpack.c.0.s8 %v1035
    %v1037 = vlaneseq
    %v1038 = vshrl.u32 %v1037, 7
    %v1039 = vsub.s32 %v1036, %v1038
    %v1040 = vrot.slane %v1032, %v1039
    %v1042 = vunpack.c.l.s4 1966171168
    %v1043 = vunpack.c.0.s8 %v1042
    %v1044 = vlaneseq
    %v1045 = vshrl.u32 %v1044, 7
    %v1046 = vsub.s32 %v1043, %v1045
    %v1047 = vrot.slane %v1033, %v1046
    %v1048 = vcombine.low %v1040, %v1047
    %v1050 = vunpack.c.l.s4 1966171168
    %v1051 = vunpack.c.0.s8 %v1050
    %v1052 = vlaneseq
    %v1053 = vshrl.u32 %v1052, 7
    %v1054 = vsub.s32 %v1051, %v1053
    %v1055 = vrot.slane %v1048, %v1054
    %v1057 = vadd.f32 %v821, %v1055
    %v1058 = vxor.u32 %v1057, 2147483648
    %v1059 = vmul.f32 %v1058, 1.442695
    %v1060 = vpow.pop %v1059
    %v1061 = vadd.f32 %v1060, 1.0
    %v1062 = vrcp.pop %v1061
    %v1063 = vmul.f32 1.0, %v1062
    %v1065 = vrot.slane %v1057, 1
    %v1067 = vxor.u32 %v1065, 2147483648
    %v1068 = vmul.f32 %v1067, 1.442695
    %v1069 = vpow.pop %v1068
    %v1070 = vadd.f32 %v1069, 1.0
    %v1071 = vrcp.pop %v1070
    %v1072 = vmul.f32 1.0, %v1071
    %v1073 = vrot.slane %v1057, 2
    %v1075 = vtanh.pop %v1073
    %v1076 = vrot.slane %v1057, 3
    %v1078 = vxor.u32 %v1076, 2147483648
    %v1079 = vmul.f32 %v1078, 1.442695
    %v1080 = vpow.pop %v1079
    %v1081 = vadd.f32 %v1080, 1.0
    %v1082 = vrcp.pop %v1081
    %v1083 = vmul.f32 1.0, %v1082
    %v1084 = vmul.f32 %v1072, %v804
    %v1085 = vmul.f32 %v1063, %v1075
    %v1086 = vadd.f32 %v1084, %v1085
    %v1087 = vtanh.pop %v1086
    %v1088 = vmul.f32 %v1083, %v1087
    %v1089 = vpack.c.bf16 %v1088, %v1088
    %v1091 = vunpack.c.l.b16 %v1089
    %v1092 = vpack.c.b16 %v1091, %v1091
    %v1093 = vrot.slane %v1092, 7
    %vm1095 = vcmask 1041409
    %vm1096 = vsmask.f32 1280
    %vm1097 = vmand %vm1095, %vm1096
    %v1098 = vld [vmem:[#allocation3] sm:$0x2]
    %v1099 = vsel %vm1097, %v1093, %v1098
    %1100 = vst [vmem:[#allocation3] sm:$0x2] %v1099
    %s1101 = scalar_lea.vmem [#allocation2], 3
    %v1102 = vld [vmem:[%s1101] ss:$8 sm:$0xf]
    %v1103 = vld [vmem:[%s2] sm:$0xff]
    %v1104 = vld [vmem:[%s2 + $0x8] sm:$0xff]
    %v1105 = vld [vmem:[%s2 + $0x10] sm:$0xff]
    %v1106 = vld [vmem:[%s2 + $0x18] sm:$0xff]
    %v1107 = vld [vmem:[%s2 + $0x20] sm:$0xff]
    %v1108 = vld [vmem:[%s2 + $0x28] sm:$0xff]
    %v1109 = vld [vmem:[%s2 + $0x30] sm:$0xff]
    %v1110 = vld [vmem:[%s2 + $0x38] sm:$0xff]
    %v1111 = vld [vmem:[%s2 + $0x40] sm:$0xff]
    %v1112 = vld [vmem:[%s2 + $0x48] sm:$0xff]
    %v1113 = vld [vmem:[%s2 + $0x50] sm:$0xff]
    %v1114 = vld [vmem:[%s2 + $0x58] sm:$0xff]
    %v1115 = vld [vmem:[%s2 + $0x60] sm:$0xff]
    %v1116 = vld [vmem:[%s2 + $0x68] sm:$0xff]
    %v1117 = vld [vmem:[%s2 + $0x70] sm:$0xff]
    %v1118 = vld [vmem:[%s2 + $0x78] sm:$0xff]
    %v1119 = vld [vmem:[%s2 + $0x80] sm:$0xff]
    %v1120 = vld [vmem:[%s2 + $0x88] sm:$0xff]
    %v1121 = vld [vmem:[%s2 + $0x90] sm:$0xff]
    %v1122 = vld [vmem:[%s2 + $0x98] sm:$0xff]
    %v1123 = vld [vmem:[%s2 + $0xa0] sm:$0xff]
    %v1124 = vld [vmem:[%s2 + $0xa8] sm:$0xff]
    %v1125 = vld [vmem:[%s2 + $0xb0] sm:$0xff]
    %v1126 = vld [vmem:[%s2 + $0xb8] sm:$0xff]
    %v1127 = vld [vmem:[%s2 + $0xc0] sm:$0xff]
    %v1128 = vld [vmem:[%s2 + $0xc8] sm:$0xff]
    %v1129 = vld [vmem:[%s2 + $0xd0] sm:$0xff]
    %v1130 = vld [vmem:[%s2 + $0xd8] sm:$0xff]
    %v1131 = vld [vmem:[%s2 + $0xe0] sm:$0xff]
    %v1132 = vld [vmem:[%s2 + $0xe8] sm:$0xff]
    %v1133 = vld [vmem:[%s2 + $0xf0] sm:$0xff]
    %v1134 = vld [vmem:[%s2 + $0xf8] sm:$0xff]
    %v1135 = vld [vmem:[%s2 + $0x100] sm:$0xff]
    %v1136 = vld [vmem:[%s2 + $0x108] sm:$0xff]
    %v1137 = vld [vmem:[%s2 + $0x110] sm:$0xff]
    %v1138 = vld [vmem:[%s2 + $0x118] sm:$0xff]
    %v1139 = vld [vmem:[%s2 + $0x120] sm:$0xff]
    %v1140 = vld [vmem:[%s2 + $0x128] sm:$0xff]
    %v1141 = vld [vmem:[%s2 + $0x130] sm:$0xff]
    %v1142 = vld [vmem:[%s2 + $0x138] sm:$0xff]
    %v1143 = vld [vmem:[%s2 + $0x140] sm:$0xff]
    %v1144 = vld [vmem:[%s2 + $0x148] sm:$0xff]
    %v1145 = vld [vmem:[%s2 + $0x150] sm:$0xff]
    %v1146 = vld [vmem:[%s2 + $0x158] sm:$0xff]
    %v1147 = vld [vmem:[%s2 + $0x160] sm:$0xff]
    %v1148 = vld [vmem:[%s2 + $0x168] sm:$0xff]
    %v1149 = vld [vmem:[%s2 + $0x170] sm:$0xff]
    %v1150 = vld [vmem:[%s2 + $0x178] sm:$0xff]
    %v1151 = vld [vmem:[%s2 + $0x180] sm:$0xff]
    %v1152 = vld [vmem:[%s2 + $0x188] sm:$0xff]
    %v1153 = vld [vmem:[%s2 + $0x190] sm:$0xff]
    %v1154 = vld [vmem:[%s2 + $0x198] sm:$0xff]
    %v1155 = vld [vmem:[%s2 + $0x1a0] sm:$0xff]
    %v1156 = vld [vmem:[%s2 + $0x1a8] sm:$0xff]
    %v1157 = vld [vmem:[%s2 + $0x1b0] sm:$0xff]
    %v1158 = vld [vmem:[%s2 + $0x1b8] sm:$0xff]
    %v1159 = vld [vmem:[%s2 + $0x1c0] sm:$0xff]
    %v1160 = vld [vmem:[%s2 + $0x1c8] sm:$0xff]
    %v1161 = vld [vmem:[%s2 + $0x1d0] sm:$0xff]
    %v1162 = vld [vmem:[%s2 + $0x1d8] sm:$0xff]
    %v1163 = vld [vmem:[%s2 + $0x1e0] sm:$0xff]
    %v1164 = vld [vmem:[%s2 + $0x1e8] sm:$0xff]
    %v1165 = vld [vmem:[%s2 + $0x1f0] sm:$0xff]
    %v1166 = vld [vmem:[%s2 + $0x1f8] sm:$0xff]
    %1167 = vmatprep.subr.mxu0 %v1164
    %1168 = vmatpush1.msra.mxu0 %v1163
    %1169 = vmatprep.subr.mxu0 %v1160
    %1170 = vmatpush1.msra.mxu0 %v1159
    %1171 = vmatprep.subr.mxu0 %v1156
    %1172 = vmatpush1.msra.mxu0 %v1155
    %1173 = vmatprep.subr.mxu0 %v1152
    %1174 = vmatpush1.msra.mxu0 %v1151
    %1175 = vmatprep.subr.mxu0 %v1148
    %1176 = vmatpush1.msra.mxu0 %v1147
    %1177 = vmatprep.subr.mxu0 %v1144
    %1178 = vmatpush1.msra.mxu0 %v1143
    %1179 = vmatprep.subr.mxu0 %v1140
    %1180 = vmatpush1.msra.mxu0 %v1139
    %1181 = vmatprep.subr.mxu0 %v1136
    %1182 = vmatpush1.msra.mxu0 %v1135
    %1183 = vmatprep.subr.mxu0 %v1132
    %1184 = vmatpush1.msra.mxu0 %v1131
    %1185 = vmatprep.subr.mxu0 %v1128
    %1186 = vmatpush1.msra.mxu0 %v1127
    %1187 = vmatprep.subr.mxu0 %v1124
    %1188 = vmatpush1.msra.mxu0 %v1123
    %1189 = vmatprep.subr.mxu0 %v1120
    %1190 = vmatpush1.msra.mxu0 %v1119
    %1191 = vmatprep.subr.mxu0 %v1116
    %1192 = vmatpush1.msra.mxu0 %v1115
    %1193 = vmatprep.subr.mxu0 %v1112
    %1194 = vmatpush1.msra.mxu0 %v1111
    %1195 = vmatprep.subr.mxu0 %v1108
    %1196 = vmatpush1.msra.mxu0 %v1107
    %1197 = vmatprep.subr.mxu0 %v1104
    %1198 = vmatpush1.msra.mxu0 %v1103
    %1199 = vmatprep.subr.mxu0 0.0
    %1200 = vmatpush2.msra.mxu0 0.0
    %1201 = vmatprep.subr.mxu0 0.0
    %1202 = vmatpush2.msra.mxu0 0.0
    %1203 = vmatprep.subr.mxu0 0.0
    %1204 = vmatpush2.msra.mxu0 0.0
    %1205 = vmatprep.subr.mxu0 0.0
    %1206 = vmatpush2.msra.mxu0 0.0
    %1207 = vmatprep.subr.mxu0 0.0
    %1208 = vmatpush2.msra.mxu0 0.0
    %1209 = vmatprep.subr.mxu0 0.0
    %1210 = vmatpush2.msra.mxu0 0.0
    %1211 = vmatprep.subr.mxu0 0.0
    %1212 = vmatpush2.msra.mxu0 0.0
    %1213 = vmatprep.subr.mxu0 0.0
    %1214 = vmatpush2.msra.mxu0 0.0
    %1215 = vmatprep.subr.mxu0 0.0
    %1216 = vmatpush2.msra.mxu0 0.0
    %1217 = vmatprep.subr.mxu0 0.0
    %1218 = vmatpush2.msra.mxu0 0.0
    %1219 = vmatprep.subr.mxu0 0.0
    %1220 = vmatpush2.msra.mxu0 0.0
    %1221 = vmatprep.subr.mxu0 0.0
    %1222 = vmatpush2.msra.mxu0 0.0
    %1223 = vmatprep.subr.mxu0 0.0
    %1224 = vmatpush2.msra.mxu0 0.0
    %1225 = vmatprep.subr.mxu0 0.0
    %1226 = vmatpush2.msra.mxu0 0.0
    %1227 = vmatprep.subr.mxu0 0.0
    %1228 = vmatpush2.msra.mxu0 0.0
    %1229 = vmatprep.subr.mxu0 0.0
    %1230 = vmatpush2.msra.mxu0 0.0
    %1231 = vmatprep.mubr.f32.mxu0 0.0
    %1232 = vmatmul.mubr.f32.gmra.mxu0 %v1088
    %v1233 = vpop.f32.mrf.mxu0
    %v1234 = vadd.f32 0.0, %v1233
    %v1235 = vpop.f32.mrf.mxu0
    %v1236 = vadd.f32 0.0, %v1235
    %1237 = vdwg.mxu0
    %1238 = vmatprep.subr.mxu0 %v1166
    %1239 = vmatpush1.msra.mxu0 %v1165
    %1240 = vmatprep.subr.mxu0 %v1162
    %1241 = vmatpush1.msra.mxu0 %v1161
    %1242 = vmatprep.subr.mxu0 %v1158
    %1243 = vmatpush1.msra.mxu0 %v1157
    %1244 = vmatprep.subr.mxu0 %v1154
    %1245 = vmatpush1.msra.mxu0 %v1153
    %1246 = vmatprep.subr.mxu0 %v1150
    %1247 = vmatpush1.msra.mxu0 %v1149
    %1248 = vmatprep.subr.mxu0 %v1146
    %1249 = vmatpush1.msra.mxu0 %v1145
    %1250 = vmatprep.subr.mxu0 %v1142
    %1251 = vmatpush1.msra.mxu0 %v1141
    %1252 = vmatprep.subr.mxu0 %v1138
    %1253 = vmatpush1.msra.mxu0 %v1137
    %1254 = vmatprep.subr.mxu0 %v1134
    %1255 = vmatpush1.msra.mxu0 %v1133
    %1256 = vmatprep.subr.mxu0 %v1130
    %1257 = vmatpush1.msra.mxu0 %v1129
    %1258 = vmatprep.subr.mxu0 %v1126
    %1259 = vmatpush1.msra.mxu0 %v1125
    %1260 = vmatprep.subr.mxu0 %v1122
    %1261 = vmatpush1.msra.mxu0 %v1121
    %1262 = vmatprep.subr.mxu0 %v1118
    %1263 = vmatpush1.msra.mxu0 %v1117
    %1264 = vmatprep.subr.mxu0 %v1114
    %1265 = vmatpush1.msra.mxu0 %v1113
    %1266 = vmatprep.subr.mxu0 %v1110
    %1267 = vmatpush1.msra.mxu0 %v1109
    %1268 = vmatprep.subr.mxu0 %v1106
    %1269 = vmatpush1.msra.mxu0 %v1105
    %1270 = vmatprep.subr.mxu0 0.0
    %1271 = vmatpush2.msra.mxu0 0.0
    %1272 = vmatprep.subr.mxu0 0.0
    %1273 = vmatpush2.msra.mxu0 0.0
    %1274 = vmatprep.subr.mxu0 0.0
    %1275 = vmatpush2.msra.mxu0 0.0
    %1276 = vmatprep.subr.mxu0 0.0
    %1277 = vmatpush2.msra.mxu0 0.0
    %1278 = vmatprep.subr.mxu0 0.0
    %1279 = vmatpush2.msra.mxu0 0.0
    %1280 = vmatprep.subr.mxu0 0.0
    %1281 = vmatpush2.msra.mxu0 0.0
    %1282 = vmatprep.subr.mxu0 0.0
    %1283 = vmatpush2.msra.mxu0 0.0
    %1284 = vmatprep.subr.mxu0 0.0
    %1285 = vmatpush2.msra.mxu0 0.0
    %1286 = vmatprep.subr.mxu0 0.0
    %1287 = vmatpush2.msra.mxu0 0.0
    %1288 = vmatprep.subr.mxu0 0.0
    %1289 = vmatpush2.msra.mxu0 0.0
    %1290 = vmatprep.subr.mxu0 0.0
    %1291 = vmatpush2.msra.mxu0 0.0
    %1292 = vmatprep.subr.mxu0 0.0
    %1293 = vmatpush2.msra.mxu0 0.0
    %1294 = vmatprep.subr.mxu0 0.0
    %1295 = vmatpush2.msra.mxu0 0.0
    %1296 = vmatprep.subr.mxu0 0.0
    %1297 = vmatpush2.msra.mxu0 0.0
    %1298 = vmatprep.subr.mxu0 0.0
    %1299 = vmatpush2.msra.mxu0 0.0
    %1300 = vmatprep.subr.mxu0 0.0
    %1301 = vmatpush2.msra.mxu0 0.0
    %1302 = vmatprep.mubr.f32.mxu0 0.0
    %1303 = vmatmul.mubr.f32.gmra.mxu0 %v1088
    %v1304 = vpop.f32.mrf.mxu0
    %v1305 = vadd.f32 0.0, %v1304
    %v1306 = vpop.f32.mrf.mxu0
    %v1307 = vadd.f32 0.0, %v1306
    %1308 = vdwg.mxu0
    %v1313 = vcombine.low %v1234, %v1236
    %v1314 = vcombine.low %v1305, %v1307
    %v1316 = vunpack.c.l.s4 1966171168
    %v1317 = vunpack.c.0.s8 %v1316
    %v1318 = vlaneseq
    %v1319 = vshrl.u32 %v1318, 7
    %v1320 = vsub.s32 %v1317, %v1319
    %v1321 = vrot.slane %v1313, %v1320
    %v1323 = vunpack.c.l.s4 1966171168
    %v1324 = vunpack.c.0.s8 %v1323
    %v1325 = vlaneseq
    %v1326 = vshrl.u32 %v1325, 7
    %v1327 = vsub.s32 %v1324, %v1326
    %v1328 = vrot.slane %v1314, %v1327
    %v1329 = vcombine.low %v1321, %v1328
    %v1331 = vunpack.c.l.s4 1966171168
    %v1332 = vunpack.c.0.s8 %v1331
    %v1333 = vlaneseq
    %v1334 = vshrl.u32 %v1333, 7
    %v1335 = vsub.s32 %v1332, %v1334
    %v1336 = vrot.slane %v1329, %v1335
    %v1338 = vadd.f32 %v1102, %v1336
    %v1339 = vxor.u32 %v1338, 2147483648
    %v1340 = vmul.f32 %v1339, 1.442695
    %v1341 = vpow.pop %v1340
    %v1342 = vadd.f32 %v1341, 1.0
    %v1343 = vrcp.pop %v1342
    %v1344 = vmul.f32 1.0, %v1343
    %v1346 = vrot.slane %v1338, 1
    %v1348 = vxor.u32 %v1346, 2147483648
    %v1349 = vmul.f32 %v1348, 1.442695
    %v1350 = vpow.pop %v1349
    %v1351 = vadd.f32 %v1350, 1.0
    %v1352 = vrcp.pop %v1351
    %v1353 = vmul.f32 1.0, %v1352
    %v1354 = vrot.slane %v1338, 2
    %v1356 = vtanh.pop %v1354
    %v1357 = vrot.slane %v1338, 3
    %v1359 = vxor.u32 %v1357, 2147483648
    %v1360 = vmul.f32 %v1359, 1.442695
    %v1361 = vpow.pop %v1360
    %v1362 = vadd.f32 %v1361, 1.0
    %v1363 = vrcp.pop %v1362
    %v1364 = vmul.f32 1.0, %v1363
    %v1365 = vmul.f32 %v1353, %v1086
    %v1366 = vmul.f32 %v1344, %v1356
    %v1367 = vadd.f32 %v1365, %v1366
    %v1368 = vtanh.pop %v1367
    %v1369 = vmul.f32 %v1364, %v1368
    %v1370 = vpack.c.bf16 %v1369, %v1369
    %v1372 = vunpack.c.l.b16 %v1370
    %v1373 = vpack.c.b16 %v1372, %v1372
    %v1375 = vshll.u32 %v1373, 16
    %v1377 = vrot.slane %v1375, 7
    %vm1379 = vsmask.f32 7942
    %vm1380 = vmand %vm1095, %vm1379
    %v1381 = vld [vmem:[#allocation3] sm:$0x2]
    %v1382 = vsel %vm1380, %v1377, %v1381
    %1383 = vst [vmem:[#allocation3] sm:$0x2] %v1382
    %s1384 = scalar_lea.vmem [#allocation2], 4
    %v1385 = vld [vmem:[%s1384] ss:$8 sm:$0xf]
    %v1386 = vld [vmem:[%s2] sm:$0xff]
    %v1387 = vld [vmem:[%s2 + $0x8] sm:$0xff]
    %v1388 = vld [vmem:[%s2 + $0x10] sm:$0xff]
    %v1389 = vld [vmem:[%s2 + $0x18] sm:$0xff]
    %v1390 = vld [vmem:[%s2 + $0x20] sm:$0xff]
    %v1391 = vld [vmem:[%s2 + $0x28] sm:$0xff]
    %v1392 = vld [vmem:[%s2 + $0x30] sm:$0xff]
    %v1393 = vld [vmem:[%s2 + $0x38] sm:$0xff]
    %v1394 = vld [vmem:[%s2 + $0x40] sm:$0xff]
    %v1395 = vld [vmem:[%s2 + $0x48] sm:$0xff]
    %v1396 = vld [vmem:[%s2 + $0x50] sm:$0xff]
    %v1397 = vld [vmem:[%s2 + $0x58] sm:$0xff]
    %v1398 = vld [vmem:[%s2 + $0x60] sm:$0xff]
    %v1399 = vld [vmem:[%s2 + $0x68] sm:$0xff]
    %v1400 = vld [vmem:[%s2 + $0x70] sm:$0xff]
    %v1401 = vld [vmem:[%s2 + $0x78] sm:$0xff]
    %v1402 = vld [vmem:[%s2 + $0x80] sm:$0xff]
    %v1403 = vld [vmem:[%s2 + $0x88] sm:$0xff]
    %v1404 = vld [vmem:[%s2 + $0x90] sm:$0xff]
    %v1405 = vld [vmem:[%s2 + $0x98] sm:$0xff]
    %v1406 = vld [vmem:[%s2 + $0xa0] sm:$0xff]
    %v1407 = vld [vmem:[%s2 + $0xa8] sm:$0xff]
    %v1408 = vld [vmem:[%s2 + $0xb0] sm:$0xff]
    %v1409 = vld [vmem:[%s2 + $0xb8] sm:$0xff]
    %v1410 = vld [vmem:[%s2 + $0xc0] sm:$0xff]
    %v1411 = vld [vmem:[%s2 + $0xc8] sm:$0xff]
    %v1412 = vld [vmem:[%s2 + $0xd0] sm:$0xff]
    %v1413 = vld [vmem:[%s2 + $0xd8] sm:$0xff]
    %v1414 = vld [vmem:[%s2 + $0xe0] sm:$0xff]
    %v1415 = vld [vmem:[%s2 + $0xe8] sm:$0xff]
    %v1416 = vld [vmem:[%s2 + $0xf0] sm:$0xff]
    %v1417 = vld [vmem:[%s2 + $0xf8] sm:$0xff]
    %v1418 = vld [vmem:[%s2 + $0x100] sm:$0xff]
    %v1419 = vld [vmem:[%s2 + $0x108] sm:$0xff]
    %v1420 = vld [vmem:[%s2 + $0x110] sm:$0xff]
    %v1421 = vld [vmem:[%s2 + $0x118] sm:$0xff]
    %v1422 = vld [vmem:[%s2 + $0x120] sm:$0xff]
    %v1423 = vld [vmem:[%s2 + $0x128] sm:$0xff]
    %v1424 = vld [vmem:[%s2 + $0x130] sm:$0xff]
    %v1425 = vld [vmem:[%s2 + $0x138] sm:$0xff]
    %v1426 = vld [vmem:[%s2 + $0x140] sm:$0xff]
    %v1427 = vld [vmem:[%s2 + $0x148] sm:$0xff]
    %v1428 = vld [vmem:[%s2 + $0x150] sm:$0xff]
    %v1429 = vld [vmem:[%s2 + $0x158] sm:$0xff]
    %v1430 = vld [vmem:[%s2 + $0x160] sm:$0xff]
    %v1431 = vld [vmem:[%s2 + $0x168] sm:$0xff]
    %v1432 = vld [vmem:[%s2 + $0x170] sm:$0xff]
    %v1433 = vld [vmem:[%s2 + $0x178] sm:$0xff]
    %v1434 = vld [vmem:[%s2 + $0x180] sm:$0xff]
    %v1435 = vld [vmem:[%s2 + $0x188] sm:$0xff]
    %v1436 = vld [vmem:[%s2 + $0x190] sm:$0xff]
    %v1437 = vld [vmem:[%s2 + $0x198] sm:$0xff]
    %v1438 = vld [vmem:[%s2 + $0x1a0] sm:$0xff]
    %v1439 = vld [vmem:[%s2 + $0x1a8] sm:$0xff]
    %v1440 = vld [vmem:[%s2 + $0x1b0] sm:$0xff]
    %v1441 = vld [vmem:[%s2 + $0x1b8] sm:$0xff]
    %v1442 = vld [vmem:[%s2 + $0x1c0] sm:$0xff]
    %v1443 = vld [vmem:[%s2 + $0x1c8] sm:$0xff]
    %v1444 = vld [vmem:[%s2 + $0x1d0] sm:$0xff]
    %v1445 = vld [vmem:[%s2 + $0x1d8] sm:$0xff]
    %v1446 = vld [vmem:[%s2 + $0x1e0] sm:$0xff]
    %v1447 = vld [vmem:[%s2 + $0x1e8] sm:$0xff]
    %v1448 = vld [vmem:[%s2 + $0x1f0] sm:$0xff]
    %v1449 = vld [vmem:[%s2 + $0x1f8] sm:$0xff]
    %1450 = vmatprep.subr.mxu0 %v1447
    %1451 = vmatpush1.msra.mxu0 %v1446
    %1452 = vmatprep.subr.mxu0 %v1443
    %1453 = vmatpush1.msra.mxu0 %v1442
    %1454 = vmatprep.subr.mxu0 %v1439
    %1455 = vmatpush1.msra.mxu0 %v1438
    %1456 = vmatprep.subr.mxu0 %v1435
    %1457 = vmatpush1.msra.mxu0 %v1434
    %1458 = vmatprep.subr.mxu0 %v1431
    %1459 = vmatpush1.msra.mxu0 %v1430
    %1460 = vmatprep.subr.mxu0 %v1427
    %1461 = vmatpush1.msra.mxu0 %v1426
    %1462 = vmatprep.subr.mxu0 %v1423
    %1463 = vmatpush1.msra.mxu0 %v1422
    %1464 = vmatprep.subr.mxu0 %v1419
    %1465 = vmatpush1.msra.mxu0 %v1418
    %1466 = vmatprep.subr.mxu0 %v1415
    %1467 = vmatpush1.msra.mxu0 %v1414
    %1468 = vmatprep.subr.mxu0 %v1411
    %1469 = vmatpush1.msra.mxu0 %v1410
    %1470 = vmatprep.subr.mxu0 %v1407
    %1471 = vmatpush1.msra.mxu0 %v1406
    %1472 = vmatprep.subr.mxu0 %v1403
    %1473 = vmatpush1.msra.mxu0 %v1402
    %1474 = vmatprep.subr.mxu0 %v1399
    %1475 = vmatpush1.msra.mxu0 %v1398
    %1476 = vmatprep.subr.mxu0 %v1395
    %1477 = vmatpush1.msra.mxu0 %v1394
    %1478 = vmatprep.subr.mxu0 %v1391
    %1479 = vmatpush1.msra.mxu0 %v1390
    %1480 = vmatprep.subr.mxu0 %v1387
    %1481 = vmatpush1.msra.mxu0 %v1386
    %1482 = vmatprep.subr.mxu0 0.0
    %1483 = vmatpush2.msra.mxu0 0.0
    %1484 = vmatprep.subr.mxu0 0.0
    %1485 = vmatpush2.msra.mxu0 0.0
    %1486 = vmatprep.subr.mxu0 0.0
    %1487 = vmatpush2.msra.mxu0 0.0
    %1488 = vmatprep.subr.mxu0 0.0
    %1489 = vmatpush2.msra.mxu0 0.0
    %1490 = vmatprep.subr.mxu0 0.0
    %1491 = vmatpush2.msra.mxu0 0.0
    %1492 = vmatprep.subr.mxu0 0.0
    %1493 = vmatpush2.msra.mxu0 0.0
    %1494 = vmatprep.subr.mxu0 0.0
    %1495 = vmatpush2.msra.mxu0 0.0
    %1496 = vmatprep.subr.mxu0 0.0
    %1497 = vmatpush2.msra.mxu0 0.0
    %1498 = vmatprep.subr.mxu0 0.0
    %1499 = vmatpush2.msra.mxu0 0.0
    %1500 = vmatprep.subr.mxu0 0.0
    %1501 = vmatpush2.msra.mxu0 0.0
    %1502 = vmatprep.subr.mxu0 0.0
    %1503 = vmatpush2.msra.mxu0 0.0
    %1504 = vmatprep.subr.mxu0 0.0
    %1505 = vmatpush2.msra.mxu0 0.0
    %1506 = vmatprep.subr.mxu0 0.0
    %1507 = vmatpush2.msra.mxu0 0.0
    %1508 = vmatprep.subr.mxu0 0.0
    %1509 = vmatpush2.msra.mxu0 0.0
    %1510 = vmatprep.subr.mxu0 0.0
    %1511 = vmatpush2.msra.mxu0 0.0
    %1512 = vmatprep.subr.mxu0 0.0
    %1513 = vmatpush2.msra.mxu0 0.0
    %1514 = vmatprep.mubr.f32.mxu0 0.0
    %1515 = vmatmul.mubr.f32.gmra.mxu0 %v1369
    %v1516 = vpop.f32.mrf.mxu0
    %v1517 = vadd.f32 0.0, %v1516
    %v1518 = vpop.f32.mrf.mxu0
    %v1519 = vadd.f32 0.0, %v1518
    %1520 = vdwg.mxu0
    %1521 = vmatprep.subr.mxu0 %v1449
    %1522 = vmatpush1.msra.mxu0 %v1448
    %1523 = vmatprep.subr.mxu0 %v1445
    %1524 = vmatpush1.msra.mxu0 %v1444
    %1525 = vmatprep.subr.mxu0 %v1441
    %1526 = vmatpush1.msra.mxu0 %v1440
    %1527 = vmatprep.subr.mxu0 %v1437
    %1528 = vmatpush1.msra.mxu0 %v1436
    %1529 = vmatprep.subr.mxu0 %v1433
    %1530 = vmatpush1.msra.mxu0 %v1432
    %1531 = vmatprep.subr.mxu0 %v1429
    %1532 = vmatpush1.msra.mxu0 %v1428
    %1533 = vmatprep.subr.mxu0 %v1425
    %1534 = vmatpush1.msra.mxu0 %v1424
    %1535 = vmatprep.subr.mxu0 %v1421
    %1536 = vmatpush1.msra.mxu0 %v1420
    %1537 = vmatprep.subr.mxu0 %v1417
    %1538 = vmatpush1.msra.mxu0 %v1416
    %1539 = vmatprep.subr.mxu0 %v1413
    %1540 = vmatpush1.msra.mxu0 %v1412
    %1541 = vmatprep.subr.mxu0 %v1409
    %1542 = vmatpush1.msra.mxu0 %v1408
    %1543 = vmatprep.subr.mxu0 %v1405
    %1544 = vmatpush1.msra.mxu0 %v1404
    %1545 = vmatprep.subr.mxu0 %v1401
    %1546 = vmatpush1.msra.mxu0 %v1400
    %1547 = vmatprep.subr.mxu0 %v1397
    %1548 = vmatpush1.msra.mxu0 %v1396
    %1549 = vmatprep.subr.mxu0 %v1393
    %1550 = vmatpush1.msra.mxu0 %v1392
    %1551 = vmatprep.subr.mxu0 %v1389
    %1552 = vmatpush1.msra.mxu0 %v1388
    %1553 = vmatprep.subr.mxu0 0.0
    %1554 = vmatpush2.msra.mxu0 0.0
    %1555 = vmatprep.subr.mxu0 0.0
    %1556 = vmatpush2.msra.mxu0 0.0
    %1557 = vmatprep.subr.mxu0 0.0
    %1558 = vmatpush2.msra.mxu0 0.0
    %1559 = vmatprep.subr.mxu0 0.0
    %1560 = vmatpush2.msra.mxu0 0.0
    %1561 = vmatprep.subr.mxu0 0.0
    %1562 = vmatpush2.msra.mxu0 0.0
    %1563 = vmatprep.subr.mxu0 0.0
    %1564 = vmatpush2.msra.mxu0 0.0
    %1565 = vmatprep.subr.mxu0 0.0
    %1566 = vmatpush2.msra.mxu0 0.0
    %1567 = vmatprep.subr.mxu0 0.0
    %1568 = vmatpush2.msra.mxu0 0.0
    %1569 = vmatprep.subr.mxu0 0.0
    %1570 = vmatpush2.msra.mxu0 0.0
    %1571 = vmatprep.subr.mxu0 0.0
    %1572 = vmatpush2.msra.mxu0 0.0
    %1573 = vmatprep.subr.mxu0 0.0
    %1574 = vmatpush2.msra.mxu0 0.0
    %1575 = vmatprep.subr.mxu0 0.0
    %1576 = vmatpush2.msra.mxu0 0.0
    %1577 = vmatprep.subr.mxu0 0.0
    %1578 = vmatpush2.msra.mxu0 0.0
    %1579 = vmatprep.subr.mxu0 0.0
    %1580 = vmatpush2.msra.mxu0 0.0
    %1581 = vmatprep.subr.mxu0 0.0
    %1582 = vmatpush2.msra.mxu0 0.0
    %1583 = vmatprep.subr.mxu0 0.0
    %1584 = vmatpush2.msra.mxu0 0.0
    %1585 = vmatprep.mubr.f32.mxu0 0.0
    %1586 = vmatmul.mubr.f32.gmra.mxu0 %v1369
    %v1587 = vpop.f32.mrf.mxu0
    %v1588 = vadd.f32 0.0, %v1587
    %v1589 = vpop.f32.mrf.mxu0
    %v1590 = vadd.f32 0.0, %v1589
    %1591 = vdwg.mxu0
    %v1596 = vcombine.low %v1517, %v1519
    %v1597 = vcombine.low %v1588, %v1590
    %v1599 = vunpack.c.l.s4 1966171168
    %v1600 = vunpack.c.0.s8 %v1599
    %v1601 = vlaneseq
    %v1602 = vshrl.u32 %v1601, 7
    %v1603 = vsub.s32 %v1600, %v1602
    %v1604 = vrot.slane %v1596, %v1603
    %v1606 = vunpack.c.l.s4 1966171168
    %v1607 = vunpack.c.0.s8 %v1606
    %v1608 = vlaneseq
    %v1609 = vshrl.u32 %v1608, 7
    %v1610 = vsub.s32 %v1607, %v1609
    %v1611 = vrot.slane %v1597, %v1610
    %v1612 = vcombine.low %v1604, %v1611
    %v1614 = vunpack.c.l.s4 1966171168
    %v1615 = vunpack.c.0.s8 %v1614
    %v1616 = vlaneseq
    %v1617 = vshrl.u32 %v1616, 7
    %v1618 = vsub.s32 %v1615, %v1617
    %v1619 = vrot.slane %v1612, %v1618
    %v1621 = vadd.f32 %v1385, %v1619
    %v1622 = vxor.u32 %v1621, 2147483648
    %v1623 = vmul.f32 %v1622, 1.442695
    %v1624 = vpow.pop %v1623
    %v1625 = vadd.f32 %v1624, 1.0
    %v1626 = vrcp.pop %v1625
    %v1627 = vmul.f32 1.0, %v1626
    %v1629 = vrot.slane %v1621, 1
    %v1631 = vxor.u32 %v1629, 2147483648
    %v1632 = vmul.f32 %v1631, 1.442695
    %v1633 = vpow.pop %v1632
    %v1634 = vadd.f32 %v1633, 1.0
    %v1635 = vrcp.pop %v1634
    %v1636 = vmul.f32 1.0, %v1635
    %v1637 = vrot.slane %v1621, 2
    %v1639 = vtanh.pop %v1637
    %v1640 = vrot.slane %v1621, 3
    %v1642 = vxor.u32 %v1640, 2147483648
    %v1643 = vmul.f32 %v1642, 1.442695
    %v1644 = vpow.pop %v1643
    %v1645 = vadd.f32 %v1644, 1.0
    %v1646 = vrcp.pop %v1645
    %v1647 = vmul.f32 1.0, %v1646
    %v1648 = vmul.f32 %v1636, %v1367
    %v1649 = vmul.f32 %v1627, %v1639
    %v1650 = vadd.f32 %v1648, %v1649
    %v1651 = vtanh.pop %v1650
    %v1652 = vmul.f32 %v1647, %v1651
    %v1653 = vpack.c.bf16 %v1652, %v1652
    %v1655 = vunpack.c.l.b16 %v1653
    %v1656 = vpack.c.b16 %v1655, %v1655
    %v1657 = vrot.slane %v1656, 6
    %vm1659 = vcmask 1042434
    %vm1660 = vsmask.f32 2304
    %vm1661 = vmand %vm1659, %vm1660
    %v1662 = vld [vmem:[#allocation3] sm:$0x4]
    %v1663 = vsel %vm1661, %v1657, %v1662
    %1664 = vst [vmem:[#allocation3] sm:$0x4] %v1663
    %s1665 = scalar_lea.vmem [#allocation2], 5
    %v1666 = vld [vmem:[%s1665] ss:$8 sm:$0xf]
    %v1667 = vld [vmem:[%s2] sm:$0xff]
    %v1668 = vld [vmem:[%s2 + $0x8] sm:$0xff]
    %v1669 = vld [vmem:[%s2 + $0x10] sm:$0xff]
    %v1670 = vld [vmem:[%s2 + $0x18] sm:$0xff]
    %v1671 = vld [vmem:[%s2 + $0x20] sm:$0xff]
    %v1672 = vld [vmem:[%s2 + $0x28] sm:$0xff]
    %v1673 = vld [vmem:[%s2 + $0x30] sm:$0xff]
    %v1674 = vld [vmem:[%s2 + $0x38] sm:$0xff]
    %v1675 = vld [vmem:[%s2 + $0x40] sm:$0xff]
    %v1676 = vld [vmem:[%s2 + $0x48] sm:$0xff]
    %v1677 = vld [vmem:[%s2 + $0x50] sm:$0xff]
    %v1678 = vld [vmem:[%s2 + $0x58] sm:$0xff]
    %v1679 = vld [vmem:[%s2 + $0x60] sm:$0xff]
    %v1680 = vld [vmem:[%s2 + $0x68] sm:$0xff]
    %v1681 = vld [vmem:[%s2 + $0x70] sm:$0xff]
    %v1682 = vld [vmem:[%s2 + $0x78] sm:$0xff]
    %v1683 = vld [vmem:[%s2 + $0x80] sm:$0xff]
    %v1684 = vld [vmem:[%s2 + $0x88] sm:$0xff]
    %v1685 = vld [vmem:[%s2 + $0x90] sm:$0xff]
    %v1686 = vld [vmem:[%s2 + $0x98] sm:$0xff]
    %v1687 = vld [vmem:[%s2 + $0xa0] sm:$0xff]
    %v1688 = vld [vmem:[%s2 + $0xa8] sm:$0xff]
    %v1689 = vld [vmem:[%s2 + $0xb0] sm:$0xff]
    %v1690 = vld [vmem:[%s2 + $0xb8] sm:$0xff]
    %v1691 = vld [vmem:[%s2 + $0xc0] sm:$0xff]
    %v1692 = vld [vmem:[%s2 + $0xc8] sm:$0xff]
    %v1693 = vld [vmem:[%s2 + $0xd0] sm:$0xff]
    %v1694 = vld [vmem:[%s2 + $0xd8] sm:$0xff]
    %v1695 = vld [vmem:[%s2 + $0xe0] sm:$0xff]
    %v1696 = vld [vmem:[%s2 + $0xe8] sm:$0xff]
    %v1697 = vld [vmem:[%s2 + $0xf0] sm:$0xff]
    %v1698 = vld [vmem:[%s2 + $0xf8] sm:$0xff]
    %v1699 = vld [vmem:[%s2 + $0x100] sm:$0xff]
    %v1700 = vld [vmem:[%s2 + $0x108] sm:$0xff]
    %v1701 = vld [vmem:[%s2 + $0x110] sm:$0xff]
    %v1702 = vld [vmem:[%s2 + $0x118] sm:$0xff]
    %v1703 = vld [vmem:[%s2 + $0x120] sm:$0xff]
    %v1704 = vld [vmem:[%s2 + $0x128] sm:$0xff]
    %v1705 = vld [vmem:[%s2 + $0x130] sm:$0xff]
    %v1706 = vld [vmem:[%s2 + $0x138] sm:$0xff]
    %v1707 = vld [vmem:[%s2 + $0x140] sm:$0xff]
    %v1708 = vld [vmem:[%s2 + $0x148] sm:$0xff]
    %v1709 = vld [vmem:[%s2 + $0x150] sm:$0xff]
    %v1710 = vld [vmem:[%s2 + $0x158] sm:$0xff]
    %v1711 = vld [vmem:[%s2 + $0x160] sm:$0xff]
    %v1712 = vld [vmem:[%s2 + $0x168] sm:$0xff]
    %v1713 = vld [vmem:[%s2 + $0x170] sm:$0xff]
    %v1714 = vld [vmem:[%s2 + $0x178] sm:$0xff]
    %v1715 = vld [vmem:[%s2 + $0x180] sm:$0xff]
    %v1716 = vld [vmem:[%s2 + $0x188] sm:$0xff]
    %v1717 = vld [vmem:[%s2 + $0x190] sm:$0xff]
    %v1718 = vld [vmem:[%s2 + $0x198] sm:$0xff]
    %v1719 = vld [vmem:[%s2 + $0x1a0] sm:$0xff]
    %v1720 = vld [vmem:[%s2 + $0x1a8] sm:$0xff]
    %v1721 = vld [vmem:[%s2 + $0x1b0] sm:$0xff]
    %v1722 = vld [vmem:[%s2 + $0x1b8] sm:$0xff]
    %v1723 = vld [vmem:[%s2 + $0x1c0] sm:$0xff]
    %v1724 = vld [vmem:[%s2 + $0x1c8] sm:$0xff]
    %v1725 = vld [vmem:[%s2 + $0x1d0] sm:$0xff]
    %v1726 = vld [vmem:[%s2 + $0x1d8] sm:$0xff]
    %v1727 = vld [vmem:[%s2 + $0x1e0] sm:$0xff]
    %v1728 = vld [vmem:[%s2 + $0x1e8] sm:$0xff]
    %v1729 = vld [vmem:[%s2 + $0x1f0] sm:$0xff]
    %v1730 = vld [vmem:[%s2 + $0x1f8] sm:$0xff]
    %1731 = vmatprep.subr.mxu0 %v1728
    %1732 = vmatpush1.msra.mxu0 %v1727
    %1733 = vmatprep.subr.mxu0 %v1724
    %1734 = vmatpush1.msra.mxu0 %v1723
    %1735 = vmatprep.subr.mxu0 %v1720
    %1736 = vmatpush1.msra.mxu0 %v1719
    %1737 = vmatprep.subr.mxu0 %v1716
    %1738 = vmatpush1.msra.mxu0 %v1715
    %1739 = vmatprep.subr.mxu0 %v1712
    %1740 = vmatpush1.msra.mxu0 %v1711
    %1741 = vmatprep.subr.mxu0 %v1708
    %1742 = vmatpush1.msra.mxu0 %v1707
    %1743 = vmatprep.subr.mxu0 %v1704
    %1744 = vmatpush1.msra.mxu0 %v1703
    %1745 = vmatprep.subr.mxu0 %v1700
    %1746 = vmatpush1.msra.mxu0 %v1699
    %1747 = vmatprep.subr.mxu0 %v1696
    %1748 = vmatpush1.msra.mxu0 %v1695
    %1749 = vmatprep.subr.mxu0 %v1692
    %1750 = vmatpush1.msra.mxu0 %v1691
    %1751 = vmatprep.subr.mxu0 %v1688
    %1752 = vmatpush1.msra.mxu0 %v1687
    %1753 = vmatprep.subr.mxu0 %v1684
    %1754 = vmatpush1.msra.mxu0 %v1683
    %1755 = vmatprep.subr.mxu0 %v1680
    %1756 = vmatpush1.msra.mxu0 %v1679
    %1757 = vmatprep.subr.mxu0 %v1676
    %1758 = vmatpush1.msra.mxu0 %v1675
    %1759 = vmatprep.subr.mxu0 %v1672
    %1760 = vmatpush1.msra.mxu0 %v1671
    %1761 = vmatprep.subr.mxu0 %v1668
    %1762 = vmatpush1.msra.mxu0 %v1667
    %1763 = vmatprep.subr.mxu0 0.0
    %1764 = vmatpush2.msra.mxu0 0.0
    %1765 = vmatprep.subr.mxu0 0.0
    %1766 = vmatpush2.msra.mxu0 0.0
    %1767 = vmatprep.subr.mxu0 0.0
    %1768 = vmatpush2.msra.mxu0 0.0
    %1769 = vmatprep.subr.mxu0 0.0
    %1770 = vmatpush2.msra.mxu0 0.0
    %1771 = vmatprep.subr.mxu0 0.0
    %1772 = vmatpush2.msra.mxu0 0.0
    %1773 = vmatprep.subr.mxu0 0.0
    %1774 = vmatpush2.msra.mxu0 0.0
    %1775 = vmatprep.subr.mxu0 0.0
    %1776 = vmatpush2.msra.mxu0 0.0
    %1777 = vmatprep.subr.mxu0 0.0
    %1778 = vmatpush2.msra.mxu0 0.0
    %1779 = vmatprep.subr.mxu0 0.0
    %1780 = vmatpush2.msra.mxu0 0.0
    %1781 = vmatprep.subr.mxu0 0.0
    %1782 = vmatpush2.msra.mxu0 0.0
    %1783 = vmatprep.subr.mxu0 0.0
    %1784 = vmatpush2.msra.mxu0 0.0
    %1785 = vmatprep.subr.mxu0 0.0
    %1786 = vmatpush2.msra.mxu0 0.0
    %1787 = vmatprep.subr.mxu0 0.0
    %1788 = vmatpush2.msra.mxu0 0.0
    %1789 = vmatprep.subr.mxu0 0.0
    %1790 = vmatpush2.msra.mxu0 0.0
    %1791 = vmatprep.subr.mxu0 0.0
    %1792 = vmatpush2.msra.mxu0 0.0
    %1793 = vmatprep.subr.mxu0 0.0
    %1794 = vmatpush2.msra.mxu0 0.0
    %1795 = vmatprep.mubr.f32.mxu0 0.0
    %1796 = vmatmul.mubr.f32.gmra.mxu0 %v1652
    %v1797 = vpop.f32.mrf.mxu0
    %v1798 = vadd.f32 0.0, %v1797
    %v1799 = vpop.f32.mrf.mxu0
    %v1800 = vadd.f32 0.0, %v1799
    %1801 = vdwg.mxu0
    %1802 = vmatprep.subr.mxu0 %v1730
    %1803 = vmatpush1.msra.mxu0 %v1729
    %1804 = vmatprep.subr.mxu0 %v1726
    %1805 = vmatpush1.msra.mxu0 %v1725
    %1806 = vmatprep.subr.mxu0 %v1722
    %1807 = vmatpush1.msra.mxu0 %v1721
    %1808 = vmatprep.subr.mxu0 %v1718
    %1809 = vmatpush1.msra.mxu0 %v1717
    %1810 = vmatprep.subr.mxu0 %v1714
    %1811 = vmatpush1.msra.mxu0 %v1713
    %1812 = vmatprep.subr.mxu0 %v1710
    %1813 = vmatpush1.msra.mxu0 %v1709
    %1814 = vmatprep.subr.mxu0 %v1706
    %1815 = vmatpush1.msra.mxu0 %v1705
    %1816 = vmatprep.subr.mxu0 %v1702
    %1817 = vmatpush1.msra.mxu0 %v1701
    %1818 = vmatprep.subr.mxu0 %v1698
    %1819 = vmatpush1.msra.mxu0 %v1697
    %1820 = vmatprep.subr.mxu0 %v1694
    %1821 = vmatpush1.msra.mxu0 %v1693
    %1822 = vmatprep.subr.mxu0 %v1690
    %1823 = vmatpush1.msra.mxu0 %v1689
    %1824 = vmatprep.subr.mxu0 %v1686
    %1825 = vmatpush1.msra.mxu0 %v1685
    %1826 = vmatprep.subr.mxu0 %v1682
    %1827 = vmatpush1.msra.mxu0 %v1681
    %1828 = vmatprep.subr.mxu0 %v1678
    %1829 = vmatpush1.msra.mxu0 %v1677
    %1830 = vmatprep.subr.mxu0 %v1674
    %1831 = vmatpush1.msra.mxu0 %v1673
    %1832 = vmatprep.subr.mxu0 %v1670
    %1833 = vmatpush1.msra.mxu0 %v1669
    %1834 = vmatprep.subr.mxu0 0.0
    %1835 = vmatpush2.msra.mxu0 0.0
    %1836 = vmatprep.subr.mxu0 0.0
    %1837 = vmatpush2.msra.mxu0 0.0
    %1838 = vmatprep.subr.mxu0 0.0
    %1839 = vmatpush2.msra.mxu0 0.0
    %1840 = vmatprep.subr.mxu0 0.0
    %1841 = vmatpush2.msra.mxu0 0.0
    %1842 = vmatprep.subr.mxu0 0.0
    %1843 = vmatpush2.msra.mxu0 0.0
    %1844 = vmatprep.subr.mxu0 0.0
    %1845 = vmatpush2.msra.mxu0 0.0
    %1846 = vmatprep.subr.mxu0 0.0
    %1847 = vmatpush2.msra.mxu0 0.0
    %1848 = vmatprep.subr.mxu0 0.0
    %1849 = vmatpush2.msra.mxu0 0.0
    %1850 = vmatprep.subr.mxu0 0.0
    %1851 = vmatpush2.msra.mxu0 0.0
    %1852 = vmatprep.subr.mxu0 0.0
    %1853 = vmatpush2.msra.mxu0 0.0
    %1854 = vmatprep.subr.mxu0 0.0
    %1855 = vmatpush2.msra.mxu0 0.0
    %1856 = vmatprep.subr.mxu0 0.0
    %1857 = vmatpush2.msra.mxu0 0.0
    %1858 = vmatprep.subr.mxu0 0.0
    %1859 = vmatpush2.msra.mxu0 0.0
    %1860 = vmatprep.subr.mxu0 0.0
    %1861 = vmatpush2.msra.mxu0 0.0
    %1862 = vmatprep.subr.mxu0 0.0
    %1863 = vmatpush2.msra.mxu0 0.0
    %1864 = vmatprep.subr.mxu0 0.0
    %1865 = vmatpush2.msra.mxu0 0.0
    %1866 = vmatprep.mubr.f32.mxu0 0.0
    %1867 = vmatmul.mubr.f32.gmra.mxu0 %v1652
    %v1868 = vpop.f32.mrf.mxu0
    %v1869 = vadd.f32 0.0, %v1868
    %v1870 = vpop.f32.mrf.mxu0
    %v1871 = vadd.f32 0.0, %v1870
    %1872 = vdwg.mxu0
    %v1877 = vcombine.low %v1798, %v1800
    %v1878 = vcombine.low %v1869, %v1871
    %v1880 = vunpack.c.l.s4 1966171168
    %v1881 = vunpack.c.0.s8 %v1880
    %v1882 = vlaneseq
    %v1883 = vshrl.u32 %v1882, 7
    %v1884 = vsub.s32 %v1881, %v1883
    %v1885 = vrot.slane %v1877, %v1884
    %v1887 = vunpack.c.l.s4 1966171168
    %v1888 = vunpack.c.0.s8 %v1887
    %v1889 = vlaneseq
    %v1890 = vshrl.u32 %v1889, 7
    %v1891 = vsub.s32 %v1888, %v1890
    %v1892 = vrot.slane %v1878, %v1891
    %v1893 = vcombine.low %v1885, %v1892
    %v1895 = vunpack.c.l.s4 1966171168
    %v1896 = vunpack.c.0.s8 %v1895
    %v1897 = vlaneseq
    %v1898 = vshrl.u32 %v1897, 7
    %v1899 = vsub.s32 %v1896, %v1898
    %v1900 = vrot.slane %v1893, %v1899
    %v1902 = vadd.f32 %v1666, %v1900
    %v1903 = vxor.u32 %v1902, 2147483648
    %v1904 = vmul.f32 %v1903, 1.442695
    %v1905 = vpow.pop %v1904
    %v1906 = vadd.f32 %v1905, 1.0
    %v1907 = vrcp.pop %v1906
    %v1908 = vmul.f32 1.0, %v1907
    %v1910 = vrot.slane %v1902, 1
    %v1912 = vxor.u32 %v1910, 2147483648
    %v1913 = vmul.f32 %v1912, 1.442695
    %v1914 = vpow.pop %v1913
    %v1915 = vadd.f32 %v1914, 1.0
    %v1916 = vrcp.pop %v1915
    %v1917 = vmul.f32 1.0, %v1916
    %v1918 = vrot.slane %v1902, 2
    %v1920 = vtanh.pop %v1918
    %v1921 = vrot.slane %v1902, 3
    %v1923 = vxor.u32 %v1921, 2147483648
    %v1924 = vmul.f32 %v1923, 1.442695
    %v1925 = vpow.pop %v1924
    %v1926 = vadd.f32 %v1925, 1.0
    %v1927 = vrcp.pop %v1926
    %v1928 = vmul.f32 1.0, %v1927
    %v1929 = vmul.f32 %v1917, %v1650
    %v1930 = vmul.f32 %v1908, %v1920
    %v1931 = vadd.f32 %v1929, %v1930
    %v1932 = vtanh.pop %v1931
    %v1933 = vmul.f32 %v1928, %v1932
    %v1934 = vpack.c.bf16 %v1933, %v1933
    %v1936 = vunpack.c.l.b16 %v1934
    %v1937 = vpack.c.b16 %v1936, %v1936
    %v1939 = vshll.u32 %v1937, 16
    %v1941 = vrot.slane %v1939, 6
    %vm1943 = vsmask.f32 7946
    %vm1944 = vmand %vm1659, %vm1943
    %v1945 = vld [vmem:[#allocation3] sm:$0x4]
    %v1946 = vsel %vm1944, %v1941, %v1945
    %1947 = vst [vmem:[#allocation3] sm:$0x4] %v1946
    %s1948 = scalar_lea.vmem [#allocation2], 6
    %v1949 = vld [vmem:[%s1948] ss:$8 sm:$0xf]
    %v1950 = vld [vmem:[%s2] sm:$0xff]
    %v1951 = vld [vmem:[%s2 + $0x8] sm:$0xff]
    %v1952 = vld [vmem:[%s2 + $0x10] sm:$0xff]
    %v1953 = vld [vmem:[%s2 + $0x18] sm:$0xff]
    %v1954 = vld [vmem:[%s2 + $0x20] sm:$0xff]
    %v1955 = vld [vmem:[%s2 + $0x28] sm:$0xff]
    %v1956 = vld [vmem:[%s2 + $0x30] sm:$0xff]
    %v1957 = vld [vmem:[%s2 + $0x38] sm:$0xff]
    %v1958 = vld [vmem:[%s2 + $0x40] sm:$0xff]
    %v1959 = vld [vmem:[%s2 + $0x48] sm:$0xff]
    %v1960 = vld [vmem:[%s2 + $0x50] sm:$0xff]
    %v1961 = vld [vmem:[%s2 + $0x58] sm:$0xff]
    %v1962 = vld [vmem:[%s2 + $0x60] sm:$0xff]
    %v1963 = vld [vmem:[%s2 + $0x68] sm:$0xff]
    %v1964 = vld [vmem:[%s2 + $0x70] sm:$0xff]
    %v1965 = vld [vmem:[%s2 + $0x78] sm:$0xff]
    %v1966 = vld [vmem:[%s2 + $0x80] sm:$0xff]
    %v1967 = vld [vmem:[%s2 + $0x88] sm:$0xff]
    %v1968 = vld [vmem:[%s2 + $0x90] sm:$0xff]
    %v1969 = vld [vmem:[%s2 + $0x98] sm:$0xff]
    %v1970 = vld [vmem:[%s2 + $0xa0] sm:$0xff]
    %v1971 = vld [vmem:[%s2 + $0xa8] sm:$0xff]
    %v1972 = vld [vmem:[%s2 + $0xb0] sm:$0xff]
    %v1973 = vld [vmem:[%s2 + $0xb8] sm:$0xff]
    %v1974 = vld [vmem:[%s2 + $0xc0] sm:$0xff]
    %v1975 = vld [vmem:[%s2 + $0xc8] sm:$0xff]
    %v1976 = vld [vmem:[%s2 + $0xd0] sm:$0xff]
    %v1977 = vld [vmem:[%s2 + $0xd8] sm:$0xff]
    %v1978 = vld [vmem:[%s2 + $0xe0] sm:$0xff]
    %v1979 = vld [vmem:[%s2 + $0xe8] sm:$0xff]
    %v1980 = vld [vmem:[%s2 + $0xf0] sm:$0xff]
    %v1981 = vld [vmem:[%s2 + $0xf8] sm:$0xff]
    %v1982 = vld [vmem:[%s2 + $0x100] sm:$0xff]
    %v1983 = vld [vmem:[%s2 + $0x108] sm:$0xff]
    %v1984 = vld [vmem:[%s2 + $0x110] sm:$0xff]
    %v1985 = vld [vmem:[%s2 + $0x118] sm:$0xff]
    %v1986 = vld [vmem:[%s2 + $0x120] sm:$0xff]
    %v1987 = vld [vmem:[%s2 + $0x128] sm:$0xff]
    %v1988 = vld [vmem:[%s2 + $0x130] sm:$0xff]
    %v1989 = vld [vmem:[%s2 + $0x138] sm:$0xff]
    %v1990 = vld [vmem:[%s2 + $0x140] sm:$0xff]
    %v1991 = vld [vmem:[%s2 + $0x148] sm:$0xff]
    %v1992 = vld [vmem:[%s2 + $0x150] sm:$0xff]
    %v1993 = vld [vmem:[%s2 + $0x158] sm:$0xff]
    %v1994 = vld [vmem:[%s2 + $0x160] sm:$0xff]
    %v1995 = vld [vmem:[%s2 + $0x168] sm:$0xff]
    %v1996 = vld [vmem:[%s2 + $0x170] sm:$0xff]
    %v1997 = vld [vmem:[%s2 + $0x178] sm:$0xff]
    %v1998 = vld [vmem:[%s2 + $0x180] sm:$0xff]
    %v1999 = vld [vmem:[%s2 + $0x188] sm:$0xff]
    %v2000 = vld [vmem:[%s2 + $0x190] sm:$0xff]
    %v2001 = vld [vmem:[%s2 + $0x198] sm:$0xff]
    %v2002 = vld [vmem:[%s2 + $0x1a0] sm:$0xff]
    %v2003 = vld [vmem:[%s2 + $0x1a8] sm:$0xff]
    %v2004 = vld [vmem:[%s2 + $0x1b0] sm:$0xff]
    %v2005 = vld [vmem:[%s2 + $0x1b8] sm:$0xff]
    %v2006 = vld [vmem:[%s2 + $0x1c0] sm:$0xff]
    %v2007 = vld [vmem:[%s2 + $0x1c8] sm:$0xff]
    %v2008 = vld [vmem:[%s2 + $0x1d0] sm:$0xff]
    %v2009 = vld [vmem:[%s2 + $0x1d8] sm:$0xff]
    %v2010 = vld [vmem:[%s2 + $0x1e0] sm:$0xff]
    %v2011 = vld [vmem:[%s2 + $0x1e8] sm:$0xff]
    %v2012 = vld [vmem:[%s2 + $0x1f0] sm:$0xff]
    %v2013 = vld [vmem:[%s2 + $0x1f8] sm:$0xff]
    %2014 = vmatprep.subr.mxu0 %v2011
    %2015 = vmatpush1.msra.mxu0 %v2010
    %2016 = vmatprep.subr.mxu0 %v2007
    %2017 = vmatpush1.msra.mxu0 %v2006
    %2018 = vmatprep.subr.mxu0 %v2003
    %2019 = vmatpush1.msra.mxu0 %v2002
    %2020 = vmatprep.subr.mxu0 %v1999
    %2021 = vmatpush1.msra.mxu0 %v1998
    %2022 = vmatprep.subr.mxu0 %v1995
    %2023 = vmatpush1.msra.mxu0 %v1994
    %2024 = vmatprep.subr.mxu0 %v1991
    %2025 = vmatpush1.msra.mxu0 %v1990
    %2026 = vmatprep.subr.mxu0 %v1987
    %2027 = vmatpush1.msra.mxu0 %v1986
    %2028 = vmatprep.subr.mxu0 %v1983
    %2029 = vmatpush1.msra.mxu0 %v1982
    %2030 = vmatprep.subr.mxu0 %v1979
    %2031 = vmatpush1.msra.mxu0 %v1978
    %2032 = vmatprep.subr.mxu0 %v1975
    %2033 = vmatpush1.msra.mxu0 %v1974
    %2034 = vmatprep.subr.mxu0 %v1971
    %2035 = vmatpush1.msra.mxu0 %v1970
    %2036 = vmatprep.subr.mxu0 %v1967
    %2037 = vmatpush1.msra.mxu0 %v1966
    %2038 = vmatprep.subr.mxu0 %v1963
    %2039 = vmatpush1.msra.mxu0 %v1962
    %2040 = vmatprep.subr.mxu0 %v1959
    %2041 = vmatpush1.msra.mxu0 %v1958
    %2042 = vmatprep.subr.mxu0 %v1955
    %2043 = vmatpush1.msra.mxu0 %v1954
    %2044 = vmatprep.subr.mxu0 %v1951
    %2045 = vmatpush1.msra.mxu0 %v1950
    %2046 = vmatprep.subr.mxu0 0.0
    %2047 = vmatpush2.msra.mxu0 0.0
    %2048 = vmatprep.subr.mxu0 0.0
    %2049 = vmatpush2.msra.mxu0 0.0
    %2050 = vmatprep.subr.mxu0 0.0
    %2051 = vmatpush2.msra.mxu0 0.0
    %2052 = vmatprep.subr.mxu0 0.0
    %2053 = vmatpush2.msra.mxu0 0.0
    %2054 = vmatprep.subr.mxu0 0.0
    %2055 = vmatpush2.msra.mxu0 0.0
    %2056 = vmatprep.subr.mxu0 0.0
    %2057 = vmatpush2.msra.mxu0 0.0
    %2058 = vmatprep.subr.mxu0 0.0
    %2059 = vmatpush2.msra.mxu0 0.0
    %2060 = vmatprep.subr.mxu0 0.0
    %2061 = vmatpush2.msra.mxu0 0.0
    %2062 = vmatprep.subr.mxu0 0.0
    %2063 = vmatpush2.msra.mxu0 0.0
    %2064 = vmatprep.subr.mxu0 0.0
    %2065 = vmatpush2.msra.mxu0 0.0
    %2066 = vmatprep.subr.mxu0 0.0
    %2067 = vmatpush2.msra.mxu0 0.0
    %2068 = vmatprep.subr.mxu0 0.0
    %2069 = vmatpush2.msra.mxu0 0.0
    %2070 = vmatprep.subr.mxu0 0.0
    %2071 = vmatpush2.msra.mxu0 0.0
    %2072 = vmatprep.subr.mxu0 0.0
    %2073 = vmatpush2.msra.mxu0 0.0
    %2074 = vmatprep.subr.mxu0 0.0
    %2075 = vmatpush2.msra.mxu0 0.0
    %2076 = vmatprep.subr.mxu0 0.0
    %2077 = vmatpush2.msra.mxu0 0.0
    %2078 = vmatprep.mubr.f32.mxu0 0.0
    %2079 = vmatmul.mubr.f32.gmra.mxu0 %v1933
    %v2080 = vpop.f32.mrf.mxu0
    %v2081 = vadd.f32 0.0, %v2080
    %v2082 = vpop.f32.mrf.mxu0
    %v2083 = vadd.f32 0.0, %v2082
    %2084 = vdwg.mxu0
    %2085 = vmatprep.subr.mxu0 %v2013
    %2086 = vmatpush1.msra.mxu0 %v2012
    %2087 = vmatprep.subr.mxu0 %v2009
    %2088 = vmatpush1.msra.mxu0 %v2008
    %2089 = vmatprep.subr.mxu0 %v2005
    %2090 = vmatpush1.msra.mxu0 %v2004
    %2091 = vmatprep.subr.mxu0 %v2001
    %2092 = vmatpush1.msra.mxu0 %v2000
    %2093 = vmatprep.subr.mxu0 %v1997
    %2094 = vmatpush1.msra.mxu0 %v1996
    %2095 = vmatprep.subr.mxu0 %v1993
    %2096 = vmatpush1.msra.mxu0 %v1992
    %2097 = vmatprep.subr.mxu0 %v1989
    %2098 = vmatpush1.msra.mxu0 %v1988
    %2099 = vmatprep.subr.mxu0 %v1985
    %2100 = vmatpush1.msra.mxu0 %v1984
    %2101 = vmatprep.subr.mxu0 %v1981
    %2102 = vmatpush1.msra.mxu0 %v1980
    %2103 = vmatprep.subr.mxu0 %v1977
    %2104 = vmatpush1.msra.mxu0 %v1976
    %2105 = vmatprep.subr.mxu0 %v1973
    %2106 = vmatpush1.msra.mxu0 %v1972
    %2107 = vmatprep.subr.mxu0 %v1969
    %2108 = vmatpush1.msra.mxu0 %v1968
    %2109 = vmatprep.subr.mxu0 %v1965
    %2110 = vmatpush1.msra.mxu0 %v1964
    %2111 = vmatprep.subr.mxu0 %v1961
    %2112 = vmatpush1.msra.mxu0 %v1960
    %2113 = vmatprep.subr.mxu0 %v1957
    %2114 = vmatpush1.msra.mxu0 %v1956
    %2115 = vmatprep.subr.mxu0 %v1953
    %2116 = vmatpush1.msra.mxu0 %v1952
    %2117 = vmatprep.subr.mxu0 0.0
    %2118 = vmatpush2.msra.mxu0 0.0
    %2119 = vmatprep.subr.mxu0 0.0
    %2120 = vmatpush2.msra.mxu0 0.0
    %2121 = vmatprep.subr.mxu0 0.0
    %2122 = vmatpush2.msra.mxu0 0.0
    %2123 = vmatprep.subr.mxu0 0.0
    %2124 = vmatpush2.msra.mxu0 0.0
    %2125 = vmatprep.subr.mxu0 0.0
    %2126 = vmatpush2.msra.mxu0 0.0
    %2127 = vmatprep.subr.mxu0 0.0
    %2128 = vmatpush2.msra.mxu0 0.0
    %2129 = vmatprep.subr.mxu0 0.0
    %2130 = vmatpush2.msra.mxu0 0.0
    %2131 = vmatprep.subr.mxu0 0.0
    %2132 = vmatpush2.msra.mxu0 0.0
    %2133 = vmatprep.subr.mxu0 0.0
    %2134 = vmatpush2.msra.mxu0 0.0
    %2135 = vmatprep.subr.mxu0 0.0
    %2136 = vmatpush2.msra.mxu0 0.0
    %2137 = vmatprep.subr.mxu0 0.0
    %2138 = vmatpush2.msra.mxu0 0.0
    %2139 = vmatprep.subr.mxu0 0.0
    %2140 = vmatpush2.msra.mxu0 0.0
    %2141 = vmatprep.subr.mxu0 0.0
    %2142 = vmatpush2.msra.mxu0 0.0
    %2143 = vmatprep.subr.mxu0 0.0
    %2144 = vmatpush2.msra.mxu0 0.0
    %2145 = vmatprep.subr.mxu0 0.0
    %2146 = vmatpush2.msra.mxu0 0.0
    %2147 = vmatprep.subr.mxu0 0.0
    %2148 = vmatpush2.msra.mxu0 0.0
    %2149 = vmatprep.mubr.f32.mxu0 0.0
    %2150 = vmatmul.mubr.f32.gmra.mxu0 %v1933
    %v2151 = vpop.f32.mrf.mxu0
    %v2152 = vadd.f32 0.0, %v2151
    %v2153 = vpop.f32.mrf.mxu0
    %v2154 = vadd.f32 0.0, %v2153
    %2155 = vdwg.mxu0
    %v2160 = vcombine.low %v2081, %v2083
    %v2161 = vcombine.low %v2152, %v2154
    %v2163 = vunpack.c.l.s4 1966171168
    %v2164 = vunpack.c.0.s8 %v2163
    %v2165 = vlaneseq
    %v2166 = vshrl.u32 %v2165, 7
    %v2167 = vsub.s32 %v2164, %v2166
    %v2168 = vrot.slane %v2160, %v2167
    %v2170 = vunpack.c.l.s4 1966171168
    %v2171 = vunpack.c.0.s8 %v2170
    %v2172 = vlaneseq
    %v2173 = vshrl.u32 %v2172, 7
    %v2174 = vsub.s32 %v2171, %v2173
    %v2175 = vrot.slane %v2161, %v2174
    %v2176 = vcombine.low %v2168, %v2175
    %v2178 = vunpack.c.l.s4 1966171168
    %v2179 = vunpack.c.0.s8 %v2178
    %v2180 = vlaneseq
    %v2181 = vshrl.u32 %v2180, 7
    %v2182 = vsub.s32 %v2179, %v2181
    %v2183 = vrot.slane %v2176, %v2182
    %v2185 = vadd.f32 %v1949, %v2183
    %v2186 = vxor.u32 %v2185, 2147483648
    %v2187 = vmul.f32 %v2186, 1.442695
    %v2188 = vpow.pop %v2187
    %v2189 = vadd.f32 %v2188, 1.0
    %v2190 = vrcp.pop %v2189
    %v2191 = vmul.f32 1.0, %v2190
    %v2193 = vrot.slane %v2185, 1
    %v2195 = vxor.u32 %v2193, 2147483648
    %v2196 = vmul.f32 %v2195, 1.442695
    %v2197 = vpow.pop %v2196
    %v2198 = vadd.f32 %v2197, 1.0
    %v2199 = vrcp.pop %v2198
    %v2200 = vmul.f32 1.0, %v2199
    %v2201 = vrot.slane %v2185, 2
    %v2203 = vtanh.pop %v2201
    %v2204 = vrot.slane %v2185, 3
    %v2206 = vxor.u32 %v2204, 2147483648
    %v2207 = vmul.f32 %v2206, 1.442695
    %v2208 = vpow.pop %v2207
    %v2209 = vadd.f32 %v2208, 1.0
    %v2210 = vrcp.pop %v2209
    %v2211 = vmul.f32 1.0, %v2210
    %v2212 = vmul.f32 %v2200, %v1931
    %v2213 = vmul.f32 %v2191, %v2203
    %v2214 = vadd.f32 %v2212, %v2213
    %v2215 = vtanh.pop %v2214
    %v2216 = vmul.f32 %v2211, %v2215
    %v2217 = vpack.c.bf16 %v2216, %v2216
    %v2219 = vunpack.c.l.b16 %v2217
    %v2220 = vpack.c.b16 %v2219, %v2219
    %v2221 = vrot.slane %v2220, 5
    %vm2223 = vcmask 1043459
    %vm2224 = vsmask.f32 3328
    %vm2225 = vmand %vm2223, %vm2224
    %v2226 = vld [vmem:[#allocation3] sm:$0x8]
    %v2227 = vsel %vm2225, %v2221, %v2226
    %2228 = vst [vmem:[#allocation3] sm:$0x8] %v2227
    %s2229 = scalar_lea.vmem [#allocation2], 7
    %v2230 = vld [vmem:[%s2229] ss:$8 sm:$0xf]
    %v2231 = vld [vmem:[%s2] sm:$0xff]
    %v2232 = vld [vmem:[%s2 + $0x8] sm:$0xff]
    %v2233 = vld [vmem:[%s2 + $0x10] sm:$0xff]
    %v2234 = vld [vmem:[%s2 + $0x18] sm:$0xff]
    %v2235 = vld [vmem:[%s2 + $0x20] sm:$0xff]
    %v2236 = vld [vmem:[%s2 + $0x28] sm:$0xff]
    %v2237 = vld [vmem:[%s2 + $0x30] sm:$0xff]
    %v2238 = vld [vmem:[%s2 + $0x38] sm:$0xff]
    %v2239 = vld [vmem:[%s2 + $0x40] sm:$0xff]
    %v2240 = vld [vmem:[%s2 + $0x48] sm:$0xff]
    %v2241 = vld [vmem:[%s2 + $0x50] sm:$0xff]
    %v2242 = vld [vmem:[%s2 + $0x58] sm:$0xff]
    %v2243 = vld [vmem:[%s2 + $0x60] sm:$0xff]
    %v2244 = vld [vmem:[%s2 + $0x68] sm:$0xff]
    %v2245 = vld [vmem:[%s2 + $0x70] sm:$0xff]
    %v2246 = vld [vmem:[%s2 + $0x78] sm:$0xff]
    %v2247 = vld [vmem:[%s2 + $0x80] sm:$0xff]
    %v2248 = vld [vmem:[%s2 + $0x88] sm:$0xff]
    %v2249 = vld [vmem:[%s2 + $0x90] sm:$0xff]
    %v2250 = vld [vmem:[%s2 + $0x98] sm:$0xff]
    %v2251 = vld [vmem:[%s2 + $0xa0] sm:$0xff]
    %v2252 = vld [vmem:[%s2 + $0xa8] sm:$0xff]
    %v2253 = vld [vmem:[%s2 + $0xb0] sm:$0xff]
    %v2254 = vld [vmem:[%s2 + $0xb8] sm:$0xff]
    %v2255 = vld [vmem:[%s2 + $0xc0] sm:$0xff]
    %v2256 = vld [vmem:[%s2 + $0xc8] sm:$0xff]
    %v2257 = vld [vmem:[%s2 + $0xd0] sm:$0xff]
    %v2258 = vld [vmem:[%s2 + $0xd8] sm:$0xff]
    %v2259 = vld [vmem:[%s2 + $0xe0] sm:$0xff]
    %v2260 = vld [vmem:[%s2 + $0xe8] sm:$0xff]
    %v2261 = vld [vmem:[%s2 + $0xf0] sm:$0xff]
    %v2262 = vld [vmem:[%s2 + $0xf8] sm:$0xff]
    %v2263 = vld [vmem:[%s2 + $0x100] sm:$0xff]
    %v2264 = vld [vmem:[%s2 + $0x108] sm:$0xff]
    %v2265 = vld [vmem:[%s2 + $0x110] sm:$0xff]
    %v2266 = vld [vmem:[%s2 + $0x118] sm:$0xff]
    %v2267 = vld [vmem:[%s2 + $0x120] sm:$0xff]
    %v2268 = vld [vmem:[%s2 + $0x128] sm:$0xff]
    %v2269 = vld [vmem:[%s2 + $0x130] sm:$0xff]
    %v2270 = vld [vmem:[%s2 + $0x138] sm:$0xff]
    %v2271 = vld [vmem:[%s2 + $0x140] sm:$0xff]
    %v2272 = vld [vmem:[%s2 + $0x148] sm:$0xff]
    %v2273 = vld [vmem:[%s2 + $0x150] sm:$0xff]
    %v2274 = vld [vmem:[%s2 + $0x158] sm:$0xff]
    %v2275 = vld [vmem:[%s2 + $0x160] sm:$0xff]
    %v2276 = vld [vmem:[%s2 + $0x168] sm:$0xff]
    %v2277 = vld [vmem:[%s2 + $0x170] sm:$0xff]
    %v2278 = vld [vmem:[%s2 + $0x178] sm:$0xff]
    %v2279 = vld [vmem:[%s2 + $0x180] sm:$0xff]
    %v2280 = vld [vmem:[%s2 + $0x188] sm:$0xff]
    %v2281 = vld [vmem:[%s2 + $0x190] sm:$0xff]
    %v2282 = vld [vmem:[%s2 + $0x198] sm:$0xff]
    %v2283 = vld [vmem:[%s2 + $0x1a0] sm:$0xff]
    %v2284 = vld [vmem:[%s2 + $0x1a8] sm:$0xff]
    %v2285 = vld [vmem:[%s2 + $0x1b0] sm:$0xff]
    %v2286 = vld [vmem:[%s2 + $0x1b8] sm:$0xff]
    %v2287 = vld [vmem:[%s2 + $0x1c0] sm:$0xff]
    %v2288 = vld [vmem:[%s2 + $0x1c8] sm:$0xff]
    %v2289 = vld [vmem:[%s2 + $0x1d0] sm:$0xff]
    %v2290 = vld [vmem:[%s2 + $0x1d8] sm:$0xff]
    %v2291 = vld [vmem:[%s2 + $0x1e0] sm:$0xff]
    %v2292 = vld [vmem:[%s2 + $0x1e8] sm:$0xff]
    %v2293 = vld [vmem:[%s2 + $0x1f0] sm:$0xff]
    %v2294 = vld [vmem:[%s2 + $0x1f8] sm:$0xff]
    %2295 = vmatprep.subr.mxu0 %v2292
    %2296 = vmatpush1.msra.mxu0 %v2291
    %2297 = vmatprep.subr.mxu0 %v2288
    %2298 = vmatpush1.msra.mxu0 %v2287
    %2299 = vmatprep.subr.mxu0 %v2284
    %2300 = vmatpush1.msra.mxu0 %v2283
    %2301 = vmatprep.subr.mxu0 %v2280
    %2302 = vmatpush1.msra.mxu0 %v2279
    %2303 = vmatprep.subr.mxu0 %v2276
    %2304 = vmatpush1.msra.mxu0 %v2275
    %2305 = vmatprep.subr.mxu0 %v2272
    %2306 = vmatpush1.msra.mxu0 %v2271
    %2307 = vmatprep.subr.mxu0 %v2268
    %2308 = vmatpush1.msra.mxu0 %v2267
    %2309 = vmatprep.subr.mxu0 %v2264
    %2310 = vmatpush1.msra.mxu0 %v2263
    %2311 = vmatprep.subr.mxu0 %v2260
    %2312 = vmatpush1.msra.mxu0 %v2259
    %2313 = vmatprep.subr.mxu0 %v2256
    %2314 = vmatpush1.msra.mxu0 %v2255
    %2315 = vmatprep.subr.mxu0 %v2252
    %2316 = vmatpush1.msra.mxu0 %v2251
    %2317 = vmatprep.subr.mxu0 %v2248
    %2318 = vmatpush1.msra.mxu0 %v2247
    %2319 = vmatprep.subr.mxu0 %v2244
    %2320 = vmatpush1.msra.mxu0 %v2243
    %2321 = vmatprep.subr.mxu0 %v2240
    %2322 = vmatpush1.msra.mxu0 %v2239
    %2323 = vmatprep.subr.mxu0 %v2236
    %2324 = vmatpush1.msra.mxu0 %v2235
    %2325 = vmatprep.subr.mxu0 %v2232
    %2326 = vmatpush1.msra.mxu0 %v2231
    %2327 = vmatprep.subr.mxu0 0.0
    %2328 = vmatpush2.msra.mxu0 0.0
    %2329 = vmatprep.subr.mxu0 0.0
    %2330 = vmatpush2.msra.mxu0 0.0
    %2331 = vmatprep.subr.mxu0 0.0
    %2332 = vmatpush2.msra.mxu0 0.0
    %2333 = vmatprep.subr.mxu0 0.0
    %2334 = vmatpush2.msra.mxu0 0.0
    %2335 = vmatprep.subr.mxu0 0.0
    %2336 = vmatpush2.msra.mxu0 0.0
    %2337 = vmatprep.subr.mxu0 0.0
    %2338 = vmatpush2.msra.mxu0 0.0
    %2339 = vmatprep.subr.mxu0 0.0
    %2340 = vmatpush2.msra.mxu0 0.0
    %2341 = vmatprep.subr.mxu0 0.0
    %2342 = vmatpush2.msra.mxu0 0.0
    %2343 = vmatprep.subr.mxu0 0.0
    %2344 = vmatpush2.msra.mxu0 0.0
    %2345 = vmatprep.subr.mxu0 0.0
    %2346 = vmatpush2.msra.mxu0 0.0
    %2347 = vmatprep.subr.mxu0 0.0
    %2348 = vmatpush2.msra.mxu0 0.0
    %2349 = vmatprep.subr.mxu0 0.0
    %2350 = vmatpush2.msra.mxu0 0.0
    %2351 = vmatprep.subr.mxu0 0.0
    %2352 = vmatpush2.msra.mxu0 0.0
    %2353 = vmatprep.subr.mxu0 0.0
    %2354 = vmatpush2.msra.mxu0 0.0
    %2355 = vmatprep.subr.mxu0 0.0
    %2356 = vmatpush2.msra.mxu0 0.0
    %2357 = vmatprep.subr.mxu0 0.0
    %2358 = vmatpush2.msra.mxu0 0.0
    %2359 = vmatprep.mubr.f32.mxu0 0.0
    %2360 = vmatmul.mubr.f32.gmra.mxu0 %v2216
    %v2361 = vpop.f32.mrf.mxu0
    %v2362 = vadd.f32 0.0, %v2361
    %v2363 = vpop.f32.mrf.mxu0
    %v2364 = vadd.f32 0.0, %v2363
    %2365 = vdwg.mxu0
    %2366 = vmatprep.subr.mxu0 %v2294
    %2367 = vmatpush1.msra.mxu0 %v2293
    %2368 = vmatprep.subr.mxu0 %v2290
    %2369 = vmatpush1.msra.mxu0 %v2289
    %2370 = vmatprep.subr.mxu0 %v2286
    %2371 = vmatpush1.msra.mxu0 %v2285
    %2372 = vmatprep.subr.mxu0 %v2282
    %2373 = vmatpush1.msra.mxu0 %v2281
    %2374 = vmatprep.subr.mxu0 %v2278
    %2375 = vmatpush1.msra.mxu0 %v2277
    %2376 = vmatprep.subr.mxu0 %v2274
    %2377 = vmatpush1.msra.mxu0 %v2273
    %2378 = vmatprep.subr.mxu0 %v2270
    %2379 = vmatpush1.msra.mxu0 %v2269
    %2380 = vmatprep.subr.mxu0 %v2266
    %2381 = vmatpush1.msra.mxu0 %v2265
    %2382 = vmatprep.subr.mxu0 %v2262
    %2383 = vmatpush1.msra.mxu0 %v2261
    %2384 = vmatprep.subr.mxu0 %v2258
    %2385 = vmatpush1.msra.mxu0 %v2257
    %2386 = vmatprep.subr.mxu0 %v2254
    %2387 = vmatpush1.msra.mxu0 %v2253
    %2388 = vmatprep.subr.mxu0 %v2250
    %2389 = vmatpush1.msra.mxu0 %v2249
    %2390 = vmatprep.subr.mxu0 %v2246
    %2391 = vmatpush1.msra.mxu0 %v2245
    %2392 = vmatprep.subr.mxu0 %v2242
    %2393 = vmatpush1.msra.mxu0 %v2241
    %2394 = vmatprep.subr.mxu0 %v2238
    %2395 = vmatpush1.msra.mxu0 %v2237
    %2396 = vmatprep.subr.mxu0 %v2234
    %2397 = vmatpush1.msra.mxu0 %v2233
    %2398 = vmatprep.subr.mxu0 0.0
    %2399 = vmatpush2.msra.mxu0 0.0
    %2400 = vmatprep.subr.mxu0 0.0
    %2401 = vmatpush2.msra.mxu0 0.0
    %2402 = vmatprep.subr.mxu0 0.0
    %2403 = vmatpush2.msra.mxu0 0.0
    %2404 = vmatprep.subr.mxu0 0.0
    %2405 = vmatpush2.msra.mxu0 0.0
    %2406 = vmatprep.subr.mxu0 0.0
    %2407 = vmatpush2.msra.mxu0 0.0
    %2408 = vmatprep.subr.mxu0 0.0
    %2409 = vmatpush2.msra.mxu0 0.0
    %2410 = vmatprep.subr.mxu0 0.0
    %2411 = vmatpush2.msra.mxu0 0.0
    %2412 = vmatprep.subr.mxu0 0.0
    %2413 = vmatpush2.msra.mxu0 0.0
    %2414 = vmatprep.subr.mxu0 0.0
    %2415 = vmatpush2.msra.mxu0 0.0
    %2416 = vmatprep.subr.mxu0 0.0
    %2417 = vmatpush2.msra.mxu0 0.0
    %2418 = vmatprep.subr.mxu0 0.0
    %2419 = vmatpush2.msra.mxu0 0.0
    %2420 = vmatprep.subr.mxu0 0.0
    %2421 = vmatpush2.msra.mxu0 0.0
    %2422 = vmatprep.subr.mxu0 0.0
    %2423 = vmatpush2.msra.mxu0 0.0
    %2424 = vmatprep.subr.mxu0 0.0
    %2425 = vmatpush2.msra.mxu0 0.0
    %2426 = vmatprep.subr.mxu0 0.0
    %2427 = vmatpush2.msra.mxu0 0.0
    %2428 = vmatprep.subr.mxu0 0.0
    %2429 = vmatpush2.msra.mxu0 0.0
    %2430 = vmatprep.mubr.f32.mxu0 0.0
    %2431 = vmatmul.mubr.f32.gmra.mxu0 %v2216
    %v2432 = vpop.f32.mrf.mxu0
    %v2433 = vadd.f32 0.0, %v2432
    %v2434 = vpop.f32.mrf.mxu0
    %v2435 = vadd.f32 0.0, %v2434
    %2436 = vdwg.mxu0
    %v2441 = vcombine.low %v2362, %v2364
    %v2442 = vcombine.low %v2433, %v2435
    %v2444 = vunpack.c.l.s4 1966171168
    %v2445 = vunpack.c.0.s8 %v2444
    %v2446 = vlaneseq
    %v2447 = vshrl.u32 %v2446, 7
    %v2448 = vsub.s32 %v2445, %v2447
    %v2449 = vrot.slane %v2441, %v2448
    %v2451 = vunpack.c.l.s4 1966171168
    %v2452 = vunpack.c.0.s8 %v2451
    %v2453 = vlaneseq
    %v2454 = vshrl.u32 %v2453, 7
    %v2455 = vsub.s32 %v2452, %v2454
    %v2456 = vrot.slane %v2442, %v2455
    %v2457 = vcombine.low %v2449, %v2456
    %v2459 = vunpack.c.l.s4 1966171168
    %v2460 = vunpack.c.0.s8 %v2459
    %v2461 = vlaneseq
    %v2462 = vshrl.u32 %v2461, 7
    %v2463 = vsub.s32 %v2460, %v2462
    %v2464 = vrot.slane %v2457, %v2463
    %v2466 = vadd.f32 %v2230, %v2464
    %v2467 = vxor.u32 %v2466, 2147483648
    %v2468 = vmul.f32 %v2467, 1.442695
    %v2469 = vpow.pop %v2468
    %v2470 = vadd.f32 %v2469, 1.0
    %v2471 = vrcp.pop %v2470
    %v2472 = vmul.f32 1.0, %v2471
    %v2474 = vrot.slane %v2466, 1
    %v2476 = vxor.u32 %v2474, 2147483648
    %v2477 = vmul.f32 %v2476, 1.442695
    %v2478 = vpow.pop %v2477
    %v2479 = vadd.f32 %v2478, 1.0
    %v2480 = vrcp.pop %v2479
    %v2481 = vmul.f32 1.0, %v2480
    %v2482 = vrot.slane %v2466, 2
    %v2484 = vtanh.pop %v2482
    %v2485 = vrot.slane %v2466, 3
    %v2487 = vxor.u32 %v2485, 2147483648
    %v2488 = vmul.f32 %v2487, 1.442695
    %v2489 = vpow.pop %v2488
    %v2490 = vadd.f32 %v2489, 1.0
    %v2491 = vrcp.pop %v2490
    %v2492 = vmul.f32 1.0, %v2491
    %v2493 = vmul.f32 %v2481, %v2214
    %v2494 = vmul.f32 %v2472, %v2484
    %v2495 = vadd.f32 %v2493, %v2494
    %v2496 = vtanh.pop %v2495
    %v2497 = vmul.f32 %v2492, %v2496
    %v2498 = vpack.c.bf16 %v2497, %v2497
    %v2500 = vunpack.c.l.b16 %v2498
    %v2501 = vpack.c.b16 %v2500, %v2500
    %v2503 = vshll.u32 %v2501, 16
    %v2505 = vrot.slane %v2503, 5
    %vm2507 = vsmask.f32 7950
    %vm2508 = vmand %vm2223, %vm2507
    %v2509 = vld [vmem:[#allocation3] sm:$0x8]
    %v2510 = vsel %vm2508, %v2505, %v2509
    %2511 = vst [vmem:[#allocation3] sm:$0x8] %v2510
    %vm2512 = vcmask 7168
    %2513 = vst.msk [vmem:[#allocation4] sm:$0xff] %vm2512, -inf
    %2514 = vst.msk [vmem:[#allocation5] sm:$0xff] %vm2512, 0.0
  $region29: #{decoder_forward.2} parent=0 // pred_fallthru
    _
  %v2515 = vld [vmem:[#allocation3] sm:$0xf]
  %v2516 = vld [vmem:[%s4] sm:$0xf]
  %v2517 = vld [vmem:[%s4 + $0x4] sm:$0xf]
  %v2518 = vld [vmem:[%s4 + $0x8] sm:$0xf]
  %v2519 = vld [vmem:[%s4 + $0xc] sm:$0xf]
  %v2520 = vld [vmem:[%s4 + $0x10] sm:$0xf]
  %v2521 = vld [vmem:[%s4 + $0x14] sm:$0xf]
  %v2522 = vld [vmem:[%s4 + $0x18] sm:$0xf]
  %v2523 = vld [vmem:[%s4 + $0x1c] sm:$0xf]
  %v2524 = vld [vmem:[%s4 + $0x20] sm:$0xf]
  %v2525 = vld [vmem:[%s4 + $0x24] sm:$0xf]
  %v2526 = vld [vmem:[%s4 + $0x28] sm:$0xf]
  %v2527 = vld [vmem:[%s4 + $0x2c] sm:$0xf]
  %v2528 = vld [vmem:[%s4 + $0x30] sm:$0xf]
  %v2529 = vld [vmem:[%s4 + $0x34] sm:$0xf]
  %v2530 = vld [vmem:[%s4 + $0x38] sm:$0xf]
  %v2531 = vld [vmem:[%s4 + $0x3c] sm:$0xf]
  %v2532 = vld [vmem:[%s5] sm:$0x1]
  %v2534 = vlaneseq
  %v2535 = vshrl.u32 %v2534, 7
  %v2536 = vsub.s32 0, %v2535
  %v2537 = vrot.slane %v2532, %v2536
  %v2555 = vunpack.c.l.b16 %v2516
  %v2556 = vunpack.c.l.b16 %v2517
  %v2557 = vunpack.c.l.b16 %v2518
  %v2558 = vunpack.c.l.b16 %v2519
  %v2559 = vunpack.c.l.b16 %v2520
  %v2560 = vunpack.c.l.b16 %v2521
  %v2561 = vunpack.c.l.b16 %v2522
  %v2562 = vunpack.c.l.b16 %v2523
  %v2563 = vunpack.c.l.b16 %v2524
  %v2564 = vunpack.c.l.b16 %v2525
  %v2565 = vunpack.c.l.b16 %v2526
  %v2566 = vunpack.c.l.b16 %v2527
  %v2567 = vunpack.c.l.b16 %v2528
  %v2568 = vunpack.c.l.b16 %v2529
  %v2569 = vunpack.c.l.b16 %v2530
  %v2570 = vunpack.c.l.b16 %v2531
  %v2571 = vpack.c.b16 %v2556, %v2555
  %v2572 = vpack.c.b16 %v2558, %v2557
  %v2573 = vpack.c.b16 %v2560, %v2559
  %v2574 = vpack.c.b16 %v2562, %v2561
  %v2575 = vpack.c.b16 %v2564, %v2563
  %v2576 = vpack.c.b16 %v2566, %v2565
  %v2577 = vpack.c.b16 %v2568, %v2567
  %v2578 = vpack.c.b16 %v2570, %v2569
  %2587 = vmatprep.subr.bf16.mxu0 0
  %2588 = vmatpush1.bf16.msra.mxu0 %v2578
  %2589 = vmatprep.subr.bf16.mxu0 0
  %2590 = vmatpush1.bf16.msra.mxu0 %v2577
  %2591 = vmatprep.subr.bf16.mxu0 0
  %2592 = vmatpush1.bf16.msra.mxu0 %v2576
  %2593 = vmatprep.subr.bf16.mxu0 0
  %2594 = vmatpush1.bf16.msra.mxu0 %v2575
  %2595 = vmatprep.subr.bf16.mxu0 0
  %2596 = vmatpush1.bf16.msra.mxu0 %v2574
  %2597 = vmatprep.subr.bf16.mxu0 0
  %2598 = vmatpush1.bf16.msra.mxu0 %v2573
  %2599 = vmatprep.subr.bf16.mxu0 0
  %2600 = vmatpush1.bf16.msra.mxu0 %v2572
  %2601 = vmatprep.subr.bf16.mxu0 0
  %2602 = vmatpush1.bf16.msra.mxu0 %v2571
  %2603 = vmatprep.subr.bf16.mxu0 0
  %2604 = vmatpush2.bf16.msra.mxu0 0
  %2605 = vmatprep.subr.bf16.mxu0 0
  %2606 = vmatpush2.bf16.msra.mxu0 0
  %2607 = vmatprep.subr.bf16.mxu0 0
  %2608 = vmatpush2.bf16.msra.mxu0 0
  %2609 = vmatprep.subr.bf16.mxu0 0
  %2610 = vmatpush2.bf16.msra.mxu0 0
  %2611 = vmatprep.subr.bf16.mxu0 0
  %2612 = vmatpush2.bf16.msra.mxu0 0
  %2613 = vmatprep.subr.bf16.mxu0 0
  %2614 = vmatpush2.bf16.msra.mxu0 0
  %2615 = vmatprep.subr.bf16.mxu0 0
  %2616 = vmatpush2.bf16.msra.mxu0 0
  %2617 = vmatprep.subr.bf16.mxu0 0
  %2618 = vmatpush2.bf16.msra.mxu0 0
  %2619 = vmatprep.mubr.bf16.mxu0 0
  %2620 = vmatmul.mubr.bf16.gmra.mxu0 %v2515
  %v2621 = vpop.f32.mrf.mxu0
  %v2622 = vadd.f32 %v2537, %v2621
  %v2623 = vpop.f32.mrf.mxu0
  %v2624 = vpop.f32.mrf.mxu0
  %v2625 = vpop.f32.mrf.mxu0
  %2626 = vdwg.mxu0
  %2627 = vst [vmem:[%s6] sm:$0xff] %v2622
  %v2628 = vld [vmem:[#allocation4] sm:$0xff]
  %2629 = vmax.xlane.f32.xlu0 %v2622
  %v2630 = vpop.xlane.xlu0 %2629
  %v2631 = vmax.f32 %v2628, %v2630
  %v2632 = vld [vmem:[#allocation5] sm:$0xff]
  %v2633 = vsub.f32 %v2628, %v2631
  %v2634 = vmul.f32 %v2633, 1.442695
  %v2635 = vpow.pop %v2634
  %v2636 = vmul.f32 %v2632, %v2635
  %2638 = vset.pattern.permute.xlu0 0
  %2639 = vperm.xlu0 %2638, %v2631
  %v2640 = vpop.permute.xlu0 %2639
  %v2642 = vsub.f32 %v2622, %v2640
  %v2643 = vmul.f32 %v2642, 1.442695
  %v2644 = vpow.pop %v2643
  %2645 = vadd.xlane.f32.xlu0 %v2644
  %v2646 = vpop.xlane.xlu0 %2645
  %v2647 = vadd.f32 %v2636, %v2646
  %vm2648 = vcmask 7168
  %2649 = vst.msk [vmem:[#allocation5] sm:$0xff] %vm2648, %v2647
  %2650 = vst.msk [vmem:[#allocation4] sm:$0xff] %vm2648, %v2631
  // Predicated region
  $region30: #{decoder_forward.2} parent=0 // pred_check
    %p2651 = pneg %p26
  $region31: #{decoder_forward.2} parent=0 // pred_check_branch
    %2653 = sbr.rel (%p2651) target = $region33
  $region32: #{decoder_forward.2} parent=0 // pred_region
    %v2654 = vld [vmem:[#allocation4] sm:$0xff]
    %v2655 = vld [vmem:[#allocation5] sm:$0xff]
    %v2656 = vlog2.pop %v2655
    %v2657 = vmul.f32 %v2656, 0.6931472
    %v2658 = vadd.f32 %v2654, %v2657
    %2659 = vst.msk [vmem:[%s7] sm:$0xff] %vm2648, %v2658
  $region33: #{decoder_forward.2} parent=0 // pred_fallthru
    _
  // Predicated region
  $region34: #{decoder_forward.2} parent=0 // pred_check
    _
  $region35: #{decoder_forward.2} parent=0 // pred_check_branch
    %2661 = sbr.rel (0) target = $region37
  $region36: #{decoder_forward.2} parent=0 // pred_region
    _
  $region37: #{decoder_forward.2} parent=0 // pred_fallthru
    _
  // Predicated region
  $region38: #{decoder_forward.2} parent=0 // pred_check
    _
  $region39: #{decoder_forward.2} parent=0 // pred_check_branch
    %2663 = sbr.rel (0) target = $region41
  $region40: #{decoder_forward.2} parent=0 // pred_region
    _
  $region41: #{decoder_forward.2} parent=0 // pred_fallthru
    _
  // Predicated region
  $region42: #{decoder_forward.2} parent=0 // pred_check
    _
  $region43: #{decoder_forward.2} parent=0 // pred_check_branch
    %2665 = sbr.rel (0) target = $region45
  $region44: #{decoder_forward.2} parent=0 // pred_region
    _
  $region45: #{decoder_forward.2} parent=0 // pred_fallthru
    _
  // Predicated region
  $region46: #{decoder_forward.2} parent=0 // pred_check
    _
  $region47: #{decoder_forward.2} parent=0 // pred_check_branch
    %2667 = sbr.rel (0) target = $region49
  $region48: #{decoder_forward.2} parent=0 // pred_region
    _
  $region49: #{decoder_forward.2} parent=0 // pred_fallthru
    _

</llo_original>
